<compile_context>
chip_gen: v7x
topology: tpu7x:2x2x1
jax: 0.10.0
libtpu: 0.0.40
codegen_flags: <defaults>
</compile_context>

<pallas_src>
import functools

import jax
import jax.numpy as jnp
from jax.experimental import pallas as pl
from jax.experimental.pallas import tpu as pltpu

_LANE = 128  # each gate padded to a whole 128-lane vreg block


def _dlstm_kernel(*refs, hidden, batch, num_layers):
    """Fused stacked unidirectional LSTM forward (zero initial state), wavefront-
    interleaved across layers.

    refs layout (all whole-array VMEM, no scratch):
      refs[0]          x_ref      (T*B, D_in)
      refs[1]          w_ih0_pad  (D_in,   4*LANE)  gate-padded, i/f/o cols * 0.5
      refs[2]          w_hh0_pad  (LANE,   4*LANE)
      refs[3]          b0_pad     (1,      4*LANE)
      per layer l>=1:
        refs[...]      w_stack_l  (2*LANE, 4*LANE)  rows[0:H]=W_ih^T, rows[LANE:LANE+H]=W_hh^T
        refs[...]      b_l_pad    (1,      4*LANE)
      refs[-1]         out_ref    (T*B, LANE)
    PyTorch gate order: i, f, g, o.
    """
    H = hidden
    B = batch
    L = num_layers
    P = _LANE
    f32 = jnp.float32

    x_ref = refs[0]
    w_ih0_ref, w_hh0_ref, b0_ref = refs[1:4]
    upper = []
    idx = 4
    for _ in range(L - 1):
        upper.append((refs[idx], refs[idx + 1]))
        idx += 2
    out_ref = refs[idx]
    T = x_ref.shape[0] // B

    # Hoisted layer-0 input projection for the whole sequence: one wide MXU matmul,
    # kept as a traced value (vreg-resident, no VMEM scratch round trip).
    gx0 = jnp.dot(x_ref[...], w_ih0_ref[...], preferred_element_type=f32) + b0_ref[...]
    w_hh0 = w_hh0_ref[...]                                    # (P, 4P), loop invariant
    # TODO(synk): with many serial steps sharing this RHS, stage it once via
    # pltpu.matmul_push_rhs / matmul_acc_lhs / matmul_pop (MRB accumulate on v7x)
    # instead of a fresh jnp.dot per step.
    upper_w = [(w_ref[...], b_ref[...]) for w_ref, b_ref in upper]

    def gates_to_hc(g, c):
        # i/f/o columns pre-scaled by 0.5 -> sigmoid(z) = 0.5*tanh(z/2) + 0.5, so one
        # wide 4P-lane tanh covers all four gates; candidate gate keeps plain tanh.
        th = jnp.tanh(g)
        sg = th * 0.5 + 0.5
        i_g = sg[:, 0 * P:1 * P]
        f_g = sg[:, 1 * P:2 * P]
        g_g = th[:, 2 * P:3 * P]
        o_g = sg[:, 3 * P:4 * P]
        c_new = f_g * c + i_g * g_g
        h_new = o_g * jnp.tanh(c_new)
        return h_new, c_new

    zeros = jnp.zeros((B, P), f32)
    states = [(zeros, zeros)] * L   # (h, c) per layer, gate-padded; padded lanes stay 0

    # Wavefront schedule over a fully-unrolled static loop: at outer step t, layer l
    # advances to its timestep (t - l).  All updates in one iteration read only the
    # previous iteration's states -> the L per-step chains are mutually independent.
    # TODO(synk): for production-sized T, cap the unroll (factor 4-8) instead.
    for t in range(T + L - 1):
        new_states = list(states)
        for l in range(L):
            s = t - l
            if not (0 <= s < T):
                continue
            h_l, c_l = states[l]
            if l == 0:
                g = gx0[s * B:(s + 1) * B, :] + jnp.dot(
                    h_l, w_hh0, preferred_element_type=f32)
            else:
                h_in = states[l - 1][0]   # h_{l-1, s}, produced in the previous iteration
                w_stk, b_l = upper_w[l - 1]
                g = jnp.dot(jnp.concatenate([h_in, h_l], axis=1), w_stk,
                            preferred_element_type=f32) + b_l
            h_new, c_new = gates_to_hc(g, c_l)
            new_states[l] = (h_new, c_new)
            if l == L - 1:
                # Lane-dense (B, 128) store with a static row index; off the
                # recurrent dependence chain.
                out_ref[pl.ds(s * B, B), :] = h_new
        states = new_states


def _pad_gate_cols(a, hidden):
    """(rows, 4H) -> (rows, 4*_LANE): gate g occupies lanes [g*_LANE, g*_LANE + H);
    i/f/o columns pre-scaled by 0.5 for the sigmoid-via-tanh trick (PyTorch gate
    order i, f, g, o; the candidate 'g' gate stays unscaled)."""
    rows = a.shape[0]
    H = hidden
    out = jnp.zeros((rows, 4 * _LANE), jnp.float32)
    for g in range(4):
        scale = 1.0 if g == 2 else 0.5
        out = out.at[:, g * _LANE:g * _LANE + H].set(a[:, g * H:(g + 1) * H] * scale)
    return out


def _prep_params(params, hidden):
    """Pre-transpose, gate-pad and pre-scale all layer parameters."""
    H = hidden
    flat = []
    # Layer 0: hoistable input projection -> separate W_ih^T / W_hh^T / bias.
    p0 = params[0]
    w_ih0 = _pad_gate_cols(p0["w_ih"].astype(jnp.float32).T, H)            # (D, 4P)
    w_hh0 = jnp.zeros((_LANE, 4 * _LANE), jnp.float32).at[:H].set(
        _pad_gate_cols(p0["w_hh"].astype(jnp.float32).T, H))               # (P, 4P)
    b0 = _pad_gate_cols((p0["b_ih"] + p0["b_hh"]).astype(jnp.float32)[None, :], H)
    flat += [w_ih0, w_hh0, b0]
    # Layers >= 1: stacked [W_ih^T ; W_hh^T] so the per-step input projection and the
    # recurrence are a single matmul against concat([h_below, h_self]).
    for p in params[1:]:
        stk = jnp.zeros((2 * _LANE, 4 * _LANE), jnp.float32)
        stk = stk.at[:H].set(_pad_gate_cols(p["w_ih"].astype(jnp.float32).T, H))
        stk = stk.at[_LANE:_LANE + H].set(
            _pad_gate_cols(p["w_hh"].astype(jnp.float32).T, H))
        b = _pad_gate_cols((p["b_ih"] + p["b_hh"]).astype(jnp.float32)[None, :], H)
        flat += [stk, b]
    return flat


def dlstm_forward(x, params):
    """dLSTM.forward: stacked unidirectional LSTM, zero initial state; returns the
    last layer's hidden sequence, shape (T, B, H)."""
    T, B, D = x.shape
    H = params[0]["w_hh"].shape[1]
    L = len(params)
    assert H <= _LANE, "padded-gate layout assumes hidden_size <= 128"
    # TODO(synk): bidirectional=True path not implemented (module default is False).
    # TODO(synk): for production shapes (D=4096, H=2048, long T) drop the gate-lane
    # padding, cast MXU operands to bf16 on v6e/v7x, and stream x/out over a
    # time-chunked grid with BlockSpecs + explicit vmem_limit_bytes (mandatory on
    # v7x's 64 MiB VMEM); not needed at these whole-array-resident toy shapes.

    flat_inputs = [x.astype(jnp.float32).reshape(T * B, D)] + _prep_params(params, H)

    kernel = functools.partial(_dlstm_kernel, hidden=H, batch=B, num_layers=L)
    out_pad = pl.pallas_call(
        kernel,
        out_shape=jax.ShapeDtypeStruct((T * B, _LANE), jnp.float32),
        in_specs=[pl.BlockSpec(memory_space=pltpu.MemorySpace.VMEM)] * len(flat_inputs),
        out_specs=pl.BlockSpec(memory_space=pltpu.MemorySpace.VMEM),
    )(*flat_inputs)
    return out_pad[:, :H].reshape(T, B, H)


def init_dlstm_params(key, input_size, hidden_size, num_layers=2):
    """Deterministic init matching PyTorch nn.LSTM parameter shapes:
    weight_ih_l{k}: (4H, D_in_k), weight_hh_l{k}: (4H, H), bias_ih/bias_hh: (4H,).
    PyTorch default init is U(-1/sqrt(H), 1/sqrt(H))."""
    params = []
    bound = 1.0 / jnp.sqrt(jnp.float32(hidden_size))
    for layer in range(num_layers):
        d_in = input_size if layer == 0 else hidden_size
        key, k1, k2, k3, k4 = jax.random.split(key, 5)
        params.append(dict(
            w_ih=jax.random.uniform(k1, (4 * hidden_size, d_in), jnp.float32, -bound, bound),
            w_hh=jax.random.uniform(k2, (4 * hidden_size, hidden_size), jnp.float32, -bound, bound),
            b_ih=jax.random.uniform(k3, (4 * hidden_size,), jnp.float32, -bound, bound),
            b_hh=jax.random.uniform(k4, (4 * hidden_size,), jnp.float32, -bound, bound),
        ))
    return params


def _lstm_layer_ref(x, w_ih, w_hh, b_ih, b_hh):
    """Pure-JAX reference for one LSTM layer (PyTorch semantics)."""
    H = w_hh.shape[1]
    b = (b_ih + b_hh)[None, :]

    def step(carry, x_t):
        h, c = carry
        gates = x_t @ w_ih.T + h @ w_hh.T + b
        i_g = jax.nn.sigmoid(gates[:, :H])
        f_g = jax.nn.sigmoid(gates[:, H:2 * H])
        g_g = jnp.tanh(gates[:, 2 * H:3 * H])
        o_g = jax.nn.sigmoid(gates[:, 3 * H:])
        c = f_g * c + i_g * g_g
        h = o_g * jnp.tanh(c)
        return (h, c), h

    B = x.shape[1]
    init = (jnp.zeros((B, H), jnp.float32), jnp.zeros((B, H), jnp.float32))
    _, hs = jax.lax.scan(step, init, x)
    return hs


def dlstm_forward_ref(x, params):
    h = x
    for p in params:
        h = _lstm_layer_ref(h, p["w_ih"], p["w_hh"], p["b_ih"], p["b_hh"])
    return h


if __name__ == "__main__":
    # Small shapes consistent with the module's forward: x is (seq_len, 1, input_size).
    seq_len, batch, input_size, hidden_size, num_layers = 8, 1, 64, 32, 2

    key = jax.random.PRNGKey(0)
    key, kx = jax.random.split(key)
    x = jax.random.normal(kx, (seq_len, batch, input_size), jnp.float32)

    params = init_dlstm_params(key, input_size, hidden_size, num_layers)

    decoded = jax.block_until_ready(dlstm_forward(x, params))
    assert decoded.shape == (seq_len, batch, hidden_size)

    ref = jax.block_until_ready(dlstm_forward_ref(x, params))
    assert jnp.allclose(decoded, ref, atol=1e-4, rtol=1e-4), "mismatch vs JAX reference"

    print("KERNEL_OK")
</pallas_src>

<mosaic_0001>
module attributes {stable_mosaic.version = 11 : i64} {
  func.func @_dlstm_kernel(%arg0: memref<8x64xf32, #tpu.memory_space<vmem>>, %arg1: memref<64x512xf32, #tpu.memory_space<vmem>>, %arg2: memref<128x512xf32, #tpu.memory_space<vmem>>, %arg3: memref<1x512xf32, #tpu.memory_space<vmem>>, %arg4: memref<256x512xf32, #tpu.memory_space<vmem>>, %arg5: memref<1x512xf32, #tpu.memory_space<vmem>>, %arg6: memref<8x128xf32, #tpu.memory_space<vmem>>) attributes {dimension_semantics = [], scalar_prefetch = 0 : i64, scratch_operands = 0 : i64, tpu.core_type = #tpu.core_type<tc>} {
    %c0 = arith.constant 0 : index
    %c0_0 = arith.constant 0 : index
    %0 = vector.load %arg0[%c0, %c0_0] : memref<8x64xf32, #tpu.memory_space<vmem>>, vector<8x64xf32>
    %c0_1 = arith.constant 0 : index
    %c0_2 = arith.constant 0 : index
    %1 = vector.load %arg1[%c0_1, %c0_2] : memref<64x512xf32, #tpu.memory_space<vmem>>, vector<64x512xf32>
    %cst = arith.constant dense<0.000000e+00> : vector<8x512xf32>
    %2 = tpu.matmul %0, %1, %cst {dimension_numbers = #tpu.dot_dimension_numbers<[1], [0], [0], [1], [0, 0, 1, 1], [], []>} : vector<8x64xf32>, vector<64x512xf32>, vector<8x512xf32> -> vector<8x512xf32>
    %c0_3 = arith.constant 0 : index
    %c0_4 = arith.constant 0 : index
    %3 = vector.load %arg3[%c0_3, %c0_4] : memref<1x512xf32, #tpu.memory_space<vmem>>, vector<1x512xf32>
    %4 = vector.broadcast %3 : vector<1x512xf32> to vector<8x512xf32>
    %5 = arith.addf %2, %4 : vector<8x512xf32>
    %c0_5 = arith.constant 0 : index
    %c0_6 = arith.constant 0 : index
    %6 = vector.load %arg2[%c0_5, %c0_6] : memref<128x512xf32, #tpu.memory_space<vmem>>, vector<128x512xf32>
    %c0_7 = arith.constant 0 : index
    %c0_8 = arith.constant 0 : index
    %7 = vector.load %arg4[%c0_7, %c0_8] : memref<256x512xf32, #tpu.memory_space<vmem>>, vector<256x512xf32>
    %c0_9 = arith.constant 0 : index
    %c0_10 = arith.constant 0 : index
    %8 = vector.load %arg5[%c0_9, %c0_10] : memref<1x512xf32, #tpu.memory_space<vmem>>, vector<1x512xf32>
    %cst_11 = arith.constant 0.000000e+00 : f32
    %9 = vector.broadcast %cst_11 : f32 to vector<1x128xf32>
    %10 = vector.extract_strided_slice %5 {offsets = [0, 0], sizes = [1, 512], strides = [1, 1]} : vector<8x512xf32> to vector<1x512xf32>
    %cst_12 = arith.constant dense<0.000000e+00> : vector<1x512xf32>
    %11 = tpu.matmul %9, %6, %cst_12 {dimension_numbers = #tpu.dot_dimension_numbers<[1], [0], [0], [1], [0, 0, 1, 1], [], []>} : vector<1x128xf32>, vector<128x512xf32>, vector<1x512xf32> -> vector<1x512xf32>
    %12 = arith.addf %10, %11 : vector<1x512xf32>
    %13 = math.tanh %12 : vector<1x512xf32>
    %cst_13 = arith.constant 5.000000e-01 : f32
    %14 = vector.broadcast %cst_13 : f32 to vector<1x512xf32>
    %15 = arith.mulf %13, %14 : vector<1x512xf32>
    %cst_14 = arith.constant 5.000000e-01 : f32
    %16 = vector.broadcast %cst_14 : f32 to vector<1x512xf32>
    %17 = arith.addf %15, %16 : vector<1x512xf32>
    %18 = vector.extract_strided_slice %17 {offsets = [0, 0], sizes = [1, 128], strides = [1, 1]} : vector<1x512xf32> to vector<1x128xf32>
    %19 = vector.extract_strided_slice %17 {offsets = [0, 128], sizes = [1, 128], strides = [1, 1]} : vector<1x512xf32> to vector<1x128xf32>
    %20 = vector.extract_strided_slice %13 {offsets = [0, 256], sizes = [1, 128], strides = [1, 1]} : vector<1x512xf32> to vector<1x128xf32>
    %21 = vector.extract_strided_slice %17 {offsets = [0, 384], sizes = [1, 128], strides = [1, 1]} : vector<1x512xf32> to vector<1x128xf32>
    %22 = arith.mulf %19, %9 : vector<1x128xf32>
    %23 = arith.mulf %18, %20 : vector<1x128xf32>
    %24 = arith.addf %22, %23 : vector<1x128xf32>
    %25 = math.tanh %24 : vector<1x128xf32>
    %26 = arith.mulf %21, %25 : vector<1x128xf32>
    %27 = vector.extract_strided_slice %5 {offsets = [1, 0], sizes = [1, 512], strides = [1, 1]} : vector<8x512xf32> to vector<1x512xf32>
    %cst_15 = arith.constant dense<0.000000e+00> : vector<1x512xf32>
    %28 = tpu.matmul %26, %6, %cst_15 {dimension_numbers = #tpu.dot_dimension_numbers<[1], [0], [0], [1], [0, 0, 1, 1], [], []>} : vector<1x128xf32>, vector<128x512xf32>, vector<1x512xf32> -> vector<1x512xf32>
    %29 = arith.addf %27, %28 : vector<1x512xf32>
    %30 = math.tanh %29 : vector<1x512xf32>
    %cst_16 = arith.constant 5.000000e-01 : f32
    %31 = vector.broadcast %cst_16 : f32 to vector<1x512xf32>
    %32 = arith.mulf %30, %31 : vector<1x512xf32>
    %cst_17 = arith.constant 5.000000e-01 : f32
    %33 = vector.broadcast %cst_17 : f32 to vector<1x512xf32>
    %34 = arith.addf %32, %33 : vector<1x512xf32>
    %35 = vector.extract_strided_slice %34 {offsets = [0, 0], sizes = [1, 128], strides = [1, 1]} : vector<1x512xf32> to vector<1x128xf32>
    %36 = vector.extract_strided_slice %34 {offsets = [0, 128], sizes = [1, 128], strides = [1, 1]} : vector<1x512xf32> to vector<1x128xf32>
    %37 = vector.extract_strided_slice %30 {offsets = [0, 256], sizes = [1, 128], strides = [1, 1]} : vector<1x512xf32> to vector<1x128xf32>
    %38 = vector.extract_strided_slice %34 {offsets = [0, 384], sizes = [1, 128], strides = [1, 1]} : vector<1x512xf32> to vector<1x128xf32>
    %39 = arith.mulf %36, %24 : vector<1x128xf32>
    %40 = arith.mulf %35, %37 : vector<1x128xf32>
    %41 = arith.addf %39, %40 : vector<1x128xf32>
    %42 = math.tanh %41 : vector<1x128xf32>
    %43 = arith.mulf %38, %42 : vector<1x128xf32>
    %44 = tpu.concatenate %26, %9 in 1 : vector<1x128xf32>, vector<1x128xf32> -> vector<1x256xf32>
    %cst_18 = arith.constant dense<0.000000e+00> : vector<1x512xf32>
    %45 = tpu.matmul %44, %7, %cst_18 {dimension_numbers = #tpu.dot_dimension_numbers<[1], [0], [0], [1], [0, 0, 1, 1], [], []>} : vector<1x256xf32>, vector<256x512xf32>, vector<1x512xf32> -> vector<1x512xf32>
    %46 = arith.addf %45, %8 : vector<1x512xf32>
    %47 = math.tanh %46 : vector<1x512xf32>
    %cst_19 = arith.constant 5.000000e-01 : f32
    %48 = vector.broadcast %cst_19 : f32 to vector<1x512xf32>
    %49 = arith.mulf %47, %48 : vector<1x512xf32>
    %cst_20 = arith.constant 5.000000e-01 : f32
    %50 = vector.broadcast %cst_20 : f32 to vector<1x512xf32>
    %51 = arith.addf %49, %50 : vector<1x512xf32>
    %52 = vector.extract_strided_slice %51 {offsets = [0, 0], sizes = [1, 128], strides = [1, 1]} : vector<1x512xf32> to vector<1x128xf32>
    %53 = vector.extract_strided_slice %51 {offsets = [0, 128], sizes = [1, 128], strides = [1, 1]} : vector<1x512xf32> to vector<1x128xf32>
    %54 = vector.extract_strided_slice %47 {offsets = [0, 256], sizes = [1, 128], strides = [1, 1]} : vector<1x512xf32> to vector<1x128xf32>
    %55 = vector.extract_strided_slice %51 {offsets = [0, 384], sizes = [1, 128], strides = [1, 1]} : vector<1x512xf32> to vector<1x128xf32>
    %56 = arith.mulf %53, %9 : vector<1x128xf32>
    %57 = arith.mulf %52, %54 : vector<1x128xf32>
    %58 = arith.addf %56, %57 : vector<1x128xf32>
    %59 = math.tanh %58 : vector<1x128xf32>
    %60 = arith.mulf %55, %59 : vector<1x128xf32>
    %c0_21 = arith.constant 0 : index
    %c0_22 = arith.constant 0 : index
    %61 = vector.load %arg6[%c0_21, %c0_22] : memref<8x128xf32, #tpu.memory_space<vmem>>, vector<1x128xf32>
    tpu.vector_store %arg6[%c0_21, %c0_22], %60 {strides = array<i32>} : memref<8x128xf32, #tpu.memory_space<vmem>>, vector<1x128xf32>,
    %62 = vector.extract_strided_slice %5 {offsets = [2, 0], sizes = [1, 512], strides = [1, 1]} : vector<8x512xf32> to vector<1x512xf32>
    %cst_23 = arith.constant dense<0.000000e+00> : vector<1x512xf32>
    %63 = tpu.matmul %43, %6, %cst_23 {dimension_numbers = #tpu.dot_dimension_numbers<[1], [0], [0], [1], [0, 0, 1, 1], [], []>} : vector<1x128xf32>, vector<128x512xf32>, vector<1x512xf32> -> vector<1x512xf32>
    %64 = arith.addf %62, %63 : vector<1x512xf32>
    %65 = math.tanh %64 : vector<1x512xf32>
    %cst_24 = arith.constant 5.000000e-01 : f32
    %66 = vector.broadcast %cst_24 : f32 to vector<1x512xf32>
    %67 = arith.mulf %65, %66 : vector<1x512xf32>
    %cst_25 = arith.constant 5.000000e-01 : f32
    %68 = vector.broadcast %cst_25 : f32 to vector<1x512xf32>
    %69 = arith.addf %67, %68 : vector<1x512xf32>
    %70 = vector.extract_strided_slice %69 {offsets = [0, 0], sizes = [1, 128], strides = [1, 1]} : vector<1x512xf32> to vector<1x128xf32>
    %71 = vector.extract_strided_slice %69 {offsets = [0, 128], sizes = [1, 128], strides = [1, 1]} : vector<1x512xf32> to vector<1x128xf32>
    %72 = vector.extract_strided_slice %65 {offsets = [0, 256], sizes = [1, 128], strides = [1, 1]} : vector<1x512xf32> to vector<1x128xf32>
    %73 = vector.extract_strided_slice %69 {offsets = [0, 384], sizes = [1, 128], strides = [1, 1]} : vector<1x512xf32> to vector<1x128xf32>
    %74 = arith.mulf %71, %41 : vector<1x128xf32>
    %75 = arith.mulf %70, %72 : vector<1x128xf32>
    %76 = arith.addf %74, %75 : vector<1x128xf32>
    %77 = math.tanh %76 : vector<1x128xf32>
    %78 = arith.mulf %73, %77 : vector<1x128xf32>
    %79 = tpu.concatenate %43, %60 in 1 : vector<1x128xf32>, vector<1x128xf32> -> vector<1x256xf32>
    %cst_26 = arith.constant dense<0.000000e+00> : vector<1x512xf32>
    %80 = tpu.matmul %79, %7, %cst_26 {dimension_numbers = #tpu.dot_dimension_numbers<[1], [0], [0], [1], [0, 0, 1, 1], [], []>} : vector<1x256xf32>, vector<256x512xf32>, vector<1x512xf32> -> vector<1x512xf32>
    %81 = arith.addf %80, %8 : vector<1x512xf32>
    %82 = math.tanh %81 : vector<1x512xf32>
    %cst_27 = arith.constant 5.000000e-01 : f32
    %83 = vector.broadcast %cst_27 : f32 to vector<1x512xf32>
    %84 = arith.mulf %82, %83 : vector<1x512xf32>
    %cst_28 = arith.constant 5.000000e-01 : f32
    %85 = vector.broadcast %cst_28 : f32 to vector<1x512xf32>
    %86 = arith.addf %84, %85 : vector<1x512xf32>
    %87 = vector.extract_strided_slice %86 {offsets = [0, 0], sizes = [1, 128], strides = [1, 1]} : vector<1x512xf32> to vector<1x128xf32>
    %88 = vector.extract_strided_slice %86 {offsets = [0, 128], sizes = [1, 128], strides = [1, 1]} : vector<1x512xf32> to vector<1x128xf32>
    %89 = vector.extract_strided_slice %82 {offsets = [0, 256], sizes = [1, 128], strides = [1, 1]} : vector<1x512xf32> to vector<1x128xf32>
    %90 = vector.extract_strided_slice %86 {offsets = [0, 384], sizes = [1, 128], strides = [1, 1]} : vector<1x512xf32> to vector<1x128xf32>
    %91 = arith.mulf %88, %58 : vector<1x128xf32>
    %92 = arith.mulf %87, %89 : vector<1x128xf32>
    %93 = arith.addf %91, %92 : vector<1x128xf32>
    %94 = math.tanh %93 : vector<1x128xf32>
    %95 = arith.mulf %90, %94 : vector<1x128xf32>
    %c1 = arith.constant 1 : index
    %c0_29 = arith.constant 0 : index
    %96 = vector.load %arg6[%c1, %c0_29] : memref<8x128xf32, #tpu.memory_space<vmem>>, vector<1x128xf32>
    tpu.vector_store %arg6[%c1, %c0_29], %95 {strides = array<i32>} : memref<8x128xf32, #tpu.memory_space<vmem>>, vector<1x128xf32>,
    %97 = vector.extract_strided_slice %5 {offsets = [3, 0], sizes = [1, 512], strides = [1, 1]} : vector<8x512xf32> to vector<1x512xf32>
    %cst_30 = arith.constant dense<0.000000e+00> : vector<1x512xf32>
    %98 = tpu.matmul %78, %6, %cst_30 {dimension_numbers = #tpu.dot_dimension_numbers<[1], [0], [0], [1], [0, 0, 1, 1], [], []>} : vector<1x128xf32>, vector<128x512xf32>, vector<1x512xf32> -> vector<1x512xf32>
    %99 = arith.addf %97, %98 : vector<1x512xf32>
    %100 = math.tanh %99 : vector<1x512xf32>
    %cst_31 = arith.constant 5.000000e-01 : f32
    %101 = vector.broadcast %cst_31 : f32 to vector<1x512xf32>
    %102 = arith.mulf %100, %101 : vector<1x512xf32>
    %cst_32 = arith.constant 5.000000e-01 : f32
    %103 = vector.broadcast %cst_32 : f32 to vector<1x512xf32>
    %104 = arith.addf %102, %103 : vector<1x512xf32>
    %105 = vector.extract_strided_slice %104 {offsets = [0, 0], sizes = [1, 128], strides = [1, 1]} : vector<1x512xf32> to vector<1x128xf32>
    %106 = vector.extract_strided_slice %104 {offsets = [0, 128], sizes = [1, 128], strides = [1, 1]} : vector<1x512xf32> to vector<1x128xf32>
    %107 = vector.extract_strided_slice %100 {offsets = [0, 256], sizes = [1, 128], strides = [1, 1]} : vector<1x512xf32> to vector<1x128xf32>
    %108 = vector.extract_strided_slice %104 {offsets = [0, 384], sizes = [1, 128], strides = [1, 1]} : vector<1x512xf32> to vector<1x128xf32>
    %109 = arith.mulf %106, %76 : vector<1x128xf32>
    %110 = arith.mulf %105, %107 : vector<1x128xf32>
    %111 = arith.addf %109, %110 : vector<1x128xf32>
    %112 = math.tanh %111 : vector<1x128xf32>
    %113 = arith.mulf %108, %112 : vector<1x128xf32>
    %114 = tpu.concatenate %78, %95 in 1 : vector<1x128xf32>, vector<1x128xf32> -> vector<1x256xf32>
    %cst_33 = arith.constant dense<0.000000e+00> : vector<1x512xf32>
    %115 = tpu.matmul %114, %7, %cst_33 {dimension_numbers = #tpu.dot_dimension_numbers<[1], [0], [0], [1], [0, 0, 1, 1], [], []>} : vector<1x256xf32>, vector<256x512xf32>, vector<1x512xf32> -> vector<1x512xf32>
    %116 = arith.addf %115, %8 : vector<1x512xf32>
    %117 = math.tanh %116 : vector<1x512xf32>
    %cst_34 = arith.constant 5.000000e-01 : f32
    %118 = vector.broadcast %cst_34 : f32 to vector<1x512xf32>
    %119 = arith.mulf %117, %118 : vector<1x512xf32>
    %cst_35 = arith.constant 5.000000e-01 : f32
    %120 = vector.broadcast %cst_35 : f32 to vector<1x512xf32>
    %121 = arith.addf %119, %120 : vector<1x512xf32>
    %122 = vector.extract_strided_slice %121 {offsets = [0, 0], sizes = [1, 128], strides = [1, 1]} : vector<1x512xf32> to vector<1x128xf32>
    %123 = vector.extract_strided_slice %121 {offsets = [0, 128], sizes = [1, 128], strides = [1, 1]} : vector<1x512xf32> to vector<1x128xf32>
    %124 = vector.extract_strided_slice %117 {offsets = [0, 256], sizes = [1, 128], strides = [1, 1]} : vector<1x512xf32> to vector<1x128xf32>
    %125 = vector.extract_strided_slice %121 {offsets = [0, 384], sizes = [1, 128], strides = [1, 1]} : vector<1x512xf32> to vector<1x128xf32>
    %126 = arith.mulf %123, %93 : vector<1x128xf32>
    %127 = arith.mulf %122, %124 : vector<1x128xf32>
    %128 = arith.addf %126, %127 : vector<1x128xf32>
    %129 = math.tanh %128 : vector<1x128xf32>
    %130 = arith.mulf %125, %129 : vector<1x128xf32>
    %c2 = arith.constant 2 : index
    %c0_36 = arith.constant 0 : index
    %131 = vector.load %arg6[%c2, %c0_36] : memref<8x128xf32, #tpu.memory_space<vmem>>, vector<1x128xf32>
    tpu.vector_store %arg6[%c2, %c0_36], %130 {strides = array<i32>} : memref<8x128xf32, #tpu.memory_space<vmem>>, vector<1x128xf32>,
    %132 = vector.extract_strided_slice %5 {offsets = [4, 0], sizes = [1, 512], strides = [1, 1]} : vector<8x512xf32> to vector<1x512xf32>
    %cst_37 = arith.constant dense<0.000000e+00> : vector<1x512xf32>
    %133 = tpu.matmul %113, %6, %cst_37 {dimension_numbers = #tpu.dot_dimension_numbers<[1], [0], [0], [1], [0, 0, 1, 1], [], []>} : vector<1x128xf32>, vector<128x512xf32>, vector<1x512xf32> -> vector<1x512xf32>
    %134 = arith.addf %132, %133 : vector<1x512xf32>
    %135 = math.tanh %134 : vector<1x512xf32>
    %cst_38 = arith.constant 5.000000e-01 : f32
    %136 = vector.broadcast %cst_38 : f32 to vector<1x512xf32>
    %137 = arith.mulf %135, %136 : vector<1x512xf32>
    %cst_39 = arith.constant 5.000000e-01 : f32
    %138 = vector.broadcast %cst_39 : f32 to vector<1x512xf32>
    %139 = arith.addf %137, %138 : vector<1x512xf32>
    %140 = vector.extract_strided_slice %139 {offsets = [0, 0], sizes = [1, 128], strides = [1, 1]} : vector<1x512xf32> to vector<1x128xf32>
    %141 = vector.extract_strided_slice %139 {offsets = [0, 128], sizes = [1, 128], strides = [1, 1]} : vector<1x512xf32> to vector<1x128xf32>
    %142 = vector.extract_strided_slice %135 {offsets = [0, 256], sizes = [1, 128], strides = [1, 1]} : vector<1x512xf32> to vector<1x128xf32>
    %143 = vector.extract_strided_slice %139 {offsets = [0, 384], sizes = [1, 128], strides = [1, 1]} : vector<1x512xf32> to vector<1x128xf32>
    %144 = arith.mulf %141, %111 : vector<1x128xf32>
    %145 = arith.mulf %140, %142 : vector<1x128xf32>
    %146 = arith.addf %144, %145 : vector<1x128xf32>
    %147 = math.tanh %146 : vector<1x128xf32>
    %148 = arith.mulf %143, %147 : vector<1x128xf32>
    %149 = tpu.concatenate %113, %130 in 1 : vector<1x128xf32>, vector<1x128xf32> -> vector<1x256xf32>
    %cst_40 = arith.constant dense<0.000000e+00> : vector<1x512xf32>
    %150 = tpu.matmul %149, %7, %cst_40 {dimension_numbers = #tpu.dot_dimension_numbers<[1], [0], [0], [1], [0, 0, 1, 1], [], []>} : vector<1x256xf32>, vector<256x512xf32>, vector<1x512xf32> -> vector<1x512xf32>
    %151 = arith.addf %150, %8 : vector<1x512xf32>
    %152 = math.tanh %151 : vector<1x512xf32>
    %cst_41 = arith.constant 5.000000e-01 : f32
    %153 = vector.broadcast %cst_41 : f32 to vector<1x512xf32>
    %154 = arith.mulf %152, %153 : vector<1x512xf32>
    %cst_42 = arith.constant 5.000000e-01 : f32
    %155 = vector.broadcast %cst_42 : f32 to vector<1x512xf32>
    %156 = arith.addf %154, %155 : vector<1x512xf32>
    %157 = vector.extract_strided_slice %156 {offsets = [0, 0], sizes = [1, 128], strides = [1, 1]} : vector<1x512xf32> to vector<1x128xf32>
    %158 = vector.extract_strided_slice %156 {offsets = [0, 128], sizes = [1, 128], strides = [1, 1]} : vector<1x512xf32> to vector<1x128xf32>
    %159 = vector.extract_strided_slice %152 {offsets = [0, 256], sizes = [1, 128], strides = [1, 1]} : vector<1x512xf32> to vector<1x128xf32>
    %160 = vector.extract_strided_slice %156 {offsets = [0, 384], sizes = [1, 128], strides = [1, 1]} : vector<1x512xf32> to vector<1x128xf32>
    %161 = arith.mulf %158, %128 : vector<1x128xf32>
    %162 = arith.mulf %157, %159 : vector<1x128xf32>
    %163 = arith.addf %161, %162 : vector<1x128xf32>
    %164 = math.tanh %163 : vector<1x128xf32>
    %165 = arith.mulf %160, %164 : vector<1x128xf32>
    %c3 = arith.constant 3 : index
    %c0_43 = arith.constant 0 : index
    %166 = vector.load %arg6[%c3, %c0_43] : memref<8x128xf32, #tpu.memory_space<vmem>>, vector<1x128xf32>
    tpu.vector_store %arg6[%c3, %c0_43], %165 {strides = array<i32>} : memref<8x128xf32, #tpu.memory_space<vmem>>, vector<1x128xf32>,
    %167 = vector.extract_strided_slice %5 {offsets = [5, 0], sizes = [1, 512], strides = [1, 1]} : vector<8x512xf32> to vector<1x512xf32>
    %cst_44 = arith.constant dense<0.000000e+00> : vector<1x512xf32>
    %168 = tpu.matmul %148, %6, %cst_44 {dimension_numbers = #tpu.dot_dimension_numbers<[1], [0], [0], [1], [0, 0, 1, 1], [], []>} : vector<1x128xf32>, vector<128x512xf32>, vector<1x512xf32> -> vector<1x512xf32>
    %169 = arith.addf %167, %168 : vector<1x512xf32>
    %170 = math.tanh %169 : vector<1x512xf32>
    %cst_45 = arith.constant 5.000000e-01 : f32
    %171 = vector.broadcast %cst_45 : f32 to vector<1x512xf32>
    %172 = arith.mulf %170, %171 : vector<1x512xf32>
    %cst_46 = arith.constant 5.000000e-01 : f32
    %173 = vector.broadcast %cst_46 : f32 to vector<1x512xf32>
    %174 = arith.addf %172, %173 : vector<1x512xf32>
    %175 = vector.extract_strided_slice %174 {offsets = [0, 0], sizes = [1, 128], strides = [1, 1]} : vector<1x512xf32> to vector<1x128xf32>
    %176 = vector.extract_strided_slice %174 {offsets = [0, 128], sizes = [1, 128], strides = [1, 1]} : vector<1x512xf32> to vector<1x128xf32>
    %177 = vector.extract_strided_slice %170 {offsets = [0, 256], sizes = [1, 128], strides = [1, 1]} : vector<1x512xf32> to vector<1x128xf32>
    %178 = vector.extract_strided_slice %174 {offsets = [0, 384], sizes = [1, 128], strides = [1, 1]} : vector<1x512xf32> to vector<1x128xf32>
    %179 = arith.mulf %176, %146 : vector<1x128xf32>
    %180 = arith.mulf %175, %177 : vector<1x128xf32>
    %181 = arith.addf %179, %180 : vector<1x128xf32>
    %182 = math.tanh %181 : vector<1x128xf32>
    %183 = arith.mulf %178, %182 : vector<1x128xf32>
    %184 = tpu.concatenate %148, %165 in 1 : vector<1x128xf32>, vector<1x128xf32> -> vector<1x256xf32>
    %cst_47 = arith.constant dense<0.000000e+00> : vector<1x512xf32>
    %185 = tpu.matmul %184, %7, %cst_47 {dimension_numbers = #tpu.dot_dimension_numbers<[1], [0], [0], [1], [0, 0, 1, 1], [], []>} : vector<1x256xf32>, vector<256x512xf32>, vector<1x512xf32> -> vector<1x512xf32>
    %186 = arith.addf %185, %8 : vector<1x512xf32>
    %187 = math.tanh %186 : vector<1x512xf32>
    %cst_48 = arith.constant 5.000000e-01 : f32
    %188 = vector.broadcast %cst_48 : f32 to vector<1x512xf32>
    %189 = arith.mulf %187, %188 : vector<1x512xf32>
    %cst_49 = arith.constant 5.000000e-01 : f32
    %190 = vector.broadcast %cst_49 : f32 to vector<1x512xf32>
    %191 = arith.addf %189, %190 : vector<1x512xf32>
    %192 = vector.extract_strided_slice %191 {offsets = [0, 0], sizes = [1, 128], strides = [1, 1]} : vector<1x512xf32> to vector<1x128xf32>
    %193 = vector.extract_strided_slice %191 {offsets = [0, 128], sizes = [1, 128], strides = [1, 1]} : vector<1x512xf32> to vector<1x128xf32>
    %194 = vector.extract_strided_slice %187 {offsets = [0, 256], sizes = [1, 128], strides = [1, 1]} : vector<1x512xf32> to vector<1x128xf32>
    %195 = vector.extract_strided_slice %191 {offsets = [0, 384], sizes = [1, 128], strides = [1, 1]} : vector<1x512xf32> to vector<1x128xf32>
    %196 = arith.mulf %193, %163 : vector<1x128xf32>
    %197 = arith.mulf %192, %194 : vector<1x128xf32>
    %198 = arith.addf %196, %197 : vector<1x128xf32>
    %199 = math.tanh %198 : vector<1x128xf32>
    %200 = arith.mulf %195, %199 : vector<1x128xf32>
    %c4 = arith.constant 4 : index
    %c0_50 = arith.constant 0 : index
    %201 = vector.load %arg6[%c4, %c0_50] : memref<8x128xf32, #tpu.memory_space<vmem>>, vector<1x128xf32>
    tpu.vector_store %arg6[%c4, %c0_50], %200 {strides = array<i32>} : memref<8x128xf32, #tpu.memory_space<vmem>>, vector<1x128xf32>,
    %202 = vector.extract_strided_slice %5 {offsets = [6, 0], sizes = [1, 512], strides = [1, 1]} : vector<8x512xf32> to vector<1x512xf32>
    %cst_51 = arith.constant dense<0.000000e+00> : vector<1x512xf32>
    %203 = tpu.matmul %183, %6, %cst_51 {dimension_numbers = #tpu.dot_dimension_numbers<[1], [0], [0], [1], [0, 0, 1, 1], [], []>} : vector<1x128xf32>, vector<128x512xf32>, vector<1x512xf32> -> vector<1x512xf32>
    %204 = arith.addf %202, %203 : vector<1x512xf32>
    %205 = math.tanh %204 : vector<1x512xf32>
    %cst_52 = arith.constant 5.000000e-01 : f32
    %206 = vector.broadcast %cst_52 : f32 to vector<1x512xf32>
    %207 = arith.mulf %205, %206 : vector<1x512xf32>
    %cst_53 = arith.constant 5.000000e-01 : f32
    %208 = vector.broadcast %cst_53 : f32 to vector<1x512xf32>
    %209 = arith.addf %207, %208 : vector<1x512xf32>
    %210 = vector.extract_strided_slice %209 {offsets = [0, 0], sizes = [1, 128], strides = [1, 1]} : vector<1x512xf32> to vector<1x128xf32>
    %211 = vector.extract_strided_slice %209 {offsets = [0, 128], sizes = [1, 128], strides = [1, 1]} : vector<1x512xf32> to vector<1x128xf32>
    %212 = vector.extract_strided_slice %205 {offsets = [0, 256], sizes = [1, 128], strides = [1, 1]} : vector<1x512xf32> to vector<1x128xf32>
    %213 = vector.extract_strided_slice %209 {offsets = [0, 384], sizes = [1, 128], strides = [1, 1]} : vector<1x512xf32> to vector<1x128xf32>
    %214 = arith.mulf %211, %181 : vector<1x128xf32>
    %215 = arith.mulf %210, %212 : vector<1x128xf32>
    %216 = arith.addf %214, %215 : vector<1x128xf32>
    %217 = math.tanh %216 : vector<1x128xf32>
    %218 = arith.mulf %213, %217 : vector<1x128xf32>
    %219 = tpu.concatenate %183, %200 in 1 : vector<1x128xf32>, vector<1x128xf32> -> vector<1x256xf32>
    %cst_54 = arith.constant dense<0.000000e+00> : vector<1x512xf32>
    %220 = tpu.matmul %219, %7, %cst_54 {dimension_numbers = #tpu.dot_dimension_numbers<[1], [0], [0], [1], [0, 0, 1, 1], [], []>} : vector<1x256xf32>, vector<256x512xf32>, vector<1x512xf32> -> vector<1x512xf32>
    %221 = arith.addf %220, %8 : vector<1x512xf32>
    %222 = math.tanh %221 : vector<1x512xf32>
    %cst_55 = arith.constant 5.000000e-01 : f32
    %223 = vector.broadcast %cst_55 : f32 to vector<1x512xf32>
    %224 = arith.mulf %222, %223 : vector<1x512xf32>
    %cst_56 = arith.constant 5.000000e-01 : f32
    %225 = vector.broadcast %cst_56 : f32 to vector<1x512xf32>
    %226 = arith.addf %224, %225 : vector<1x512xf32>
    %227 = vector.extract_strided_slice %226 {offsets = [0, 0], sizes = [1, 128], strides = [1, 1]} : vector<1x512xf32> to vector<1x128xf32>
    %228 = vector.extract_strided_slice %226 {offsets = [0, 128], sizes = [1, 128], strides = [1, 1]} : vector<1x512xf32> to vector<1x128xf32>
    %229 = vector.extract_strided_slice %222 {offsets = [0, 256], sizes = [1, 128], strides = [1, 1]} : vector<1x512xf32> to vector<1x128xf32>
    %230 = vector.extract_strided_slice %226 {offsets = [0, 384], sizes = [1, 128], strides = [1, 1]} : vector<1x512xf32> to vector<1x128xf32>
    %231 = arith.mulf %228, %198 : vector<1x128xf32>
    %232 = arith.mulf %227, %229 : vector<1x128xf32>
    %233 = arith.addf %231, %232 : vector<1x128xf32>
    %234 = math.tanh %233 : vector<1x128xf32>
    %235 = arith.mulf %230, %234 : vector<1x128xf32>
    %c5 = arith.constant 5 : index
    %c0_57 = arith.constant 0 : index
    %236 = vector.load %arg6[%c5, %c0_57] : memref<8x128xf32, #tpu.memory_space<vmem>>, vector<1x128xf32>
    tpu.vector_store %arg6[%c5, %c0_57], %235 {strides = array<i32>} : memref<8x128xf32, #tpu.memory_space<vmem>>, vector<1x128xf32>,
    %237 = vector.extract_strided_slice %5 {offsets = [7, 0], sizes = [1, 512], strides = [1, 1]} : vector<8x512xf32> to vector<1x512xf32>
    %cst_58 = arith.constant dense<0.000000e+00> : vector<1x512xf32>
    %238 = tpu.matmul %218, %6, %cst_58 {dimension_numbers = #tpu.dot_dimension_numbers<[1], [0], [0], [1], [0, 0, 1, 1], [], []>} : vector<1x128xf32>, vector<128x512xf32>, vector<1x512xf32> -> vector<1x512xf32>
    %239 = arith.addf %237, %238 : vector<1x512xf32>
    %240 = math.tanh %239 : vector<1x512xf32>
    %cst_59 = arith.constant 5.000000e-01 : f32
    %241 = vector.broadcast %cst_59 : f32 to vector<1x512xf32>
    %242 = arith.mulf %240, %241 : vector<1x512xf32>
    %cst_60 = arith.constant 5.000000e-01 : f32
    %243 = vector.broadcast %cst_60 : f32 to vector<1x512xf32>
    %244 = arith.addf %242, %243 : vector<1x512xf32>
    %245 = vector.extract_strided_slice %244 {offsets = [0, 0], sizes = [1, 128], strides = [1, 1]} : vector<1x512xf32> to vector<1x128xf32>
    %246 = vector.extract_strided_slice %244 {offsets = [0, 128], sizes = [1, 128], strides = [1, 1]} : vector<1x512xf32> to vector<1x128xf32>
    %247 = vector.extract_strided_slice %240 {offsets = [0, 256], sizes = [1, 128], strides = [1, 1]} : vector<1x512xf32> to vector<1x128xf32>
    %248 = vector.extract_strided_slice %244 {offsets = [0, 384], sizes = [1, 128], strides = [1, 1]} : vector<1x512xf32> to vector<1x128xf32>
    %249 = arith.mulf %246, %216 : vector<1x128xf32>
    %250 = arith.mulf %245, %247 : vector<1x128xf32>
    %251 = arith.addf %249, %250 : vector<1x128xf32>
    %252 = math.tanh %251 : vector<1x128xf32>
    %253 = arith.mulf %248, %252 : vector<1x128xf32>
    %254 = tpu.concatenate %218, %235 in 1 : vector<1x128xf32>, vector<1x128xf32> -> vector<1x256xf32>
    %cst_61 = arith.constant dense<0.000000e+00> : vector<1x512xf32>
    %255 = tpu.matmul %254, %7, %cst_61 {dimension_numbers = #tpu.dot_dimension_numbers<[1], [0], [0], [1], [0, 0, 1, 1], [], []>} : vector<1x256xf32>, vector<256x512xf32>, vector<1x512xf32> -> vector<1x512xf32>
    %256 = arith.addf %255, %8 : vector<1x512xf32>
    %257 = math.tanh %256 : vector<1x512xf32>
    %cst_62 = arith.constant 5.000000e-01 : f32
    %258 = vector.broadcast %cst_62 : f32 to vector<1x512xf32>
    %259 = arith.mulf %257, %258 : vector<1x512xf32>
    %cst_63 = arith.constant 5.000000e-01 : f32
    %260 = vector.broadcast %cst_63 : f32 to vector<1x512xf32>
    %261 = arith.addf %259, %260 : vector<1x512xf32>
    %262 = vector.extract_strided_slice %261 {offsets = [0, 0], sizes = [1, 128], strides = [1, 1]} : vector<1x512xf32> to vector<1x128xf32>
    %263 = vector.extract_strided_slice %261 {offsets = [0, 128], sizes = [1, 128], strides = [1, 1]} : vector<1x512xf32> to vector<1x128xf32>
    %264 = vector.extract_strided_slice %257 {offsets = [0, 256], sizes = [1, 128], strides = [1, 1]} : vector<1x512xf32> to vector<1x128xf32>
    %265 = vector.extract_strided_slice %261 {offsets = [0, 384], sizes = [1, 128], strides = [1, 1]} : vector<1x512xf32> to vector<1x128xf32>
    %266 = arith.mulf %263, %233 : vector<1x128xf32>
    %267 = arith.mulf %262, %264 : vector<1x128xf32>
    %268 = arith.addf %266, %267 : vector<1x128xf32>
    %269 = math.tanh %268 : vector<1x128xf32>
    %270 = arith.mulf %265, %269 : vector<1x128xf32>
    %c6 = arith.constant 6 : index
    %c0_64 = arith.constant 0 : index
    %271 = vector.load %arg6[%c6, %c0_64] : memref<8x128xf32, #tpu.memory_space<vmem>>, vector<1x128xf32>
    tpu.vector_store %arg6[%c6, %c0_64], %270 {strides = array<i32>} : memref<8x128xf32, #tpu.memory_space<vmem>>, vector<1x128xf32>,
    %272 = tpu.concatenate %253, %270 in 1 : vector<1x128xf32>, vector<1x128xf32> -> vector<1x256xf32>
    %cst_65 = arith.constant dense<0.000000e+00> : vector<1x512xf32>
    %273 = tpu.matmul %272, %7, %cst_65 {dimension_numbers = #tpu.dot_dimension_numbers<[1], [0], [0], [1], [0, 0, 1, 1], [], []>} : vector<1x256xf32>, vector<256x512xf32>, vector<1x512xf32> -> vector<1x512xf32>
    %274 = arith.addf %273, %8 : vector<1x512xf32>
    %275 = math.tanh %274 : vector<1x512xf32>
    %cst_66 = arith.constant 5.000000e-01 : f32
    %276 = vector.broadcast %cst_66 : f32 to vector<1x512xf32>
    %277 = arith.mulf %275, %276 : vector<1x512xf32>
    %cst_67 = arith.constant 5.000000e-01 : f32
    %278 = vector.broadcast %cst_67 : f32 to vector<1x512xf32>
    %279 = arith.addf %277, %278 : vector<1x512xf32>
    %280 = vector.extract_strided_slice %279 {offsets = [0, 0], sizes = [1, 128], strides = [1, 1]} : vector<1x512xf32> to vector<1x128xf32>
    %281 = vector.extract_strided_slice %279 {offsets = [0, 128], sizes = [1, 128], strides = [1, 1]} : vector<1x512xf32> to vector<1x128xf32>
    %282 = vector.extract_strided_slice %275 {offsets = [0, 256], sizes = [1, 128], strides = [1, 1]} : vector<1x512xf32> to vector<1x128xf32>
    %283 = vector.extract_strided_slice %279 {offsets = [0, 384], sizes = [1, 128], strides = [1, 1]} : vector<1x512xf32> to vector<1x128xf32>
    %284 = arith.mulf %281, %268 : vector<1x128xf32>
    %285 = arith.mulf %280, %282 : vector<1x128xf32>
    %286 = arith.addf %284, %285 : vector<1x128xf32>
    %287 = math.tanh %286 : vector<1x128xf32>
    %288 = arith.mulf %283, %287 : vector<1x128xf32>
    %c7 = arith.constant 7 : index
    %c0_68 = arith.constant 0 : index
    %289 = vector.load %arg6[%c7, %c0_68] : memref<8x128xf32, #tpu.memory_space<vmem>>, vector<1x128xf32>
    tpu.vector_store %arg6[%c7, %c0_68], %288 {strides = array<i32>} : memref<8x128xf32, #tpu.memory_space<vmem>>, vector<1x128xf32>,
    return
  }
}

</mosaic_0001>

<llo_original>
// kernel: tpu_custom_call.1
$region0: #{tpu_custom_call.1}
  #allocation0 [shape = 'u32[]', space=smem, size = 0x4, offset = 0x4, fixed_abs, tag = 'smem constant byte address 0x4 - core index']
  #allocation1 [shape = 'u32[144,128]{1,0:T(1,128)}', space=vmem, size = 0x12000, scoped, tag = 'internal scratch']
  %s0 = inlined_call_operand.hbm [shape: f32[8,64], index: 0, kind: input, shape index: {}]
  %s1 = inlined_call_operand.hbm [shape: f32[64,512], index: 1, kind: input, shape index: {}]
  %s2 = inlined_call_operand.hbm [shape: f32[128,512], index: 2, kind: input, shape index: {}]
  %s3 = inlined_call_operand.vmem [shape: f32[1,512], index: 3, kind: input, shape index: {}]
  %s4 = inlined_call_operand.hbm [shape: f32[256,512], index: 4, kind: input, shape index: {}]
  %s5 = inlined_call_operand.vmem [shape: f32[1,512], index: 5, kind: input, shape index: {}]
  %s6 = inlined_call_operand.hbm [shape: f32[8,128], index: 6, kind: output, shape index: {}]
  %s7 = sld [smem:[#allocation0]]
  $region50: #{tpu_custom_call.1} parent=0
    _
  %s9 = ssub.s32 1, %s7
  %s10 = scalar_select 0, %s9, %s7
  $region1: #{tpu_custom_call.1} parent=0
    #allocation2 [shape = 'u8[4096]{0}', space=vmem, size = 0x1000, scoped, tag = 'input window, operand 0, single buffered']
    #allocation3 [shape = 's32[1]{0}', space=sflag, size = 0x4, scoped, tag = 'scoped memory for tpu_custom_call.1']
    #allocation4 [shape = 's32[1]{0}', space=sflag, size = 0x4, scoped, tag = 'scoped memory for tpu_custom_call.1']
    #allocation5 [shape = 'u8[131072]{0}', space=vmem, size = 0x20000, scoped, tag = 'input window, operand 1, single buffered']
    #allocation6 [shape = 's32[1]{0}', space=sflag, size = 0x4, scoped, tag = 'scoped memory for tpu_custom_call.1']
    #allocation7 [shape = 'u8[262144]{0}', space=vmem, size = 0x40000, scoped, tag = 'input window, operand 2, single buffered']
    #allocation8 [shape = 'u8[524288]{0}', space=vmem, size = 0x80000, scoped, tag = 'input window, operand 4, single buffered']
    #allocation9 [shape = 's32[1]{0}', space=sflag, size = 0x4, scoped, tag = 'scoped memory for tpu_custom_call.1']
    #allocation10 [shape = 'u8[4096]{0}', space=vmem, size = 0x1000, scoped, tag = 'output window, operand 0, single buffered']
    %11 = vsyncpa [#allocation3], 0
    %12 = vsyncpa [#allocation6], 0
    %13 = vsyncpa [#allocation9], 0
    %14 = vsyncpa [#allocation4], 0
    // Predicated region
    $region2: #{tpu_custom_call.1} parent=1 // pred_check
      _
    $region3: #{tpu_custom_call.1} parent=1 // pred_check_branch
      %16 = sbr.rel (0) target = $region5
    $region4: #{tpu_custom_call.1} parent=1 // pred_region
      %s18 = ssub.s32 128, 128
      %19 = vsyncadd [#allocation3], %s18
      %s21 = sshll.u32 [#allocation2], 4
      %s22 = int_to_ptr.vmem [resolvable:$true] %s21
      %24 = dma.hbm_to_vmem [thread:$0]  %s0, 128, %s22, [#allocation3]
    $region5: #{tpu_custom_call.1} parent=1 // pred_fallthru
      _
    // Predicated region
    $region6: #{tpu_custom_call.1} parent=1 // pred_check
      _
    $region7: #{tpu_custom_call.1} parent=1 // pred_check_branch
      %26 = sbr.rel (0) target = $region9
    $region8: #{tpu_custom_call.1} parent=1 // pred_region
      %s28 = ssub.s32 4096, 4096
      %29 = vsyncadd [#allocation6], %s28
      %s30 = sshll.u32 [#allocation5], 4
      %s31 = int_to_ptr.vmem [resolvable:$true] %s30
      %36 = dma.hbm_to_vmem [thread:$0]  %s1, 4096, %s31, [#allocation6], 512, 512, 32
    $region9: #{tpu_custom_call.1} parent=1 // pred_fallthru
      _
    // Predicated region
    $region10: #{tpu_custom_call.1} parent=1 // pred_check
      _
    $region11: #{tpu_custom_call.1} parent=1 // pred_check_branch
      %38 = sbr.rel (0) target = $region13
    $region12: #{tpu_custom_call.1} parent=1 // pred_region
      %s40 = ssub.s32 8192, 8192
      %41 = vsyncadd [#allocation6], %s40
      %s42 = sshll.u32 [#allocation7], 4
      %s43 = int_to_ptr.vmem [resolvable:$true] %s42
      %48 = dma.hbm_to_vmem [thread:$0]  %s2, 8192, %s43, [#allocation6], 512, 512, 32
    $region13: #{tpu_custom_call.1} parent=1 // pred_fallthru
      _
    // Predicated region
    $region14: #{tpu_custom_call.1} parent=1 // pred_check
      _
    $region15: #{tpu_custom_call.1} parent=1 // pred_check_branch
      %50 = sbr.rel (0) target = $region17
    $region16: #{tpu_custom_call.1} parent=1 // pred_region
      _
    $region17: #{tpu_custom_call.1} parent=1 // pred_fallthru
      _
    // Predicated region
    $region18: #{tpu_custom_call.1} parent=1 // pred_check
      _
    $region19: #{tpu_custom_call.1} parent=1 // pred_check_branch
      %52 = sbr.rel (0) target = $region21
    $region20: #{tpu_custom_call.1} parent=1 // pred_region
      %s54 = ssub.s32 16384, 16384
      %55 = vsyncadd [#allocation9], %s54
      %s56 = sshll.u32 [#allocation8], 4
      %s57 = int_to_ptr.vmem [resolvable:$true] %s56
      %62 = dma.hbm_to_vmem [thread:$0]  %s4, 16384, %s57, [#allocation9], 512, 512, 32
    $region21: #{tpu_custom_call.1} parent=1 // pred_fallthru
      _
    // Predicated region
    $region22: #{tpu_custom_call.1} parent=1 // pred_check
      _
    $region23: #{tpu_custom_call.1} parent=1 // pred_check_branch
      %64 = sbr.rel (0) target = $region25
    $region24: #{tpu_custom_call.1} parent=1 // pred_region
      _
    $region25: #{tpu_custom_call.1} parent=1 // pred_fallthru
      _
    // Predicated region
    $region26: #{tpu_custom_call.1} parent=1 // pred_check
      _
    $region27: #{tpu_custom_call.1} parent=1 // pred_check_branch
      %66 = sbr.rel (0) target = $region29
    $region28: #{tpu_custom_call.1} parent=1 // pred_region
      %67 = dma.done [#allocation3], 128
    $region29: #{tpu_custom_call.1} parent=1 // pred_fallthru
      _
    // Predicated region
    $region30: #{tpu_custom_call.1} parent=1 // pred_check
      _
    $region31: #{tpu_custom_call.1} parent=1 // pred_check_branch
      %69 = sbr.rel (0) target = $region33
    $region32: #{tpu_custom_call.1} parent=1 // pred_region
      %70 = dma.done [#allocation6], 4096
    $region33: #{tpu_custom_call.1} parent=1 // pred_fallthru
      _
    // Predicated region
    $region34: #{tpu_custom_call.1} parent=1 // pred_check
      _
    $region35: #{tpu_custom_call.1} parent=1 // pred_check_branch
      %72 = sbr.rel (0) target = $region37
    $region36: #{tpu_custom_call.1} parent=1 // pred_region
      %73 = dma.done [#allocation6], 8192
    $region37: #{tpu_custom_call.1} parent=1 // pred_fallthru
      _
    // Predicated region
    $region38: #{tpu_custom_call.1} parent=1 // pred_check
      _
    $region39: #{tpu_custom_call.1} parent=1 // pred_check_branch
      %75 = sbr.rel (0) target = $region41
    $region40: #{tpu_custom_call.1} parent=1 // pred_region
      %76 = dma.done [#allocation9], 16384
    $region41: #{tpu_custom_call.1} parent=1 // pred_fallthru
      _
    %v77 = vld [vmem:[#allocation2] sm:$0xff]
    %v78 = vld [vmem:[#allocation5] sm:$0xff]
    %v79 = vld [vmem:[#allocation5 + $0x8] sm:$0xff]
    %v80 = vld [vmem:[#allocation5 + $0x10] sm:$0xff]
    %v81 = vld [vmem:[#allocation5 + $0x18] sm:$0xff]
    %v82 = vld [vmem:[#allocation5 + $0x20] sm:$0xff]
    %v83 = vld [vmem:[#allocation5 + $0x28] sm:$0xff]
    %v84 = vld [vmem:[#allocation5 + $0x30] sm:$0xff]
    %v85 = vld [vmem:[#allocation5 + $0x38] sm:$0xff]
    %v86 = vld [vmem:[#allocation5 + $0x40] sm:$0xff]
    %v87 = vld [vmem:[#allocation5 + $0x48] sm:$0xff]
    %v88 = vld [vmem:[#allocation5 + $0x50] sm:$0xff]
    %v89 = vld [vmem:[#allocation5 + $0x58] sm:$0xff]
    %v90 = vld [vmem:[#allocation5 + $0x60] sm:$0xff]
    %v91 = vld [vmem:[#allocation5 + $0x68] sm:$0xff]
    %v92 = vld [vmem:[#allocation5 + $0x70] sm:$0xff]
    %v93 = vld [vmem:[#allocation5 + $0x78] sm:$0xff]
    %v94 = vld [vmem:[#allocation5 + $0x80] sm:$0xff]
    %v95 = vld [vmem:[#allocation5 + $0x88] sm:$0xff]
    %v96 = vld [vmem:[#allocation5 + $0x90] sm:$0xff]
    %v97 = vld [vmem:[#allocation5 + $0x98] sm:$0xff]
    %v98 = vld [vmem:[#allocation5 + $0xa0] sm:$0xff]
    %v99 = vld [vmem:[#allocation5 + $0xa8] sm:$0xff]
    %v100 = vld [vmem:[#allocation5 + $0xb0] sm:$0xff]
    %v101 = vld [vmem:[#allocation5 + $0xb8] sm:$0xff]
    %v102 = vld [vmem:[#allocation5 + $0xc0] sm:$0xff]
    %v103 = vld [vmem:[#allocation5 + $0xc8] sm:$0xff]
    %v104 = vld [vmem:[#allocation5 + $0xd0] sm:$0xff]
    %v105 = vld [vmem:[#allocation5 + $0xd8] sm:$0xff]
    %v106 = vld [vmem:[#allocation5 + $0xe0] sm:$0xff]
    %v107 = vld [vmem:[#allocation5 + $0xe8] sm:$0xff]
    %v108 = vld [vmem:[#allocation5 + $0xf0] sm:$0xff]
    %v109 = vld [vmem:[#allocation5 + $0xf8] sm:$0xff]
    %v110 = vld [vmem:[%s3] sm:$0xf]
    %v112 = vlaneseq
    %v113 = vshrl.u32 %v112, 7
    %v114 = vsub.s32 0, %v113
    %v115 = vrot.slane %v110, %v114
    %v116 = vlaneseq
    %v117 = vshrl.u32 %v116, 7
    %v118 = vsub.s32 1, %v117
    %v119 = vrot.slane %v110, %v118
    %v120 = vlaneseq
    %v121 = vshrl.u32 %v120, 7
    %v122 = vsub.s32 2, %v121
    %v123 = vrot.slane %v110, %v122
    %v124 = vlaneseq
    %v125 = vshrl.u32 %v124, 7
    %v126 = vsub.s32 3, %v125
    %v127 = vrot.slane %v110, %v126
    %vm132 = vcmask 523264
    %v134 = vsel %vm132, %v77, 0
    %136 = vmatprep.subr.mxu0 %v79
    %137 = vmatpush1.msra.mxu0 %v78
    %138 = vmatprep.subr.mxu0 %v83
    %139 = vmatpush1.msra.mxu0 %v82
    %140 = vmatprep.subr.mxu0 %v87
    %141 = vmatpush1.msra.mxu0 %v86
    %142 = vmatprep.subr.mxu0 %v91
    %143 = vmatpush1.msra.mxu0 %v90
    %144 = vmatprep.subr.mxu0 %v95
    %145 = vmatpush1.msra.mxu0 %v94
    %146 = vmatprep.subr.mxu0 %v99
    %147 = vmatpush1.msra.mxu0 %v98
    %148 = vmatprep.subr.mxu0 %v103
    %149 = vmatpush1.msra.mxu0 %v102
    %150 = vmatprep.subr.mxu0 %v107
    %151 = vmatpush1.msra.mxu0 %v106
    %152 = vmatprep.subr.mxu0 0.0
    %153 = vmatpush1.msra.mxu0 0.0
    %154 = vmatprep.subr.mxu0 0.0
    %155 = vmatpush1.msra.mxu0 0.0
    %156 = vmatprep.subr.mxu0 0.0
    %157 = vmatpush1.msra.mxu0 0.0
    %158 = vmatprep.subr.mxu0 0.0
    %159 = vmatpush1.msra.mxu0 0.0
    %160 = vmatprep.subr.mxu0 0.0
    %161 = vmatpush1.msra.mxu0 0.0
    %162 = vmatprep.subr.mxu0 0.0
    %163 = vmatpush1.msra.mxu0 0.0
    %164 = vmatprep.subr.mxu0 0.0
    %165 = vmatpush1.msra.mxu0 0.0
    %166 = vmatprep.subr.mxu0 0.0
    %167 = vmatpush1.msra.mxu0 0.0
    %168 = vmatprep.subr.mxu0 0.0
    %169 = vmatpush1.msra.mxu0 0.0
    %170 = vmatprep.subr.mxu0 0.0
    %171 = vmatpush1.msra.mxu0 0.0
    %172 = vmatprep.subr.mxu0 0.0
    %173 = vmatpush1.msra.mxu0 0.0
    %174 = vmatprep.subr.mxu0 0.0
    %175 = vmatpush1.msra.mxu0 0.0
    %176 = vmatprep.subr.mxu0 0.0
    %177 = vmatpush1.msra.mxu0 0.0
    %178 = vmatprep.subr.mxu0 0.0
    %179 = vmatpush1.msra.mxu0 0.0
    %180 = vmatprep.subr.mxu0 0.0
    %181 = vmatpush1.msra.mxu0 0.0
    %182 = vmatprep.subr.mxu0 0.0
    %183 = vmatpush1.msra.mxu0 0.0
    %184 = vmatprep.subr.mxu0 0.0
    %185 = vmatpush1.msra.mxu0 0.0
    %186 = vmatprep.subr.mxu0 0.0
    %187 = vmatpush1.msra.mxu0 0.0
    %188 = vmatprep.subr.mxu0 0.0
    %189 = vmatpush1.msra.mxu0 0.0
    %190 = vmatprep.subr.mxu0 0.0
    %191 = vmatpush1.msra.mxu0 0.0
    %192 = vmatprep.subr.mxu0 0.0
    %193 = vmatpush1.msra.mxu0 0.0
    %194 = vmatprep.subr.mxu0 0.0
    %195 = vmatpush1.msra.mxu0 0.0
    %196 = vmatprep.subr.mxu0 0.0
    %197 = vmatpush1.msra.mxu0 0.0
    %198 = vmatprep.subr.mxu0 0.0
    %199 = vmatpush1.msra.mxu0 0.0
    %200 = vmatprep.mubr.f32.mxu0 0.0
    %201 = vmatmul.mubr.f32.gmra.mrb[0].mxu0 %v134
    %v202 = vpop.f32.mrb[0].mxu0
    %v203 = vadd.f32 %v115, %v202
    %v204 = vpop.f32.mrb[0].mxu0
    %v205 = vadd.f32 %v119, %v204
    %206 = vdwg.mxu0
    %207 = vmatprep.subr.mxu0 %v81
    %208 = vmatpush1.msra.mxu0 %v80
    %209 = vmatprep.subr.mxu0 %v85
    %210 = vmatpush1.msra.mxu0 %v84
    %211 = vmatprep.subr.mxu0 %v89
    %212 = vmatpush1.msra.mxu0 %v88
    %213 = vmatprep.subr.mxu0 %v93
    %214 = vmatpush1.msra.mxu0 %v92
    %215 = vmatprep.subr.mxu0 %v97
    %216 = vmatpush1.msra.mxu0 %v96
    %217 = vmatprep.subr.mxu0 %v101
    %218 = vmatpush1.msra.mxu0 %v100
    %219 = vmatprep.subr.mxu0 %v105
    %220 = vmatpush1.msra.mxu0 %v104
    %221 = vmatprep.subr.mxu0 %v109
    %222 = vmatpush1.msra.mxu0 %v108
    %223 = vmatprep.subr.mxu0 0.0
    %224 = vmatpush1.msra.mxu0 0.0
    %225 = vmatprep.subr.mxu0 0.0
    %226 = vmatpush1.msra.mxu0 0.0
    %227 = vmatprep.subr.mxu0 0.0
    %228 = vmatpush1.msra.mxu0 0.0
    %229 = vmatprep.subr.mxu0 0.0
    %230 = vmatpush1.msra.mxu0 0.0
    %231 = vmatprep.subr.mxu0 0.0
    %232 = vmatpush1.msra.mxu0 0.0
    %233 = vmatprep.subr.mxu0 0.0
    %234 = vmatpush1.msra.mxu0 0.0
    %235 = vmatprep.subr.mxu0 0.0
    %236 = vmatpush1.msra.mxu0 0.0
    %237 = vmatprep.subr.mxu0 0.0
    %238 = vmatpush1.msra.mxu0 0.0
    %239 = vmatprep.subr.mxu0 0.0
    %240 = vmatpush1.msra.mxu0 0.0
    %241 = vmatprep.subr.mxu0 0.0
    %242 = vmatpush1.msra.mxu0 0.0
    %243 = vmatprep.subr.mxu0 0.0
    %244 = vmatpush1.msra.mxu0 0.0
    %245 = vmatprep.subr.mxu0 0.0
    %246 = vmatpush1.msra.mxu0 0.0
    %247 = vmatprep.subr.mxu0 0.0
    %248 = vmatpush1.msra.mxu0 0.0
    %249 = vmatprep.subr.mxu0 0.0
    %250 = vmatpush1.msra.mxu0 0.0
    %251 = vmatprep.subr.mxu0 0.0
    %252 = vmatpush1.msra.mxu0 0.0
    %253 = vmatprep.subr.mxu0 0.0
    %254 = vmatpush1.msra.mxu0 0.0
    %255 = vmatprep.subr.mxu0 0.0
    %256 = vmatpush1.msra.mxu0 0.0
    %257 = vmatprep.subr.mxu0 0.0
    %258 = vmatpush1.msra.mxu0 0.0
    %259 = vmatprep.subr.mxu0 0.0
    %260 = vmatpush1.msra.mxu0 0.0
    %261 = vmatprep.subr.mxu0 0.0
    %262 = vmatpush1.msra.mxu0 0.0
    %263 = vmatprep.subr.mxu0 0.0
    %264 = vmatpush1.msra.mxu0 0.0
    %265 = vmatprep.subr.mxu0 0.0
    %266 = vmatpush1.msra.mxu0 0.0
    %267 = vmatprep.subr.mxu0 0.0
    %268 = vmatpush1.msra.mxu0 0.0
    %269 = vmatprep.subr.mxu0 0.0
    %270 = vmatpush1.msra.mxu0 0.0
    %271 = vmatprep.mubr.f32.mxu0 0.0
    %272 = vmatmul.mubr.f32.gmra.mrb[0].mxu0 %v134
    %v273 = vpop.f32.mrb[0].mxu0
    %v274 = vadd.f32 %v123, %v273
    %v275 = vpop.f32.mrb[0].mxu0
    %v276 = vadd.f32 %v127, %v275
    %277 = vdwg.mxu0
    %v278 = vld [vmem:[#allocation7] sm:$0xff]
    %v279 = vld [vmem:[#allocation7 + $0x8] sm:$0xff]
    %v280 = vld [vmem:[#allocation7 + $0x10] sm:$0xff]
    %v281 = vld [vmem:[#allocation7 + $0x18] sm:$0xff]
    %v282 = vld [vmem:[#allocation7 + $0x20] sm:$0xff]
    %v283 = vld [vmem:[#allocation7 + $0x28] sm:$0xff]
    %v284 = vld [vmem:[#allocation7 + $0x30] sm:$0xff]
    %v285 = vld [vmem:[#allocation7 + $0x38] sm:$0xff]
    %v286 = vld [vmem:[#allocation7 + $0x40] sm:$0xff]
    %v287 = vld [vmem:[#allocation7 + $0x48] sm:$0xff]
    %v288 = vld [vmem:[#allocation7 + $0x50] sm:$0xff]
    %v289 = vld [vmem:[#allocation7 + $0x58] sm:$0xff]
    %v290 = vld [vmem:[#allocation7 + $0x60] sm:$0xff]
    %v291 = vld [vmem:[#allocation7 + $0x68] sm:$0xff]
    %v292 = vld [vmem:[#allocation7 + $0x70] sm:$0xff]
    %v293 = vld [vmem:[#allocation7 + $0x78] sm:$0xff]
    %v294 = vld [vmem:[#allocation7 + $0x80] sm:$0xff]
    %v295 = vld [vmem:[#allocation7 + $0x88] sm:$0xff]
    %v296 = vld [vmem:[#allocation7 + $0x90] sm:$0xff]
    %v297 = vld [vmem:[#allocation7 + $0x98] sm:$0xff]
    %v298 = vld [vmem:[#allocation7 + $0xa0] sm:$0xff]
    %v299 = vld [vmem:[#allocation7 + $0xa8] sm:$0xff]
    %v300 = vld [vmem:[#allocation7 + $0xb0] sm:$0xff]
    %v301 = vld [vmem:[#allocation7 + $0xb8] sm:$0xff]
    %v302 = vld [vmem:[#allocation7 + $0xc0] sm:$0xff]
    %v303 = vld [vmem:[#allocation7 + $0xc8] sm:$0xff]
    %v304 = vld [vmem:[#allocation7 + $0xd0] sm:$0xff]
    %v305 = vld [vmem:[#allocation7 + $0xd8] sm:$0xff]
    %v306 = vld [vmem:[#allocation7 + $0xe0] sm:$0xff]
    %v307 = vld [vmem:[#allocation7 + $0xe8] sm:$0xff]
    %v308 = vld [vmem:[#allocation7 + $0xf0] sm:$0xff]
    %v309 = vld [vmem:[#allocation7 + $0xf8] sm:$0xff]
    %v310 = vld [vmem:[#allocation7 + $0x100] sm:$0xff]
    %v311 = vld [vmem:[#allocation7 + $0x108] sm:$0xff]
    %v312 = vld [vmem:[#allocation7 + $0x110] sm:$0xff]
    %v313 = vld [vmem:[#allocation7 + $0x118] sm:$0xff]
    %v314 = vld [vmem:[#allocation7 + $0x120] sm:$0xff]
    %v315 = vld [vmem:[#allocation7 + $0x128] sm:$0xff]
    %v316 = vld [vmem:[#allocation7 + $0x130] sm:$0xff]
    %v317 = vld [vmem:[#allocation7 + $0x138] sm:$0xff]
    %v318 = vld [vmem:[#allocation7 + $0x140] sm:$0xff]
    %v319 = vld [vmem:[#allocation7 + $0x148] sm:$0xff]
    %v320 = vld [vmem:[#allocation7 + $0x150] sm:$0xff]
    %v321 = vld [vmem:[#allocation7 + $0x158] sm:$0xff]
    %v322 = vld [vmem:[#allocation7 + $0x160] sm:$0xff]
    %v323 = vld [vmem:[#allocation7 + $0x168] sm:$0xff]
    %v324 = vld [vmem:[#allocation7 + $0x170] sm:$0xff]
    %v325 = vld [vmem:[#allocation7 + $0x178] sm:$0xff]
    %v326 = vld [vmem:[#allocation7 + $0x180] sm:$0xff]
    %v327 = vld [vmem:[#allocation7 + $0x188] sm:$0xff]
    %v328 = vld [vmem:[#allocation7 + $0x190] sm:$0xff]
    %v329 = vld [vmem:[#allocation7 + $0x198] sm:$0xff]
    %v330 = vld [vmem:[#allocation7 + $0x1a0] sm:$0xff]
    %v331 = vld [vmem:[#allocation7 + $0x1a8] sm:$0xff]
    %v332 = vld [vmem:[#allocation7 + $0x1b0] sm:$0xff]
    %v333 = vld [vmem:[#allocation7 + $0x1b8] sm:$0xff]
    %v334 = vld [vmem:[#allocation7 + $0x1c0] sm:$0xff]
    %v335 = vld [vmem:[#allocation7 + $0x1c8] sm:$0xff]
    %v336 = vld [vmem:[#allocation7 + $0x1d0] sm:$0xff]
    %v337 = vld [vmem:[#allocation7 + $0x1d8] sm:$0xff]
    %v338 = vld [vmem:[#allocation7 + $0x1e0] sm:$0xff]
    %v339 = vld [vmem:[#allocation7 + $0x1e8] sm:$0xff]
    %v340 = vld [vmem:[#allocation7 + $0x1f0] sm:$0xff]
    %v341 = vld [vmem:[#allocation7 + $0x1f8] sm:$0xff]
    %v342 = vld [vmem:[#allocation8] sm:$0xff]
    %v343 = vld [vmem:[#allocation8 + $0x8] sm:$0xff]
    %v344 = vld [vmem:[#allocation8 + $0x10] sm:$0xff]
    %v345 = vld [vmem:[#allocation8 + $0x18] sm:$0xff]
    %v346 = vld [vmem:[#allocation8 + $0x20] sm:$0xff]
    %v347 = vld [vmem:[#allocation8 + $0x28] sm:$0xff]
    %v348 = vld [vmem:[#allocation8 + $0x30] sm:$0xff]
    %v349 = vld [vmem:[#allocation8 + $0x38] sm:$0xff]
    %v350 = vld [vmem:[#allocation8 + $0x40] sm:$0xff]
    %v351 = vld [vmem:[#allocation8 + $0x48] sm:$0xff]
    %v352 = vld [vmem:[#allocation8 + $0x50] sm:$0xff]
    %v353 = vld [vmem:[#allocation8 + $0x58] sm:$0xff]
    %v354 = vld [vmem:[#allocation8 + $0x60] sm:$0xff]
    %v355 = vld [vmem:[#allocation8 + $0x68] sm:$0xff]
    %v356 = vld [vmem:[#allocation8 + $0x70] sm:$0xff]
    %v357 = vld [vmem:[#allocation8 + $0x78] sm:$0xff]
    %v358 = vld [vmem:[#allocation8 + $0x80] sm:$0xff]
    %v359 = vld [vmem:[#allocation8 + $0x88] sm:$0xff]
    %v360 = vld [vmem:[#allocation8 + $0x90] sm:$0xff]
    %v361 = vld [vmem:[#allocation8 + $0x98] sm:$0xff]
    %v362 = vld [vmem:[#allocation8 + $0xa0] sm:$0xff]
    %v363 = vld [vmem:[#allocation8 + $0xa8] sm:$0xff]
    %v364 = vld [vmem:[#allocation8 + $0xb0] sm:$0xff]
    %v365 = vld [vmem:[#allocation8 + $0xb8] sm:$0xff]
    %v366 = vld [vmem:[#allocation8 + $0xc0] sm:$0xff]
    %v367 = vld [vmem:[#allocation8 + $0xc8] sm:$0xff]
    %v368 = vld [vmem:[#allocation8 + $0xd0] sm:$0xff]
    %v369 = vld [vmem:[#allocation8 + $0xd8] sm:$0xff]
    %v370 = vld [vmem:[#allocation8 + $0xe0] sm:$0xff]
    %v371 = vld [vmem:[#allocation8 + $0xe8] sm:$0xff]
    %v372 = vld [vmem:[#allocation8 + $0xf0] sm:$0xff]
    %v373 = vld [vmem:[#allocation8 + $0xf8] sm:$0xff]
    %v374 = vld [vmem:[#allocation8 + $0x100] sm:$0xff]
    %v375 = vld [vmem:[#allocation8 + $0x108] sm:$0xff]
    %v376 = vld [vmem:[#allocation8 + $0x110] sm:$0xff]
    %v377 = vld [vmem:[#allocation8 + $0x118] sm:$0xff]
    %v378 = vld [vmem:[#allocation8 + $0x120] sm:$0xff]
    %v379 = vld [vmem:[#allocation8 + $0x128] sm:$0xff]
    %v380 = vld [vmem:[#allocation8 + $0x130] sm:$0xff]
    %v381 = vld [vmem:[#allocation8 + $0x138] sm:$0xff]
    %v382 = vld [vmem:[#allocation8 + $0x140] sm:$0xff]
    %v383 = vld [vmem:[#allocation8 + $0x148] sm:$0xff]
    %v384 = vld [vmem:[#allocation8 + $0x150] sm:$0xff]
    %v385 = vld [vmem:[#allocation8 + $0x158] sm:$0xff]
    %v386 = vld [vmem:[#allocation8 + $0x160] sm:$0xff]
    %v387 = vld [vmem:[#allocation8 + $0x168] sm:$0xff]
    %v388 = vld [vmem:[#allocation8 + $0x170] sm:$0xff]
    %v389 = vld [vmem:[#allocation8 + $0x178] sm:$0xff]
    %v390 = vld [vmem:[#allocation8 + $0x180] sm:$0xff]
    %v391 = vld [vmem:[#allocation8 + $0x188] sm:$0xff]
    %v392 = vld [vmem:[#allocation8 + $0x190] sm:$0xff]
    %v393 = vld [vmem:[#allocation8 + $0x198] sm:$0xff]
    %v394 = vld [vmem:[#allocation8 + $0x1a0] sm:$0xff]
    %v395 = vld [vmem:[#allocation8 + $0x1a8] sm:$0xff]
    %v396 = vld [vmem:[#allocation8 + $0x1b0] sm:$0xff]
    %v397 = vld [vmem:[#allocation8 + $0x1b8] sm:$0xff]
    %v398 = vld [vmem:[#allocation8 + $0x1c0] sm:$0xff]
    %v399 = vld [vmem:[#allocation8 + $0x1c8] sm:$0xff]
    %v400 = vld [vmem:[#allocation8 + $0x1d0] sm:$0xff]
    %v401 = vld [vmem:[#allocation8 + $0x1d8] sm:$0xff]
    %v402 = vld [vmem:[#allocation8 + $0x1e0] sm:$0xff]
    %v403 = vld [vmem:[#allocation8 + $0x1e8] sm:$0xff]
    %v404 = vld [vmem:[#allocation8 + $0x1f0] sm:$0xff]
    %v405 = vld [vmem:[#allocation8 + $0x1f8] sm:$0xff]
    %v406 = vld [vmem:[#allocation8 + $0x200] sm:$0xff]
    %v407 = vld [vmem:[#allocation8 + $0x208] sm:$0xff]
    %v408 = vld [vmem:[#allocation8 + $0x210] sm:$0xff]
    %v409 = vld [vmem:[#allocation8 + $0x218] sm:$0xff]
    %v410 = vld [vmem:[#allocation8 + $0x220] sm:$0xff]
    %v411 = vld [vmem:[#allocation8 + $0x228] sm:$0xff]
    %v412 = vld [vmem:[#allocation8 + $0x230] sm:$0xff]
    %v413 = vld [vmem:[#allocation8 + $0x238] sm:$0xff]
    %v414 = vld [vmem:[#allocation8 + $0x240] sm:$0xff]
    %v415 = vld [vmem:[#allocation8 + $0x248] sm:$0xff]
    %v416 = vld [vmem:[#allocation8 + $0x250] sm:$0xff]
    %v417 = vld [vmem:[#allocation8 + $0x258] sm:$0xff]
    %v418 = vld [vmem:[#allocation8 + $0x260] sm:$0xff]
    %v419 = vld [vmem:[#allocation8 + $0x268] sm:$0xff]
    %v420 = vld [vmem:[#allocation8 + $0x270] sm:$0xff]
    %v421 = vld [vmem:[#allocation8 + $0x278] sm:$0xff]
    %v422 = vld [vmem:[#allocation8 + $0x280] sm:$0xff]
    %v423 = vld [vmem:[#allocation8 + $0x288] sm:$0xff]
    %v424 = vld [vmem:[#allocation8 + $0x290] sm:$0xff]
    %v425 = vld [vmem:[#allocation8 + $0x298] sm:$0xff]
    %v426 = vld [vmem:[#allocation8 + $0x2a0] sm:$0xff]
    %v427 = vld [vmem:[#allocation8 + $0x2a8] sm:$0xff]
    %v428 = vld [vmem:[#allocation8 + $0x2b0] sm:$0xff]
    %v429 = vld [vmem:[#allocation8 + $0x2b8] sm:$0xff]
    %v430 = vld [vmem:[#allocation8 + $0x2c0] sm:$0xff]
    %v431 = vld [vmem:[#allocation8 + $0x2c8] sm:$0xff]
    %v432 = vld [vmem:[#allocation8 + $0x2d0] sm:$0xff]
    %v433 = vld [vmem:[#allocation8 + $0x2d8] sm:$0xff]
    %v434 = vld [vmem:[#allocation8 + $0x2e0] sm:$0xff]
    %v435 = vld [vmem:[#allocation8 + $0x2e8] sm:$0xff]
    %v436 = vld [vmem:[#allocation8 + $0x2f0] sm:$0xff]
    %v437 = vld [vmem:[#allocation8 + $0x2f8] sm:$0xff]
    %v438 = vld [vmem:[#allocation8 + $0x300] sm:$0xff]
    %v439 = vld [vmem:[#allocation8 + $0x308] sm:$0xff]
    %v440 = vld [vmem:[#allocation8 + $0x310] sm:$0xff]
    %v441 = vld [vmem:[#allocation8 + $0x318] sm:$0xff]
    %v442 = vld [vmem:[#allocation8 + $0x320] sm:$0xff]
    %v443 = vld [vmem:[#allocation8 + $0x328] sm:$0xff]
    %v444 = vld [vmem:[#allocation8 + $0x330] sm:$0xff]
    %v445 = vld [vmem:[#allocation8 + $0x338] sm:$0xff]
    %v446 = vld [vmem:[#allocation8 + $0x340] sm:$0xff]
    %v447 = vld [vmem:[#allocation8 + $0x348] sm:$0xff]
    %v448 = vld [vmem:[#allocation8 + $0x350] sm:$0xff]
    %v449 = vld [vmem:[#allocation8 + $0x358] sm:$0xff]
    %v450 = vld [vmem:[#allocation8 + $0x360] sm:$0xff]
    %v451 = vld [vmem:[#allocation8 + $0x368] sm:$0xff]
    %v452 = vld [vmem:[#allocation8 + $0x370] sm:$0xff]
    %v453 = vld [vmem:[#allocation8 + $0x378] sm:$0xff]
    %v454 = vld [vmem:[#allocation8 + $0x380] sm:$0xff]
    %v455 = vld [vmem:[#allocation8 + $0x388] sm:$0xff]
    %v456 = vld [vmem:[#allocation8 + $0x390] sm:$0xff]
    %v457 = vld [vmem:[#allocation8 + $0x398] sm:$0xff]
    %v458 = vld [vmem:[#allocation8 + $0x3a0] sm:$0xff]
    %v459 = vld [vmem:[#allocation8 + $0x3a8] sm:$0xff]
    %v460 = vld [vmem:[#allocation8 + $0x3b0] sm:$0xff]
    %v461 = vld [vmem:[#allocation8 + $0x3b8] sm:$0xff]
    %v462 = vld [vmem:[#allocation8 + $0x3c0] sm:$0xff]
    %v463 = vld [vmem:[#allocation8 + $0x3c8] sm:$0xff]
    %v464 = vld [vmem:[#allocation8 + $0x3d0] sm:$0xff]
    %v465 = vld [vmem:[#allocation8 + $0x3d8] sm:$0xff]
    %v466 = vld [vmem:[#allocation8 + $0x3e0] sm:$0xff]
    %v467 = vld [vmem:[#allocation8 + $0x3e8] sm:$0xff]
    %v468 = vld [vmem:[#allocation8 + $0x3f0] sm:$0xff]
    %v469 = vld [vmem:[#allocation8 + $0x3f8] sm:$0xff]
    %v470 = vld [vmem:[%s5] sm:$0xf]
    %471 = vmatprep.subr.mxu0 %v279
    %472 = vmatpush1.msra.mxu0 %v278
    %473 = vmatprep.subr.mxu0 %v283
    %474 = vmatpush1.msra.mxu0 %v282
    %475 = vmatprep.subr.mxu0 %v287
    %476 = vmatpush1.msra.mxu0 %v286
    %477 = vmatprep.subr.mxu0 %v291
    %478 = vmatpush1.msra.mxu0 %v290
    %479 = vmatprep.subr.mxu0 %v295
    %480 = vmatpush1.msra.mxu0 %v294
    %481 = vmatprep.subr.mxu0 %v299
    %482 = vmatpush1.msra.mxu0 %v298
    %483 = vmatprep.subr.mxu0 %v303
    %484 = vmatpush1.msra.mxu0 %v302
    %485 = vmatprep.subr.mxu0 %v307
    %486 = vmatpush1.msra.mxu0 %v306
    %487 = vmatprep.subr.mxu0 %v311
    %488 = vmatpush1.msra.mxu0 %v310
    %489 = vmatprep.subr.mxu0 %v315
    %490 = vmatpush1.msra.mxu0 %v314
    %491 = vmatprep.subr.mxu0 %v319
    %492 = vmatpush1.msra.mxu0 %v318
    %493 = vmatprep.subr.mxu0 %v323
    %494 = vmatpush1.msra.mxu0 %v322
    %495 = vmatprep.subr.mxu0 %v327
    %496 = vmatpush1.msra.mxu0 %v326
    %497 = vmatprep.subr.mxu0 %v331
    %498 = vmatpush1.msra.mxu0 %v330
    %499 = vmatprep.subr.mxu0 %v335
    %500 = vmatpush1.msra.mxu0 %v334
    %501 = vmatprep.subr.mxu0 %v339
    %502 = vmatpush1.msra.mxu0 %v338
    %503 = vmatprep.subr.mxu0 0.0
    %504 = vmatpush1.msra.mxu0 0.0
    %505 = vmatprep.subr.mxu0 0.0
    %506 = vmatpush1.msra.mxu0 0.0
    %507 = vmatprep.subr.mxu0 0.0
    %508 = vmatpush1.msra.mxu0 0.0
    %509 = vmatprep.subr.mxu0 0.0
    %510 = vmatpush1.msra.mxu0 0.0
    %511 = vmatprep.subr.mxu0 0.0
    %512 = vmatpush1.msra.mxu0 0.0
    %513 = vmatprep.subr.mxu0 0.0
    %514 = vmatpush1.msra.mxu0 0.0
    %515 = vmatprep.subr.mxu0 0.0
    %516 = vmatpush1.msra.mxu0 0.0
    %517 = vmatprep.subr.mxu0 0.0
    %518 = vmatpush1.msra.mxu0 0.0
    %519 = vmatprep.subr.mxu0 0.0
    %520 = vmatpush1.msra.mxu0 0.0
    %521 = vmatprep.subr.mxu0 0.0
    %522 = vmatpush1.msra.mxu0 0.0
    %523 = vmatprep.subr.mxu0 0.0
    %524 = vmatpush1.msra.mxu0 0.0
    %525 = vmatprep.subr.mxu0 0.0
    %526 = vmatpush1.msra.mxu0 0.0
    %527 = vmatprep.subr.mxu0 0.0
    %528 = vmatpush1.msra.mxu0 0.0
    %529 = vmatprep.subr.mxu0 0.0
    %530 = vmatpush1.msra.mxu0 0.0
    %531 = vmatprep.subr.mxu0 0.0
    %532 = vmatpush1.msra.mxu0 0.0
    %533 = vmatprep.subr.mxu0 0.0
    %534 = vmatpush1.msra.mxu0 0.0
    %535 = vmatprep.mubr.f32.mxu0 0.0
    %536 = vmatmul.mubr.f32.gmra.mrb[0].mxu0 0.0
    %v537 = vpop.f32.mrb[0].mxu0
    %v538 = vadd.f32 0.0, %v537
    %v539 = vpop.f32.mrb[0].mxu0
    %v540 = vadd.f32 0.0, %v539
    %541 = vdwg.mxu0
    %542 = vmatprep.subr.mxu0 %v281
    %543 = vmatpush1.msra.mxu0 %v280
    %544 = vmatprep.subr.mxu0 %v285
    %545 = vmatpush1.msra.mxu0 %v284
    %546 = vmatprep.subr.mxu0 %v289
    %547 = vmatpush1.msra.mxu0 %v288
    %548 = vmatprep.subr.mxu0 %v293
    %549 = vmatpush1.msra.mxu0 %v292
    %550 = vmatprep.subr.mxu0 %v297
    %551 = vmatpush1.msra.mxu0 %v296
    %552 = vmatprep.subr.mxu0 %v301
    %553 = vmatpush1.msra.mxu0 %v300
    %554 = vmatprep.subr.mxu0 %v305
    %555 = vmatpush1.msra.mxu0 %v304
    %556 = vmatprep.subr.mxu0 %v309
    %557 = vmatpush1.msra.mxu0 %v308
    %558 = vmatprep.subr.mxu0 %v313
    %559 = vmatpush1.msra.mxu0 %v312
    %560 = vmatprep.subr.mxu0 %v317
    %561 = vmatpush1.msra.mxu0 %v316
    %562 = vmatprep.subr.mxu0 %v321
    %563 = vmatpush1.msra.mxu0 %v320
    %564 = vmatprep.subr.mxu0 %v325
    %565 = vmatpush1.msra.mxu0 %v324
    %566 = vmatprep.subr.mxu0 %v329
    %567 = vmatpush1.msra.mxu0 %v328
    %568 = vmatprep.subr.mxu0 %v333
    %569 = vmatpush1.msra.mxu0 %v332
    %570 = vmatprep.subr.mxu0 %v337
    %571 = vmatpush1.msra.mxu0 %v336
    %572 = vmatprep.subr.mxu0 %v341
    %573 = vmatpush1.msra.mxu0 %v340
    %574 = vmatprep.subr.mxu0 0.0
    %575 = vmatpush1.msra.mxu0 0.0
    %576 = vmatprep.subr.mxu0 0.0
    %577 = vmatpush1.msra.mxu0 0.0
    %578 = vmatprep.subr.mxu0 0.0
    %579 = vmatpush1.msra.mxu0 0.0
    %580 = vmatprep.subr.mxu0 0.0
    %581 = vmatpush1.msra.mxu0 0.0
    %582 = vmatprep.subr.mxu0 0.0
    %583 = vmatpush1.msra.mxu0 0.0
    %584 = vmatprep.subr.mxu0 0.0
    %585 = vmatpush1.msra.mxu0 0.0
    %586 = vmatprep.subr.mxu0 0.0
    %587 = vmatpush1.msra.mxu0 0.0
    %588 = vmatprep.subr.mxu0 0.0
    %589 = vmatpush1.msra.mxu0 0.0
    %590 = vmatprep.subr.mxu0 0.0
    %591 = vmatpush1.msra.mxu0 0.0
    %592 = vmatprep.subr.mxu0 0.0
    %593 = vmatpush1.msra.mxu0 0.0
    %594 = vmatprep.subr.mxu0 0.0
    %595 = vmatpush1.msra.mxu0 0.0
    %596 = vmatprep.subr.mxu0 0.0
    %597 = vmatpush1.msra.mxu0 0.0
    %598 = vmatprep.subr.mxu0 0.0
    %599 = vmatpush1.msra.mxu0 0.0
    %600 = vmatprep.subr.mxu0 0.0
    %601 = vmatpush1.msra.mxu0 0.0
    %602 = vmatprep.subr.mxu0 0.0
    %603 = vmatpush1.msra.mxu0 0.0
    %604 = vmatprep.subr.mxu0 0.0
    %605 = vmatpush1.msra.mxu0 0.0
    %606 = vmatprep.mubr.f32.mxu0 0.0
    %607 = vmatmul.mubr.f32.gmra.mrb[0].mxu0 0.0
    %v608 = vpop.f32.mrb[0].mxu0
    %v609 = vadd.f32 0.0, %v608
    %v610 = vpop.f32.mrb[0].mxu0
    %v611 = vadd.f32 0.0, %v610
    %612 = vdwg.mxu0
    %v613 = vadd.f32 %v203, %v538
    %v614 = vadd.f32 %v205, %v540
    %v615 = vadd.f32 %v274, %v609
    %v616 = vadd.f32 %v276, %v611
    %v617 = vtanh.pop %v613
    %v618 = vtanh.pop %v614
    %v619 = vtanh.pop %v615
    %v620 = vtanh.pop %v616
    %v621 = vmul.f32 %v617, 0.5
    %v622 = vmul.f32 %v618, 0.5
    %v623 = vmul.f32 %v620, 0.5
    %v624 = vadd.f32 %v621, 0.5
    %v625 = vadd.f32 %v622, 0.5
    %v626 = vadd.f32 %v623, 0.5
    %v627 = vmul.f32 %v625, 0.0
    %v628 = vmul.f32 %v624, %v619
    %v629 = vadd.f32 %v627, %v628
    %v630 = vtanh.pop %v629
    %v631 = vmul.f32 %v626, %v630
    %632 = vmatprep.subr.mxu0 %v279
    %633 = vmatpush1.msra.mxu0 %v278
    %634 = vmatprep.subr.mxu0 %v283
    %635 = vmatpush1.msra.mxu0 %v282
    %636 = vmatprep.subr.mxu0 %v287
    %637 = vmatpush1.msra.mxu0 %v286
    %638 = vmatprep.subr.mxu0 %v291
    %639 = vmatpush1.msra.mxu0 %v290
    %640 = vmatprep.subr.mxu0 %v295
    %641 = vmatpush1.msra.mxu0 %v294
    %642 = vmatprep.subr.mxu0 %v299
    %643 = vmatpush1.msra.mxu0 %v298
    %644 = vmatprep.subr.mxu0 %v303
    %645 = vmatpush1.msra.mxu0 %v302
    %646 = vmatprep.subr.mxu0 %v307
    %647 = vmatpush1.msra.mxu0 %v306
    %648 = vmatprep.subr.mxu0 %v311
    %649 = vmatpush1.msra.mxu0 %v310
    %650 = vmatprep.subr.mxu0 %v315
    %651 = vmatpush1.msra.mxu0 %v314
    %652 = vmatprep.subr.mxu0 %v319
    %653 = vmatpush1.msra.mxu0 %v318
    %654 = vmatprep.subr.mxu0 %v323
    %655 = vmatpush1.msra.mxu0 %v322
    %656 = vmatprep.subr.mxu0 %v327
    %657 = vmatpush1.msra.mxu0 %v326
    %658 = vmatprep.subr.mxu0 %v331
    %659 = vmatpush1.msra.mxu0 %v330
    %660 = vmatprep.subr.mxu0 %v335
    %661 = vmatpush1.msra.mxu0 %v334
    %662 = vmatprep.subr.mxu0 %v339
    %663 = vmatpush1.msra.mxu0 %v338
    %664 = vmatprep.subr.mxu0 0.0
    %665 = vmatpush1.msra.mxu0 0.0
    %666 = vmatprep.subr.mxu0 0.0
    %667 = vmatpush1.msra.mxu0 0.0
    %668 = vmatprep.subr.mxu0 0.0
    %669 = vmatpush1.msra.mxu0 0.0
    %670 = vmatprep.subr.mxu0 0.0
    %671 = vmatpush1.msra.mxu0 0.0
    %672 = vmatprep.subr.mxu0 0.0
    %673 = vmatpush1.msra.mxu0 0.0
    %674 = vmatprep.subr.mxu0 0.0
    %675 = vmatpush1.msra.mxu0 0.0
    %676 = vmatprep.subr.mxu0 0.0
    %677 = vmatpush1.msra.mxu0 0.0
    %678 = vmatprep.subr.mxu0 0.0
    %679 = vmatpush1.msra.mxu0 0.0
    %680 = vmatprep.subr.mxu0 0.0
    %681 = vmatpush1.msra.mxu0 0.0
    %682 = vmatprep.subr.mxu0 0.0
    %683 = vmatpush1.msra.mxu0 0.0
    %684 = vmatprep.subr.mxu0 0.0
    %685 = vmatpush1.msra.mxu0 0.0
    %686 = vmatprep.subr.mxu0 0.0
    %687 = vmatpush1.msra.mxu0 0.0
    %688 = vmatprep.subr.mxu0 0.0
    %689 = vmatpush1.msra.mxu0 0.0
    %690 = vmatprep.subr.mxu0 0.0
    %691 = vmatpush1.msra.mxu0 0.0
    %692 = vmatprep.subr.mxu0 0.0
    %693 = vmatpush1.msra.mxu0 0.0
    %694 = vmatprep.subr.mxu0 0.0
    %695 = vmatpush1.msra.mxu0 0.0
    %696 = vmatprep.mubr.f32.mxu0 0.0
    %697 = vmatmul.mubr.f32.gmra.mrb[0].mxu0 %v631
    %v698 = vpop.f32.mrb[0].mxu0
    %v699 = vadd.f32 0.0, %v698
    %v700 = vpop.f32.mrb[0].mxu0
    %v701 = vadd.f32 0.0, %v700
    %702 = vdwg.mxu0
    %703 = vmatprep.subr.mxu0 %v281
    %704 = vmatpush1.msra.mxu0 %v280
    %705 = vmatprep.subr.mxu0 %v285
    %706 = vmatpush1.msra.mxu0 %v284
    %707 = vmatprep.subr.mxu0 %v289
    %708 = vmatpush1.msra.mxu0 %v288
    %709 = vmatprep.subr.mxu0 %v293
    %710 = vmatpush1.msra.mxu0 %v292
    %711 = vmatprep.subr.mxu0 %v297
    %712 = vmatpush1.msra.mxu0 %v296
    %713 = vmatprep.subr.mxu0 %v301
    %714 = vmatpush1.msra.mxu0 %v300
    %715 = vmatprep.subr.mxu0 %v305
    %716 = vmatpush1.msra.mxu0 %v304
    %717 = vmatprep.subr.mxu0 %v309
    %718 = vmatpush1.msra.mxu0 %v308
    %719 = vmatprep.subr.mxu0 %v313
    %720 = vmatpush1.msra.mxu0 %v312
    %721 = vmatprep.subr.mxu0 %v317
    %722 = vmatpush1.msra.mxu0 %v316
    %723 = vmatprep.subr.mxu0 %v321
    %724 = vmatpush1.msra.mxu0 %v320
    %725 = vmatprep.subr.mxu0 %v325
    %726 = vmatpush1.msra.mxu0 %v324
    %727 = vmatprep.subr.mxu0 %v329
    %728 = vmatpush1.msra.mxu0 %v328
    %729 = vmatprep.subr.mxu0 %v333
    %730 = vmatpush1.msra.mxu0 %v332
    %731 = vmatprep.subr.mxu0 %v337
    %732 = vmatpush1.msra.mxu0 %v336
    %733 = vmatprep.subr.mxu0 %v341
    %734 = vmatpush1.msra.mxu0 %v340
    %735 = vmatprep.subr.mxu0 0.0
    %736 = vmatpush1.msra.mxu0 0.0
    %737 = vmatprep.subr.mxu0 0.0
    %738 = vmatpush1.msra.mxu0 0.0
    %739 = vmatprep.subr.mxu0 0.0
    %740 = vmatpush1.msra.mxu0 0.0
    %741 = vmatprep.subr.mxu0 0.0
    %742 = vmatpush1.msra.mxu0 0.0
    %743 = vmatprep.subr.mxu0 0.0
    %744 = vmatpush1.msra.mxu0 0.0
    %745 = vmatprep.subr.mxu0 0.0
    %746 = vmatpush1.msra.mxu0 0.0
    %747 = vmatprep.subr.mxu0 0.0
    %748 = vmatpush1.msra.mxu0 0.0
    %749 = vmatprep.subr.mxu0 0.0
    %750 = vmatpush1.msra.mxu0 0.0
    %751 = vmatprep.subr.mxu0 0.0
    %752 = vmatpush1.msra.mxu0 0.0
    %753 = vmatprep.subr.mxu0 0.0
    %754 = vmatpush1.msra.mxu0 0.0
    %755 = vmatprep.subr.mxu0 0.0
    %756 = vmatpush1.msra.mxu0 0.0
    %757 = vmatprep.subr.mxu0 0.0
    %758 = vmatpush1.msra.mxu0 0.0
    %759 = vmatprep.subr.mxu0 0.0
    %760 = vmatpush1.msra.mxu0 0.0
    %761 = vmatprep.subr.mxu0 0.0
    %762 = vmatpush1.msra.mxu0 0.0
    %763 = vmatprep.subr.mxu0 0.0
    %764 = vmatpush1.msra.mxu0 0.0
    %765 = vmatprep.subr.mxu0 0.0
    %766 = vmatpush1.msra.mxu0 0.0
    %767 = vmatprep.mubr.f32.mxu0 0.0
    %768 = vmatmul.mubr.f32.gmra.mrb[0].mxu0 %v631
    %v769 = vpop.f32.mrb[0].mxu0
    %v770 = vadd.f32 0.0, %v769
    %v771 = vpop.f32.mrb[0].mxu0
    %v772 = vadd.f32 0.0, %v771
    %773 = vdwg.mxu0
    %v778 = vrot.slane %v699, 7
    %v779 = vrot.slane %v701, 7
    %v780 = vrot.slane %v770, 7
    %v781 = vrot.slane %v772, 7
    %v786 = vadd.f32 %v203, %v778
    %v787 = vadd.f32 %v205, %v779
    %v788 = vadd.f32 %v274, %v780
    %v789 = vadd.f32 %v276, %v781
    %v790 = vtanh.pop %v786
    %v791 = vtanh.pop %v787
    %v792 = vtanh.pop %v788
    %v793 = vtanh.pop %v789
    %v794 = vmul.f32 %v790, 0.5
    %v795 = vmul.f32 %v791, 0.5
    %v796 = vmul.f32 %v793, 0.5
    %v797 = vadd.f32 %v794, 0.5
    %v798 = vadd.f32 %v795, 0.5
    %v799 = vadd.f32 %v796, 0.5
    %v801 = vrot.slane %v629, 7
    %v803 = vmul.f32 %v798, %v801
    %v804 = vmul.f32 %v797, %v792
    %v805 = vadd.f32 %v803, %v804
    %v806 = vtanh.pop %v805
    %v807 = vmul.f32 %v799, %v806
    %v809 = vlaneseq
    %v810 = vshrl.u32 %v809, 7
    %v811 = vsub.s32 0, %v810
    %v812 = vrot.slane %v470, %v811
    %v813 = vlaneseq
    %v814 = vshrl.u32 %v813, 7
    %v815 = vsub.s32 1, %v814
    %v816 = vrot.slane %v470, %v815
    %v817 = vlaneseq
    %v818 = vshrl.u32 %v817, 7
    %v819 = vsub.s32 2, %v818
    %v820 = vrot.slane %v470, %v819
    %v821 = vlaneseq
    %v822 = vshrl.u32 %v821, 7
    %v823 = vsub.s32 3, %v822
    %v824 = vrot.slane %v470, %v823
    %829 = vmatprep.subr.mxu0 %v343
    %830 = vmatpush1.msra.mxu0 %v342
    %831 = vmatprep.subr.mxu0 %v347
    %832 = vmatpush1.msra.mxu0 %v346
    %833 = vmatprep.subr.mxu0 %v351
    %834 = vmatpush1.msra.mxu0 %v350
    %835 = vmatprep.subr.mxu0 %v355
    %836 = vmatpush1.msra.mxu0 %v354
    %837 = vmatprep.subr.mxu0 %v359
    %838 = vmatpush1.msra.mxu0 %v358
    %839 = vmatprep.subr.mxu0 %v363
    %840 = vmatpush1.msra.mxu0 %v362
    %841 = vmatprep.subr.mxu0 %v367
    %842 = vmatpush1.msra.mxu0 %v366
    %843 = vmatprep.subr.mxu0 %v371
    %844 = vmatpush1.msra.mxu0 %v370
    %845 = vmatprep.subr.mxu0 %v375
    %846 = vmatpush1.msra.mxu0 %v374
    %847 = vmatprep.subr.mxu0 %v379
    %848 = vmatpush1.msra.mxu0 %v378
    %849 = vmatprep.subr.mxu0 %v383
    %850 = vmatpush1.msra.mxu0 %v382
    %851 = vmatprep.subr.mxu0 %v387
    %852 = vmatpush1.msra.mxu0 %v386
    %853 = vmatprep.subr.mxu0 %v391
    %854 = vmatpush1.msra.mxu0 %v390
    %855 = vmatprep.subr.mxu0 %v395
    %856 = vmatpush1.msra.mxu0 %v394
    %857 = vmatprep.subr.mxu0 %v399
    %858 = vmatpush1.msra.mxu0 %v398
    %859 = vmatprep.subr.mxu0 %v403
    %860 = vmatpush1.msra.mxu0 %v402
    %861 = vmatprep.subr.mxu0 %v407
    %862 = vmatpush1.msra.mxu0 %v406
    %863 = vmatprep.subr.mxu0 %v411
    %864 = vmatpush1.msra.mxu0 %v410
    %865 = vmatprep.subr.mxu0 %v415
    %866 = vmatpush1.msra.mxu0 %v414
    %867 = vmatprep.subr.mxu0 %v419
    %868 = vmatpush1.msra.mxu0 %v418
    %869 = vmatprep.subr.mxu0 %v423
    %870 = vmatpush1.msra.mxu0 %v422
    %871 = vmatprep.subr.mxu0 %v427
    %872 = vmatpush1.msra.mxu0 %v426
    %873 = vmatprep.subr.mxu0 %v431
    %874 = vmatpush1.msra.mxu0 %v430
    %875 = vmatprep.subr.mxu0 %v435
    %876 = vmatpush1.msra.mxu0 %v434
    %877 = vmatprep.subr.mxu0 %v439
    %878 = vmatpush1.msra.mxu0 %v438
    %879 = vmatprep.subr.mxu0 %v443
    %880 = vmatpush1.msra.mxu0 %v442
    %881 = vmatprep.subr.mxu0 %v447
    %882 = vmatpush1.msra.mxu0 %v446
    %883 = vmatprep.subr.mxu0 %v451
    %884 = vmatpush1.msra.mxu0 %v450
    %885 = vmatprep.subr.mxu0 %v455
    %886 = vmatpush1.msra.mxu0 %v454
    %887 = vmatprep.subr.mxu0 %v459
    %888 = vmatpush1.msra.mxu0 %v458
    %889 = vmatprep.subr.mxu0 %v463
    %890 = vmatpush1.msra.mxu0 %v462
    %891 = vmatprep.subr.mxu0 %v467
    %892 = vmatpush1.msra.mxu0 %v466
    %893 = vmatprep.mubr.f32.mxu0 0.0
    %894 = vmatmul.mubr.f32.gmra.mrb[0].mxu0 %v631
    %v895 = vpop.f32.mrb[0].mxu0
    %v896 = vadd.f32 %v812, %v895
    %v897 = vpop.f32.mrb[0].mxu0
    %v898 = vadd.f32 %v816, %v897
    %899 = vdwg.mxu0
    %900 = vmatprep.subr.mxu0 %v345
    %901 = vmatpush1.msra.mxu0 %v344
    %902 = vmatprep.subr.mxu0 %v349
    %903 = vmatpush1.msra.mxu0 %v348
    %904 = vmatprep.subr.mxu0 %v353
    %905 = vmatpush1.msra.mxu0 %v352
    %906 = vmatprep.subr.mxu0 %v357
    %907 = vmatpush1.msra.mxu0 %v356
    %908 = vmatprep.subr.mxu0 %v361
    %909 = vmatpush1.msra.mxu0 %v360
    %910 = vmatprep.subr.mxu0 %v365
    %911 = vmatpush1.msra.mxu0 %v364
    %912 = vmatprep.subr.mxu0 %v369
    %913 = vmatpush1.msra.mxu0 %v368
    %914 = vmatprep.subr.mxu0 %v373
    %915 = vmatpush1.msra.mxu0 %v372
    %916 = vmatprep.subr.mxu0 %v377
    %917 = vmatpush1.msra.mxu0 %v376
    %918 = vmatprep.subr.mxu0 %v381
    %919 = vmatpush1.msra.mxu0 %v380
    %920 = vmatprep.subr.mxu0 %v385
    %921 = vmatpush1.msra.mxu0 %v384
    %922 = vmatprep.subr.mxu0 %v389
    %923 = vmatpush1.msra.mxu0 %v388
    %924 = vmatprep.subr.mxu0 %v393
    %925 = vmatpush1.msra.mxu0 %v392
    %926 = vmatprep.subr.mxu0 %v397
    %927 = vmatpush1.msra.mxu0 %v396
    %928 = vmatprep.subr.mxu0 %v401
    %929 = vmatpush1.msra.mxu0 %v400
    %930 = vmatprep.subr.mxu0 %v405
    %931 = vmatpush1.msra.mxu0 %v404
    %932 = vmatprep.subr.mxu0 %v409
    %933 = vmatpush1.msra.mxu0 %v408
    %934 = vmatprep.subr.mxu0 %v413
    %935 = vmatpush1.msra.mxu0 %v412
    %936 = vmatprep.subr.mxu0 %v417
    %937 = vmatpush1.msra.mxu0 %v416
    %938 = vmatprep.subr.mxu0 %v421
    %939 = vmatpush1.msra.mxu0 %v420
    %940 = vmatprep.subr.mxu0 %v425
    %941 = vmatpush1.msra.mxu0 %v424
    %942 = vmatprep.subr.mxu0 %v429
    %943 = vmatpush1.msra.mxu0 %v428
    %944 = vmatprep.subr.mxu0 %v433
    %945 = vmatpush1.msra.mxu0 %v432
    %946 = vmatprep.subr.mxu0 %v437
    %947 = vmatpush1.msra.mxu0 %v436
    %948 = vmatprep.subr.mxu0 %v441
    %949 = vmatpush1.msra.mxu0 %v440
    %950 = vmatprep.subr.mxu0 %v445
    %951 = vmatpush1.msra.mxu0 %v444
    %952 = vmatprep.subr.mxu0 %v449
    %953 = vmatpush1.msra.mxu0 %v448
    %954 = vmatprep.subr.mxu0 %v453
    %955 = vmatpush1.msra.mxu0 %v452
    %956 = vmatprep.subr.mxu0 %v457
    %957 = vmatpush1.msra.mxu0 %v456
    %958 = vmatprep.subr.mxu0 %v461
    %959 = vmatpush1.msra.mxu0 %v460
    %960 = vmatprep.subr.mxu0 %v465
    %961 = vmatpush1.msra.mxu0 %v464
    %962 = vmatprep.subr.mxu0 %v469
    %963 = vmatpush1.msra.mxu0 %v468
    %964 = vmatprep.mubr.f32.mxu0 0.0
    %965 = vmatmul.mubr.f32.gmra.mrb[0].mxu0 %v631
    %v966 = vpop.f32.mrb[0].mxu0
    %v967 = vadd.f32 %v820, %v966
    %v968 = vpop.f32.mrb[0].mxu0
    %v969 = vadd.f32 %v824, %v968
    %970 = vdwg.mxu0
    %v971 = vtanh.pop %v896
    %v972 = vtanh.pop %v898
    %v973 = vtanh.pop %v967
    %v974 = vtanh.pop %v969
    %v975 = vmul.f32 %v971, 0.5
    %v976 = vmul.f32 %v972, 0.5
    %v977 = vmul.f32 %v974, 0.5
    %v978 = vadd.f32 %v975, 0.5
    %v979 = vadd.f32 %v976, 0.5
    %v980 = vadd.f32 %v977, 0.5
    %v981 = vmul.f32 %v979, 0.0
    %v982 = vmul.f32 %v978, %v973
    %v983 = vadd.f32 %v981, %v982
    %v984 = vtanh.pop %v983
    %v985 = vmul.f32 %v980, %v984
    %986 = vst [vmem:[#allocation10] sm:$0x1] %v985
    %v988 = vrot.slane %v807, 1
    %990 = vmatprep.subr.mxu0 %v279
    %991 = vmatpush1.msra.mxu0 %v278
    %992 = vmatprep.subr.mxu0 %v283
    %993 = vmatpush1.msra.mxu0 %v282
    %994 = vmatprep.subr.mxu0 %v287
    %995 = vmatpush1.msra.mxu0 %v286
    %996 = vmatprep.subr.mxu0 %v291
    %997 = vmatpush1.msra.mxu0 %v290
    %998 = vmatprep.subr.mxu0 %v295
    %999 = vmatpush1.msra.mxu0 %v294
    %1000 = vmatprep.subr.mxu0 %v299
    %1001 = vmatpush1.msra.mxu0 %v298
    %1002 = vmatprep.subr.mxu0 %v303
    %1003 = vmatpush1.msra.mxu0 %v302
    %1004 = vmatprep.subr.mxu0 %v307
    %1005 = vmatpush1.msra.mxu0 %v306
    %1006 = vmatprep.subr.mxu0 %v311
    %1007 = vmatpush1.msra.mxu0 %v310
    %1008 = vmatprep.subr.mxu0 %v315
    %1009 = vmatpush1.msra.mxu0 %v314
    %1010 = vmatprep.subr.mxu0 %v319
    %1011 = vmatpush1.msra.mxu0 %v318
    %1012 = vmatprep.subr.mxu0 %v323
    %1013 = vmatpush1.msra.mxu0 %v322
    %1014 = vmatprep.subr.mxu0 %v327
    %1015 = vmatpush1.msra.mxu0 %v326
    %1016 = vmatprep.subr.mxu0 %v331
    %1017 = vmatpush1.msra.mxu0 %v330
    %1018 = vmatprep.subr.mxu0 %v335
    %1019 = vmatpush1.msra.mxu0 %v334
    %1020 = vmatprep.subr.mxu0 %v339
    %1021 = vmatpush1.msra.mxu0 %v338
    %1022 = vmatprep.subr.mxu0 0.0
    %1023 = vmatpush1.msra.mxu0 0.0
    %1024 = vmatprep.subr.mxu0 0.0
    %1025 = vmatpush1.msra.mxu0 0.0
    %1026 = vmatprep.subr.mxu0 0.0
    %1027 = vmatpush1.msra.mxu0 0.0
    %1028 = vmatprep.subr.mxu0 0.0
    %1029 = vmatpush1.msra.mxu0 0.0
    %1030 = vmatprep.subr.mxu0 0.0
    %1031 = vmatpush1.msra.mxu0 0.0
    %1032 = vmatprep.subr.mxu0 0.0
    %1033 = vmatpush1.msra.mxu0 0.0
    %1034 = vmatprep.subr.mxu0 0.0
    %1035 = vmatpush1.msra.mxu0 0.0
    %1036 = vmatprep.subr.mxu0 0.0
    %1037 = vmatpush1.msra.mxu0 0.0
    %1038 = vmatprep.subr.mxu0 0.0
    %1039 = vmatpush1.msra.mxu0 0.0
    %1040 = vmatprep.subr.mxu0 0.0
    %1041 = vmatpush1.msra.mxu0 0.0
    %1042 = vmatprep.subr.mxu0 0.0
    %1043 = vmatpush1.msra.mxu0 0.0
    %1044 = vmatprep.subr.mxu0 0.0
    %1045 = vmatpush1.msra.mxu0 0.0
    %1046 = vmatprep.subr.mxu0 0.0
    %1047 = vmatpush1.msra.mxu0 0.0
    %1048 = vmatprep.subr.mxu0 0.0
    %1049 = vmatpush1.msra.mxu0 0.0
    %1050 = vmatprep.subr.mxu0 0.0
    %1051 = vmatpush1.msra.mxu0 0.0
    %1052 = vmatprep.subr.mxu0 0.0
    %1053 = vmatpush1.msra.mxu0 0.0
    %1054 = vmatprep.mubr.f32.mxu0 0.0
    %1055 = vmatmul.mubr.f32.gmra.mrb[0].mxu0 %v988
    %v1056 = vpop.f32.mrb[0].mxu0
    %v1057 = vadd.f32 0.0, %v1056
    %v1058 = vpop.f32.mrb[0].mxu0
    %v1059 = vadd.f32 0.0, %v1058
    %1060 = vdwg.mxu0
    %1061 = vmatprep.subr.mxu0 %v281
    %1062 = vmatpush1.msra.mxu0 %v280
    %1063 = vmatprep.subr.mxu0 %v285
    %1064 = vmatpush1.msra.mxu0 %v284
    %1065 = vmatprep.subr.mxu0 %v289
    %1066 = vmatpush1.msra.mxu0 %v288
    %1067 = vmatprep.subr.mxu0 %v293
    %1068 = vmatpush1.msra.mxu0 %v292
    %1069 = vmatprep.subr.mxu0 %v297
    %1070 = vmatpush1.msra.mxu0 %v296
    %1071 = vmatprep.subr.mxu0 %v301
    %1072 = vmatpush1.msra.mxu0 %v300
    %1073 = vmatprep.subr.mxu0 %v305
    %1074 = vmatpush1.msra.mxu0 %v304
    %1075 = vmatprep.subr.mxu0 %v309
    %1076 = vmatpush1.msra.mxu0 %v308
    %1077 = vmatprep.subr.mxu0 %v313
    %1078 = vmatpush1.msra.mxu0 %v312
    %1079 = vmatprep.subr.mxu0 %v317
    %1080 = vmatpush1.msra.mxu0 %v316
    %1081 = vmatprep.subr.mxu0 %v321
    %1082 = vmatpush1.msra.mxu0 %v320
    %1083 = vmatprep.subr.mxu0 %v325
    %1084 = vmatpush1.msra.mxu0 %v324
    %1085 = vmatprep.subr.mxu0 %v329
    %1086 = vmatpush1.msra.mxu0 %v328
    %1087 = vmatprep.subr.mxu0 %v333
    %1088 = vmatpush1.msra.mxu0 %v332
    %1089 = vmatprep.subr.mxu0 %v337
    %1090 = vmatpush1.msra.mxu0 %v336
    %1091 = vmatprep.subr.mxu0 %v341
    %1092 = vmatpush1.msra.mxu0 %v340
    %1093 = vmatprep.subr.mxu0 0.0
    %1094 = vmatpush1.msra.mxu0 0.0
    %1095 = vmatprep.subr.mxu0 0.0
    %1096 = vmatpush1.msra.mxu0 0.0
    %1097 = vmatprep.subr.mxu0 0.0
    %1098 = vmatpush1.msra.mxu0 0.0
    %1099 = vmatprep.subr.mxu0 0.0
    %1100 = vmatpush1.msra.mxu0 0.0
    %1101 = vmatprep.subr.mxu0 0.0
    %1102 = vmatpush1.msra.mxu0 0.0
    %1103 = vmatprep.subr.mxu0 0.0
    %1104 = vmatpush1.msra.mxu0 0.0
    %1105 = vmatprep.subr.mxu0 0.0
    %1106 = vmatpush1.msra.mxu0 0.0
    %1107 = vmatprep.subr.mxu0 0.0
    %1108 = vmatpush1.msra.mxu0 0.0
    %1109 = vmatprep.subr.mxu0 0.0
    %1110 = vmatpush1.msra.mxu0 0.0
    %1111 = vmatprep.subr.mxu0 0.0
    %1112 = vmatpush1.msra.mxu0 0.0
    %1113 = vmatprep.subr.mxu0 0.0
    %1114 = vmatpush1.msra.mxu0 0.0
    %1115 = vmatprep.subr.mxu0 0.0
    %1116 = vmatpush1.msra.mxu0 0.0
    %1117 = vmatprep.subr.mxu0 0.0
    %1118 = vmatpush1.msra.mxu0 0.0
    %1119 = vmatprep.subr.mxu0 0.0
    %1120 = vmatpush1.msra.mxu0 0.0
    %1121 = vmatprep.subr.mxu0 0.0
    %1122 = vmatpush1.msra.mxu0 0.0
    %1123 = vmatprep.subr.mxu0 0.0
    %1124 = vmatpush1.msra.mxu0 0.0
    %1125 = vmatprep.mubr.f32.mxu0 0.0
    %1126 = vmatmul.mubr.f32.gmra.mrb[0].mxu0 %v988
    %v1127 = vpop.f32.mrb[0].mxu0
    %v1128 = vadd.f32 0.0, %v1127
    %v1129 = vpop.f32.mrb[0].mxu0
    %v1130 = vadd.f32 0.0, %v1129
    %1131 = vdwg.mxu0
    %v1136 = vrot.slane %v1057, 6
    %v1137 = vrot.slane %v1059, 6
    %v1138 = vrot.slane %v1128, 6
    %v1139 = vrot.slane %v1130, 6
    %v1144 = vadd.f32 %v203, %v1136
    %v1145 = vadd.f32 %v205, %v1137
    %v1146 = vadd.f32 %v274, %v1138
    %v1147 = vadd.f32 %v276, %v1139
    %v1148 = vtanh.pop %v1144
    %v1149 = vtanh.pop %v1145
    %v1150 = vtanh.pop %v1146
    %v1151 = vtanh.pop %v1147
    %v1152 = vmul.f32 %v1148, 0.5
    %v1153 = vmul.f32 %v1149, 0.5
    %v1154 = vmul.f32 %v1151, 0.5
    %v1155 = vadd.f32 %v1152, 0.5
    %v1156 = vadd.f32 %v1153, 0.5
    %v1157 = vadd.f32 %v1154, 0.5
    %v1159 = vrot.slane %v805, 7
    %v1161 = vmul.f32 %v1156, %v1159
    %v1162 = vmul.f32 %v1155, %v1150
    %v1163 = vadd.f32 %v1161, %v1162
    %v1164 = vtanh.pop %v1163
    %v1165 = vmul.f32 %v1157, %v1164
    %v1167 = vrot.slane %v985, 7
    %v1168 = vrot.slane %v1167, 1
    %1170 = vmatprep.subr.mxu0 %v343
    %1171 = vmatpush1.msra.mxu0 %v342
    %1172 = vmatprep.subr.mxu0 %v347
    %1173 = vmatpush1.msra.mxu0 %v346
    %1174 = vmatprep.subr.mxu0 %v351
    %1175 = vmatpush1.msra.mxu0 %v350
    %1176 = vmatprep.subr.mxu0 %v355
    %1177 = vmatpush1.msra.mxu0 %v354
    %1178 = vmatprep.subr.mxu0 %v359
    %1179 = vmatpush1.msra.mxu0 %v358
    %1180 = vmatprep.subr.mxu0 %v363
    %1181 = vmatpush1.msra.mxu0 %v362
    %1182 = vmatprep.subr.mxu0 %v367
    %1183 = vmatpush1.msra.mxu0 %v366
    %1184 = vmatprep.subr.mxu0 %v371
    %1185 = vmatpush1.msra.mxu0 %v370
    %1186 = vmatprep.subr.mxu0 %v375
    %1187 = vmatpush1.msra.mxu0 %v374
    %1188 = vmatprep.subr.mxu0 %v379
    %1189 = vmatpush1.msra.mxu0 %v378
    %1190 = vmatprep.subr.mxu0 %v383
    %1191 = vmatpush1.msra.mxu0 %v382
    %1192 = vmatprep.subr.mxu0 %v387
    %1193 = vmatpush1.msra.mxu0 %v386
    %1194 = vmatprep.subr.mxu0 %v391
    %1195 = vmatpush1.msra.mxu0 %v390
    %1196 = vmatprep.subr.mxu0 %v395
    %1197 = vmatpush1.msra.mxu0 %v394
    %1198 = vmatprep.subr.mxu0 %v399
    %1199 = vmatpush1.msra.mxu0 %v398
    %1200 = vmatprep.subr.mxu0 %v403
    %1201 = vmatpush1.msra.mxu0 %v402
    %1202 = vmatprep.subr.mxu0 %v407
    %1203 = vmatpush1.msra.mxu0 %v406
    %1204 = vmatprep.subr.mxu0 %v411
    %1205 = vmatpush1.msra.mxu0 %v410
    %1206 = vmatprep.subr.mxu0 %v415
    %1207 = vmatpush1.msra.mxu0 %v414
    %1208 = vmatprep.subr.mxu0 %v419
    %1209 = vmatpush1.msra.mxu0 %v418
    %1210 = vmatprep.subr.mxu0 %v423
    %1211 = vmatpush1.msra.mxu0 %v422
    %1212 = vmatprep.subr.mxu0 %v427
    %1213 = vmatpush1.msra.mxu0 %v426
    %1214 = vmatprep.subr.mxu0 %v431
    %1215 = vmatpush1.msra.mxu0 %v430
    %1216 = vmatprep.subr.mxu0 %v435
    %1217 = vmatpush1.msra.mxu0 %v434
    %1218 = vmatprep.subr.mxu0 %v439
    %1219 = vmatpush1.msra.mxu0 %v438
    %1220 = vmatprep.subr.mxu0 %v443
    %1221 = vmatpush1.msra.mxu0 %v442
    %1222 = vmatprep.subr.mxu0 %v447
    %1223 = vmatpush1.msra.mxu0 %v446
    %1224 = vmatprep.subr.mxu0 %v451
    %1225 = vmatpush1.msra.mxu0 %v450
    %1226 = vmatprep.subr.mxu0 %v455
    %1227 = vmatpush1.msra.mxu0 %v454
    %1228 = vmatprep.subr.mxu0 %v459
    %1229 = vmatpush1.msra.mxu0 %v458
    %1230 = vmatprep.subr.mxu0 %v463
    %1231 = vmatpush1.msra.mxu0 %v462
    %1232 = vmatprep.subr.mxu0 %v467
    %1233 = vmatpush1.msra.mxu0 %v466
    %1234 = vmatprep.mubr.f32.mxu0 %v1168
    %1235 = vmatmul.mubr.f32.gmra.mrb[0].mxu0 %v988
    %v1236 = vpop.f32.mrb[0].mxu0
    %v1237 = vadd.f32 %v812, %v1236
    %v1238 = vpop.f32.mrb[0].mxu0
    %v1239 = vadd.f32 %v816, %v1238
    %1240 = vdwg.mxu0
    %1241 = vmatprep.subr.mxu0 %v345
    %1242 = vmatpush1.msra.mxu0 %v344
    %1243 = vmatprep.subr.mxu0 %v349
    %1244 = vmatpush1.msra.mxu0 %v348
    %1245 = vmatprep.subr.mxu0 %v353
    %1246 = vmatpush1.msra.mxu0 %v352
    %1247 = vmatprep.subr.mxu0 %v357
    %1248 = vmatpush1.msra.mxu0 %v356
    %1249 = vmatprep.subr.mxu0 %v361
    %1250 = vmatpush1.msra.mxu0 %v360
    %1251 = vmatprep.subr.mxu0 %v365
    %1252 = vmatpush1.msra.mxu0 %v364
    %1253 = vmatprep.subr.mxu0 %v369
    %1254 = vmatpush1.msra.mxu0 %v368
    %1255 = vmatprep.subr.mxu0 %v373
    %1256 = vmatpush1.msra.mxu0 %v372
    %1257 = vmatprep.subr.mxu0 %v377
    %1258 = vmatpush1.msra.mxu0 %v376
    %1259 = vmatprep.subr.mxu0 %v381
    %1260 = vmatpush1.msra.mxu0 %v380
    %1261 = vmatprep.subr.mxu0 %v385
    %1262 = vmatpush1.msra.mxu0 %v384
    %1263 = vmatprep.subr.mxu0 %v389
    %1264 = vmatpush1.msra.mxu0 %v388
    %1265 = vmatprep.subr.mxu0 %v393
    %1266 = vmatpush1.msra.mxu0 %v392
    %1267 = vmatprep.subr.mxu0 %v397
    %1268 = vmatpush1.msra.mxu0 %v396
    %1269 = vmatprep.subr.mxu0 %v401
    %1270 = vmatpush1.msra.mxu0 %v400
    %1271 = vmatprep.subr.mxu0 %v405
    %1272 = vmatpush1.msra.mxu0 %v404
    %1273 = vmatprep.subr.mxu0 %v409
    %1274 = vmatpush1.msra.mxu0 %v408
    %1275 = vmatprep.subr.mxu0 %v413
    %1276 = vmatpush1.msra.mxu0 %v412
    %1277 = vmatprep.subr.mxu0 %v417
    %1278 = vmatpush1.msra.mxu0 %v416
    %1279 = vmatprep.subr.mxu0 %v421
    %1280 = vmatpush1.msra.mxu0 %v420
    %1281 = vmatprep.subr.mxu0 %v425
    %1282 = vmatpush1.msra.mxu0 %v424
    %1283 = vmatprep.subr.mxu0 %v429
    %1284 = vmatpush1.msra.mxu0 %v428
    %1285 = vmatprep.subr.mxu0 %v433
    %1286 = vmatpush1.msra.mxu0 %v432
    %1287 = vmatprep.subr.mxu0 %v437
    %1288 = vmatpush1.msra.mxu0 %v436
    %1289 = vmatprep.subr.mxu0 %v441
    %1290 = vmatpush1.msra.mxu0 %v440
    %1291 = vmatprep.subr.mxu0 %v445
    %1292 = vmatpush1.msra.mxu0 %v444
    %1293 = vmatprep.subr.mxu0 %v449
    %1294 = vmatpush1.msra.mxu0 %v448
    %1295 = vmatprep.subr.mxu0 %v453
    %1296 = vmatpush1.msra.mxu0 %v452
    %1297 = vmatprep.subr.mxu0 %v457
    %1298 = vmatpush1.msra.mxu0 %v456
    %1299 = vmatprep.subr.mxu0 %v461
    %1300 = vmatpush1.msra.mxu0 %v460
    %1301 = vmatprep.subr.mxu0 %v465
    %1302 = vmatpush1.msra.mxu0 %v464
    %1303 = vmatprep.subr.mxu0 %v469
    %1304 = vmatpush1.msra.mxu0 %v468
    %1305 = vmatprep.mubr.f32.mxu0 %v1168
    %1306 = vmatmul.mubr.f32.gmra.mrb[0].mxu0 %v988
    %v1307 = vpop.f32.mrb[0].mxu0
    %v1308 = vadd.f32 %v820, %v1307
    %v1309 = vpop.f32.mrb[0].mxu0
    %v1310 = vadd.f32 %v824, %v1309
    %1311 = vdwg.mxu0
    %v1312 = vtanh.pop %v1237
    %v1313 = vtanh.pop %v1239
    %v1314 = vtanh.pop %v1308
    %v1315 = vtanh.pop %v1310
    %v1316 = vmul.f32 %v1312, 0.5
    %v1317 = vmul.f32 %v1313, 0.5
    %v1318 = vmul.f32 %v1315, 0.5
    %v1319 = vadd.f32 %v1316, 0.5
    %v1320 = vadd.f32 %v1317, 0.5
    %v1321 = vadd.f32 %v1318, 0.5
    %v1322 = vmul.f32 %v1320, %v983
    %v1323 = vmul.f32 %v1319, %v1314
    %v1324 = vadd.f32 %v1322, %v1323
    %v1325 = vtanh.pop %v1324
    %v1326 = vmul.f32 %v1321, %v1325
    %1327 = vst [vmem:[#allocation10 + $0x1] sm:$0x1] %v1326
    %v1329 = vrot.slane %v1165, 2
    %1331 = vmatprep.subr.mxu0 %v279
    %1332 = vmatpush1.msra.mxu0 %v278
    %1333 = vmatprep.subr.mxu0 %v283
    %1334 = vmatpush1.msra.mxu0 %v282
    %1335 = vmatprep.subr.mxu0 %v287
    %1336 = vmatpush1.msra.mxu0 %v286
    %1337 = vmatprep.subr.mxu0 %v291
    %1338 = vmatpush1.msra.mxu0 %v290
    %1339 = vmatprep.subr.mxu0 %v295
    %1340 = vmatpush1.msra.mxu0 %v294
    %1341 = vmatprep.subr.mxu0 %v299
    %1342 = vmatpush1.msra.mxu0 %v298
    %1343 = vmatprep.subr.mxu0 %v303
    %1344 = vmatpush1.msra.mxu0 %v302
    %1345 = vmatprep.subr.mxu0 %v307
    %1346 = vmatpush1.msra.mxu0 %v306
    %1347 = vmatprep.subr.mxu0 %v311
    %1348 = vmatpush1.msra.mxu0 %v310
    %1349 = vmatprep.subr.mxu0 %v315
    %1350 = vmatpush1.msra.mxu0 %v314
    %1351 = vmatprep.subr.mxu0 %v319
    %1352 = vmatpush1.msra.mxu0 %v318
    %1353 = vmatprep.subr.mxu0 %v323
    %1354 = vmatpush1.msra.mxu0 %v322
    %1355 = vmatprep.subr.mxu0 %v327
    %1356 = vmatpush1.msra.mxu0 %v326
    %1357 = vmatprep.subr.mxu0 %v331
    %1358 = vmatpush1.msra.mxu0 %v330
    %1359 = vmatprep.subr.mxu0 %v335
    %1360 = vmatpush1.msra.mxu0 %v334
    %1361 = vmatprep.subr.mxu0 %v339
    %1362 = vmatpush1.msra.mxu0 %v338
    %1363 = vmatprep.subr.mxu0 0.0
    %1364 = vmatpush1.msra.mxu0 0.0
    %1365 = vmatprep.subr.mxu0 0.0
    %1366 = vmatpush1.msra.mxu0 0.0
    %1367 = vmatprep.subr.mxu0 0.0
    %1368 = vmatpush1.msra.mxu0 0.0
    %1369 = vmatprep.subr.mxu0 0.0
    %1370 = vmatpush1.msra.mxu0 0.0
    %1371 = vmatprep.subr.mxu0 0.0
    %1372 = vmatpush1.msra.mxu0 0.0
    %1373 = vmatprep.subr.mxu0 0.0
    %1374 = vmatpush1.msra.mxu0 0.0
    %1375 = vmatprep.subr.mxu0 0.0
    %1376 = vmatpush1.msra.mxu0 0.0
    %1377 = vmatprep.subr.mxu0 0.0
    %1378 = vmatpush1.msra.mxu0 0.0
    %1379 = vmatprep.subr.mxu0 0.0
    %1380 = vmatpush1.msra.mxu0 0.0
    %1381 = vmatprep.subr.mxu0 0.0
    %1382 = vmatpush1.msra.mxu0 0.0
    %1383 = vmatprep.subr.mxu0 0.0
    %1384 = vmatpush1.msra.mxu0 0.0
    %1385 = vmatprep.subr.mxu0 0.0
    %1386 = vmatpush1.msra.mxu0 0.0
    %1387 = vmatprep.subr.mxu0 0.0
    %1388 = vmatpush1.msra.mxu0 0.0
    %1389 = vmatprep.subr.mxu0 0.0
    %1390 = vmatpush1.msra.mxu0 0.0
    %1391 = vmatprep.subr.mxu0 0.0
    %1392 = vmatpush1.msra.mxu0 0.0
    %1393 = vmatprep.subr.mxu0 0.0
    %1394 = vmatpush1.msra.mxu0 0.0
    %1395 = vmatprep.mubr.f32.mxu0 0.0
    %1396 = vmatmul.mubr.f32.gmra.mrb[0].mxu0 %v1329
    %v1397 = vpop.f32.mrb[0].mxu0
    %v1398 = vadd.f32 0.0, %v1397
    %v1399 = vpop.f32.mrb[0].mxu0
    %v1400 = vadd.f32 0.0, %v1399
    %1401 = vdwg.mxu0
    %1402 = vmatprep.subr.mxu0 %v281
    %1403 = vmatpush1.msra.mxu0 %v280
    %1404 = vmatprep.subr.mxu0 %v285
    %1405 = vmatpush1.msra.mxu0 %v284
    %1406 = vmatprep.subr.mxu0 %v289
    %1407 = vmatpush1.msra.mxu0 %v288
    %1408 = vmatprep.subr.mxu0 %v293
    %1409 = vmatpush1.msra.mxu0 %v292
    %1410 = vmatprep.subr.mxu0 %v297
    %1411 = vmatpush1.msra.mxu0 %v296
    %1412 = vmatprep.subr.mxu0 %v301
    %1413 = vmatpush1.msra.mxu0 %v300
    %1414 = vmatprep.subr.mxu0 %v305
    %1415 = vmatpush1.msra.mxu0 %v304
    %1416 = vmatprep.subr.mxu0 %v309
    %1417 = vmatpush1.msra.mxu0 %v308
    %1418 = vmatprep.subr.mxu0 %v313
    %1419 = vmatpush1.msra.mxu0 %v312
    %1420 = vmatprep.subr.mxu0 %v317
    %1421 = vmatpush1.msra.mxu0 %v316
    %1422 = vmatprep.subr.mxu0 %v321
    %1423 = vmatpush1.msra.mxu0 %v320
    %1424 = vmatprep.subr.mxu0 %v325
    %1425 = vmatpush1.msra.mxu0 %v324
    %1426 = vmatprep.subr.mxu0 %v329
    %1427 = vmatpush1.msra.mxu0 %v328
    %1428 = vmatprep.subr.mxu0 %v333
    %1429 = vmatpush1.msra.mxu0 %v332
    %1430 = vmatprep.subr.mxu0 %v337
    %1431 = vmatpush1.msra.mxu0 %v336
    %1432 = vmatprep.subr.mxu0 %v341
    %1433 = vmatpush1.msra.mxu0 %v340
    %1434 = vmatprep.subr.mxu0 0.0
    %1435 = vmatpush1.msra.mxu0 0.0
    %1436 = vmatprep.subr.mxu0 0.0
    %1437 = vmatpush1.msra.mxu0 0.0
    %1438 = vmatprep.subr.mxu0 0.0
    %1439 = vmatpush1.msra.mxu0 0.0
    %1440 = vmatprep.subr.mxu0 0.0
    %1441 = vmatpush1.msra.mxu0 0.0
    %1442 = vmatprep.subr.mxu0 0.0
    %1443 = vmatpush1.msra.mxu0 0.0
    %1444 = vmatprep.subr.mxu0 0.0
    %1445 = vmatpush1.msra.mxu0 0.0
    %1446 = vmatprep.subr.mxu0 0.0
    %1447 = vmatpush1.msra.mxu0 0.0
    %1448 = vmatprep.subr.mxu0 0.0
    %1449 = vmatpush1.msra.mxu0 0.0
    %1450 = vmatprep.subr.mxu0 0.0
    %1451 = vmatpush1.msra.mxu0 0.0
    %1452 = vmatprep.subr.mxu0 0.0
    %1453 = vmatpush1.msra.mxu0 0.0
    %1454 = vmatprep.subr.mxu0 0.0
    %1455 = vmatpush1.msra.mxu0 0.0
    %1456 = vmatprep.subr.mxu0 0.0
    %1457 = vmatpush1.msra.mxu0 0.0
    %1458 = vmatprep.subr.mxu0 0.0
    %1459 = vmatpush1.msra.mxu0 0.0
    %1460 = vmatprep.subr.mxu0 0.0
    %1461 = vmatpush1.msra.mxu0 0.0
    %1462 = vmatprep.subr.mxu0 0.0
    %1463 = vmatpush1.msra.mxu0 0.0
    %1464 = vmatprep.subr.mxu0 0.0
    %1465 = vmatpush1.msra.mxu0 0.0
    %1466 = vmatprep.mubr.f32.mxu0 0.0
    %1467 = vmatmul.mubr.f32.gmra.mrb[0].mxu0 %v1329
    %v1468 = vpop.f32.mrb[0].mxu0
    %v1469 = vadd.f32 0.0, %v1468
    %v1470 = vpop.f32.mrb[0].mxu0
    %v1471 = vadd.f32 0.0, %v1470
    %1472 = vdwg.mxu0
    %v1477 = vrot.slane %v1398, 5
    %v1478 = vrot.slane %v1400, 5
    %v1479 = vrot.slane %v1469, 5
    %v1480 = vrot.slane %v1471, 5
    %v1485 = vadd.f32 %v203, %v1477
    %v1486 = vadd.f32 %v205, %v1478
    %v1487 = vadd.f32 %v274, %v1479
    %v1488 = vadd.f32 %v276, %v1480
    %v1489 = vtanh.pop %v1485
    %v1490 = vtanh.pop %v1486
    %v1491 = vtanh.pop %v1487
    %v1492 = vtanh.pop %v1488
    %v1493 = vmul.f32 %v1489, 0.5
    %v1494 = vmul.f32 %v1490, 0.5
    %v1495 = vmul.f32 %v1492, 0.5
    %v1496 = vadd.f32 %v1493, 0.5
    %v1497 = vadd.f32 %v1494, 0.5
    %v1498 = vadd.f32 %v1495, 0.5
    %v1500 = vrot.slane %v1163, 7
    %v1502 = vmul.f32 %v1497, %v1500
    %v1503 = vmul.f32 %v1496, %v1491
    %v1504 = vadd.f32 %v1502, %v1503
    %v1505 = vtanh.pop %v1504
    %v1506 = vmul.f32 %v1498, %v1505
    %v1508 = vrot.slane %v1326, 6
    %v1509 = vrot.slane %v1508, 2
    %1511 = vmatprep.subr.mxu0 %v343
    %1512 = vmatpush1.msra.mxu0 %v342
    %1513 = vmatprep.subr.mxu0 %v347
    %1514 = vmatpush1.msra.mxu0 %v346
    %1515 = vmatprep.subr.mxu0 %v351
    %1516 = vmatpush1.msra.mxu0 %v350
    %1517 = vmatprep.subr.mxu0 %v355
    %1518 = vmatpush1.msra.mxu0 %v354
    %1519 = vmatprep.subr.mxu0 %v359
    %1520 = vmatpush1.msra.mxu0 %v358
    %1521 = vmatprep.subr.mxu0 %v363
    %1522 = vmatpush1.msra.mxu0 %v362
    %1523 = vmatprep.subr.mxu0 %v367
    %1524 = vmatpush1.msra.mxu0 %v366
    %1525 = vmatprep.subr.mxu0 %v371
    %1526 = vmatpush1.msra.mxu0 %v370
    %1527 = vmatprep.subr.mxu0 %v375
    %1528 = vmatpush1.msra.mxu0 %v374
    %1529 = vmatprep.subr.mxu0 %v379
    %1530 = vmatpush1.msra.mxu0 %v378
    %1531 = vmatprep.subr.mxu0 %v383
    %1532 = vmatpush1.msra.mxu0 %v382
    %1533 = vmatprep.subr.mxu0 %v387
    %1534 = vmatpush1.msra.mxu0 %v386
    %1535 = vmatprep.subr.mxu0 %v391
    %1536 = vmatpush1.msra.mxu0 %v390
    %1537 = vmatprep.subr.mxu0 %v395
    %1538 = vmatpush1.msra.mxu0 %v394
    %1539 = vmatprep.subr.mxu0 %v399
    %1540 = vmatpush1.msra.mxu0 %v398
    %1541 = vmatprep.subr.mxu0 %v403
    %1542 = vmatpush1.msra.mxu0 %v402
    %1543 = vmatprep.subr.mxu0 %v407
    %1544 = vmatpush1.msra.mxu0 %v406
    %1545 = vmatprep.subr.mxu0 %v411
    %1546 = vmatpush1.msra.mxu0 %v410
    %1547 = vmatprep.subr.mxu0 %v415
    %1548 = vmatpush1.msra.mxu0 %v414
    %1549 = vmatprep.subr.mxu0 %v419
    %1550 = vmatpush1.msra.mxu0 %v418
    %1551 = vmatprep.subr.mxu0 %v423
    %1552 = vmatpush1.msra.mxu0 %v422
    %1553 = vmatprep.subr.mxu0 %v427
    %1554 = vmatpush1.msra.mxu0 %v426
    %1555 = vmatprep.subr.mxu0 %v431
    %1556 = vmatpush1.msra.mxu0 %v430
    %1557 = vmatprep.subr.mxu0 %v435
    %1558 = vmatpush1.msra.mxu0 %v434
    %1559 = vmatprep.subr.mxu0 %v439
    %1560 = vmatpush1.msra.mxu0 %v438
    %1561 = vmatprep.subr.mxu0 %v443
    %1562 = vmatpush1.msra.mxu0 %v442
    %1563 = vmatprep.subr.mxu0 %v447
    %1564 = vmatpush1.msra.mxu0 %v446
    %1565 = vmatprep.subr.mxu0 %v451
    %1566 = vmatpush1.msra.mxu0 %v450
    %1567 = vmatprep.subr.mxu0 %v455
    %1568 = vmatpush1.msra.mxu0 %v454
    %1569 = vmatprep.subr.mxu0 %v459
    %1570 = vmatpush1.msra.mxu0 %v458
    %1571 = vmatprep.subr.mxu0 %v463
    %1572 = vmatpush1.msra.mxu0 %v462
    %1573 = vmatprep.subr.mxu0 %v467
    %1574 = vmatpush1.msra.mxu0 %v466
    %1575 = vmatprep.mubr.f32.mxu0 %v1509
    %1576 = vmatmul.mubr.f32.gmra.mrb[0].mxu0 %v1329
    %v1577 = vpop.f32.mrb[0].mxu0
    %v1578 = vadd.f32 %v812, %v1577
    %v1579 = vpop.f32.mrb[0].mxu0
    %v1580 = vadd.f32 %v816, %v1579
    %1581 = vdwg.mxu0
    %1582 = vmatprep.subr.mxu0 %v345
    %1583 = vmatpush1.msra.mxu0 %v344
    %1584 = vmatprep.subr.mxu0 %v349
    %1585 = vmatpush1.msra.mxu0 %v348
    %1586 = vmatprep.subr.mxu0 %v353
    %1587 = vmatpush1.msra.mxu0 %v352
    %1588 = vmatprep.subr.mxu0 %v357
    %1589 = vmatpush1.msra.mxu0 %v356
    %1590 = vmatprep.subr.mxu0 %v361
    %1591 = vmatpush1.msra.mxu0 %v360
    %1592 = vmatprep.subr.mxu0 %v365
    %1593 = vmatpush1.msra.mxu0 %v364
    %1594 = vmatprep.subr.mxu0 %v369
    %1595 = vmatpush1.msra.mxu0 %v368
    %1596 = vmatprep.subr.mxu0 %v373
    %1597 = vmatpush1.msra.mxu0 %v372
    %1598 = vmatprep.subr.mxu0 %v377
    %1599 = vmatpush1.msra.mxu0 %v376
    %1600 = vmatprep.subr.mxu0 %v381
    %1601 = vmatpush1.msra.mxu0 %v380
    %1602 = vmatprep.subr.mxu0 %v385
    %1603 = vmatpush1.msra.mxu0 %v384
    %1604 = vmatprep.subr.mxu0 %v389
    %1605 = vmatpush1.msra.mxu0 %v388
    %1606 = vmatprep.subr.mxu0 %v393
    %1607 = vmatpush1.msra.mxu0 %v392
    %1608 = vmatprep.subr.mxu0 %v397
    %1609 = vmatpush1.msra.mxu0 %v396
    %1610 = vmatprep.subr.mxu0 %v401
    %1611 = vmatpush1.msra.mxu0 %v400
    %1612 = vmatprep.subr.mxu0 %v405
    %1613 = vmatpush1.msra.mxu0 %v404
    %1614 = vmatprep.subr.mxu0 %v409
    %1615 = vmatpush1.msra.mxu0 %v408
    %1616 = vmatprep.subr.mxu0 %v413
    %1617 = vmatpush1.msra.mxu0 %v412
    %1618 = vmatprep.subr.mxu0 %v417
    %1619 = vmatpush1.msra.mxu0 %v416
    %1620 = vmatprep.subr.mxu0 %v421
    %1621 = vmatpush1.msra.mxu0 %v420
    %1622 = vmatprep.subr.mxu0 %v425
    %1623 = vmatpush1.msra.mxu0 %v424
    %1624 = vmatprep.subr.mxu0 %v429
    %1625 = vmatpush1.msra.mxu0 %v428
    %1626 = vmatprep.subr.mxu0 %v433
    %1627 = vmatpush1.msra.mxu0 %v432
    %1628 = vmatprep.subr.mxu0 %v437
    %1629 = vmatpush1.msra.mxu0 %v436
    %1630 = vmatprep.subr.mxu0 %v441
    %1631 = vmatpush1.msra.mxu0 %v440
    %1632 = vmatprep.subr.mxu0 %v445
    %1633 = vmatpush1.msra.mxu0 %v444
    %1634 = vmatprep.subr.mxu0 %v449
    %1635 = vmatpush1.msra.mxu0 %v448
    %1636 = vmatprep.subr.mxu0 %v453
    %1637 = vmatpush1.msra.mxu0 %v452
    %1638 = vmatprep.subr.mxu0 %v457
    %1639 = vmatpush1.msra.mxu0 %v456
    %1640 = vmatprep.subr.mxu0 %v461
    %1641 = vmatpush1.msra.mxu0 %v460
    %1642 = vmatprep.subr.mxu0 %v465
    %1643 = vmatpush1.msra.mxu0 %v464
    %1644 = vmatprep.subr.mxu0 %v469
    %1645 = vmatpush1.msra.mxu0 %v468
    %1646 = vmatprep.mubr.f32.mxu0 %v1509
    %1647 = vmatmul.mubr.f32.gmra.mrb[0].mxu0 %v1329
    %v1648 = vpop.f32.mrb[0].mxu0
    %v1649 = vadd.f32 %v820, %v1648
    %v1650 = vpop.f32.mrb[0].mxu0
    %v1651 = vadd.f32 %v824, %v1650
    %1652 = vdwg.mxu0
    %v1653 = vtanh.pop %v1578
    %v1654 = vtanh.pop %v1580
    %v1655 = vtanh.pop %v1649
    %v1656 = vtanh.pop %v1651
    %v1657 = vmul.f32 %v1653, 0.5
    %v1658 = vmul.f32 %v1654, 0.5
    %v1659 = vmul.f32 %v1656, 0.5
    %v1660 = vadd.f32 %v1657, 0.5
    %v1661 = vadd.f32 %v1658, 0.5
    %v1662 = vadd.f32 %v1659, 0.5
    %v1663 = vmul.f32 %v1661, %v1324
    %v1664 = vmul.f32 %v1660, %v1655
    %v1665 = vadd.f32 %v1663, %v1664
    %v1666 = vtanh.pop %v1665
    %v1667 = vmul.f32 %v1662, %v1666
    %1668 = vst [vmem:[#allocation10 + $0x2] sm:$0x1] %v1667
    %v1670 = vrot.slane %v1506, 3
    %1672 = vmatprep.subr.mxu0 %v279
    %1673 = vmatpush1.msra.mxu0 %v278
    %1674 = vmatprep.subr.mxu0 %v283
    %1675 = vmatpush1.msra.mxu0 %v282
    %1676 = vmatprep.subr.mxu0 %v287
    %1677 = vmatpush1.msra.mxu0 %v286
    %1678 = vmatprep.subr.mxu0 %v291
    %1679 = vmatpush1.msra.mxu0 %v290
    %1680 = vmatprep.subr.mxu0 %v295
    %1681 = vmatpush1.msra.mxu0 %v294
    %1682 = vmatprep.subr.mxu0 %v299
    %1683 = vmatpush1.msra.mxu0 %v298
    %1684 = vmatprep.subr.mxu0 %v303
    %1685 = vmatpush1.msra.mxu0 %v302
    %1686 = vmatprep.subr.mxu0 %v307
    %1687 = vmatpush1.msra.mxu0 %v306
    %1688 = vmatprep.subr.mxu0 %v311
    %1689 = vmatpush1.msra.mxu0 %v310
    %1690 = vmatprep.subr.mxu0 %v315
    %1691 = vmatpush1.msra.mxu0 %v314
    %1692 = vmatprep.subr.mxu0 %v319
    %1693 = vmatpush1.msra.mxu0 %v318
    %1694 = vmatprep.subr.mxu0 %v323
    %1695 = vmatpush1.msra.mxu0 %v322
    %1696 = vmatprep.subr.mxu0 %v327
    %1697 = vmatpush1.msra.mxu0 %v326
    %1698 = vmatprep.subr.mxu0 %v331
    %1699 = vmatpush1.msra.mxu0 %v330
    %1700 = vmatprep.subr.mxu0 %v335
    %1701 = vmatpush1.msra.mxu0 %v334
    %1702 = vmatprep.subr.mxu0 %v339
    %1703 = vmatpush1.msra.mxu0 %v338
    %1704 = vmatprep.subr.mxu0 0.0
    %1705 = vmatpush1.msra.mxu0 0.0
    %1706 = vmatprep.subr.mxu0 0.0
    %1707 = vmatpush1.msra.mxu0 0.0
    %1708 = vmatprep.subr.mxu0 0.0
    %1709 = vmatpush1.msra.mxu0 0.0
    %1710 = vmatprep.subr.mxu0 0.0
    %1711 = vmatpush1.msra.mxu0 0.0
    %1712 = vmatprep.subr.mxu0 0.0
    %1713 = vmatpush1.msra.mxu0 0.0
    %1714 = vmatprep.subr.mxu0 0.0
    %1715 = vmatpush1.msra.mxu0 0.0
    %1716 = vmatprep.subr.mxu0 0.0
    %1717 = vmatpush1.msra.mxu0 0.0
    %1718 = vmatprep.subr.mxu0 0.0
    %1719 = vmatpush1.msra.mxu0 0.0
    %1720 = vmatprep.subr.mxu0 0.0
    %1721 = vmatpush1.msra.mxu0 0.0
    %1722 = vmatprep.subr.mxu0 0.0
    %1723 = vmatpush1.msra.mxu0 0.0
    %1724 = vmatprep.subr.mxu0 0.0
    %1725 = vmatpush1.msra.mxu0 0.0
    %1726 = vmatprep.subr.mxu0 0.0
    %1727 = vmatpush1.msra.mxu0 0.0
    %1728 = vmatprep.subr.mxu0 0.0
    %1729 = vmatpush1.msra.mxu0 0.0
    %1730 = vmatprep.subr.mxu0 0.0
    %1731 = vmatpush1.msra.mxu0 0.0
    %1732 = vmatprep.subr.mxu0 0.0
    %1733 = vmatpush1.msra.mxu0 0.0
    %1734 = vmatprep.subr.mxu0 0.0
    %1735 = vmatpush1.msra.mxu0 0.0
    %1736 = vmatprep.mubr.f32.mxu0 0.0
    %1737 = vmatmul.mubr.f32.gmra.mrb[0].mxu0 %v1670
    %v1738 = vpop.f32.mrb[0].mxu0
    %v1739 = vadd.f32 0.0, %v1738
    %v1740 = vpop.f32.mrb[0].mxu0
    %v1741 = vadd.f32 0.0, %v1740
    %1742 = vdwg.mxu0
    %1743 = vmatprep.subr.mxu0 %v281
    %1744 = vmatpush1.msra.mxu0 %v280
    %1745 = vmatprep.subr.mxu0 %v285
    %1746 = vmatpush1.msra.mxu0 %v284
    %1747 = vmatprep.subr.mxu0 %v289
    %1748 = vmatpush1.msra.mxu0 %v288
    %1749 = vmatprep.subr.mxu0 %v293
    %1750 = vmatpush1.msra.mxu0 %v292
    %1751 = vmatprep.subr.mxu0 %v297
    %1752 = vmatpush1.msra.mxu0 %v296
    %1753 = vmatprep.subr.mxu0 %v301
    %1754 = vmatpush1.msra.mxu0 %v300
    %1755 = vmatprep.subr.mxu0 %v305
    %1756 = vmatpush1.msra.mxu0 %v304
    %1757 = vmatprep.subr.mxu0 %v309
    %1758 = vmatpush1.msra.mxu0 %v308
    %1759 = vmatprep.subr.mxu0 %v313
    %1760 = vmatpush1.msra.mxu0 %v312
    %1761 = vmatprep.subr.mxu0 %v317
    %1762 = vmatpush1.msra.mxu0 %v316
    %1763 = vmatprep.subr.mxu0 %v321
    %1764 = vmatpush1.msra.mxu0 %v320
    %1765 = vmatprep.subr.mxu0 %v325
    %1766 = vmatpush1.msra.mxu0 %v324
    %1767 = vmatprep.subr.mxu0 %v329
    %1768 = vmatpush1.msra.mxu0 %v328
    %1769 = vmatprep.subr.mxu0 %v333
    %1770 = vmatpush1.msra.mxu0 %v332
    %1771 = vmatprep.subr.mxu0 %v337
    %1772 = vmatpush1.msra.mxu0 %v336
    %1773 = vmatprep.subr.mxu0 %v341
    %1774 = vmatpush1.msra.mxu0 %v340
    %1775 = vmatprep.subr.mxu0 0.0
    %1776 = vmatpush1.msra.mxu0 0.0
    %1777 = vmatprep.subr.mxu0 0.0
    %1778 = vmatpush1.msra.mxu0 0.0
    %1779 = vmatprep.subr.mxu0 0.0
    %1780 = vmatpush1.msra.mxu0 0.0
    %1781 = vmatprep.subr.mxu0 0.0
    %1782 = vmatpush1.msra.mxu0 0.0
    %1783 = vmatprep.subr.mxu0 0.0
    %1784 = vmatpush1.msra.mxu0 0.0
    %1785 = vmatprep.subr.mxu0 0.0
    %1786 = vmatpush1.msra.mxu0 0.0
    %1787 = vmatprep.subr.mxu0 0.0
    %1788 = vmatpush1.msra.mxu0 0.0
    %1789 = vmatprep.subr.mxu0 0.0
    %1790 = vmatpush1.msra.mxu0 0.0
    %1791 = vmatprep.subr.mxu0 0.0
    %1792 = vmatpush1.msra.mxu0 0.0
    %1793 = vmatprep.subr.mxu0 0.0
    %1794 = vmatpush1.msra.mxu0 0.0
    %1795 = vmatprep.subr.mxu0 0.0
    %1796 = vmatpush1.msra.mxu0 0.0
    %1797 = vmatprep.subr.mxu0 0.0
    %1798 = vmatpush1.msra.mxu0 0.0
    %1799 = vmatprep.subr.mxu0 0.0
    %1800 = vmatpush1.msra.mxu0 0.0
    %1801 = vmatprep.subr.mxu0 0.0
    %1802 = vmatpush1.msra.mxu0 0.0
    %1803 = vmatprep.subr.mxu0 0.0
    %1804 = vmatpush1.msra.mxu0 0.0
    %1805 = vmatprep.subr.mxu0 0.0
    %1806 = vmatpush1.msra.mxu0 0.0
    %1807 = vmatprep.mubr.f32.mxu0 0.0
    %1808 = vmatmul.mubr.f32.gmra.mrb[0].mxu0 %v1670
    %v1809 = vpop.f32.mrb[0].mxu0
    %v1810 = vadd.f32 0.0, %v1809
    %v1811 = vpop.f32.mrb[0].mxu0
    %v1812 = vadd.f32 0.0, %v1811
    %1813 = vdwg.mxu0
    %v1818 = vrot.slane %v1739, 4
    %v1819 = vrot.slane %v1741, 4
    %v1820 = vrot.slane %v1810, 4
    %v1821 = vrot.slane %v1812, 4
    %v1826 = vadd.f32 %v203, %v1818
    %v1827 = vadd.f32 %v205, %v1819
    %v1828 = vadd.f32 %v274, %v1820
    %v1829 = vadd.f32 %v276, %v1821
    %v1830 = vtanh.pop %v1826
    %v1831 = vtanh.pop %v1827
    %v1832 = vtanh.pop %v1828
    %v1833 = vtanh.pop %v1829
    %v1834 = vmul.f32 %v1830, 0.5
    %v1835 = vmul.f32 %v1831, 0.5
    %v1836 = vmul.f32 %v1833, 0.5
    %v1837 = vadd.f32 %v1834, 0.5
    %v1838 = vadd.f32 %v1835, 0.5
    %v1839 = vadd.f32 %v1836, 0.5
    %v1841 = vrot.slane %v1504, 7
    %v1843 = vmul.f32 %v1838, %v1841
    %v1844 = vmul.f32 %v1837, %v1832
    %v1845 = vadd.f32 %v1843, %v1844
    %v1846 = vtanh.pop %v1845
    %v1847 = vmul.f32 %v1839, %v1846
    %v1849 = vrot.slane %v1667, 5
    %v1850 = vrot.slane %v1849, 3
    %1852 = vmatprep.subr.mxu0 %v343
    %1853 = vmatpush1.msra.mxu0 %v342
    %1854 = vmatprep.subr.mxu0 %v347
    %1855 = vmatpush1.msra.mxu0 %v346
    %1856 = vmatprep.subr.mxu0 %v351
    %1857 = vmatpush1.msra.mxu0 %v350
    %1858 = vmatprep.subr.mxu0 %v355
    %1859 = vmatpush1.msra.mxu0 %v354
    %1860 = vmatprep.subr.mxu0 %v359
    %1861 = vmatpush1.msra.mxu0 %v358
    %1862 = vmatprep.subr.mxu0 %v363
    %1863 = vmatpush1.msra.mxu0 %v362
    %1864 = vmatprep.subr.mxu0 %v367
    %1865 = vmatpush1.msra.mxu0 %v366
    %1866 = vmatprep.subr.mxu0 %v371
    %1867 = vmatpush1.msra.mxu0 %v370
    %1868 = vmatprep.subr.mxu0 %v375
    %1869 = vmatpush1.msra.mxu0 %v374
    %1870 = vmatprep.subr.mxu0 %v379
    %1871 = vmatpush1.msra.mxu0 %v378
    %1872 = vmatprep.subr.mxu0 %v383
    %1873 = vmatpush1.msra.mxu0 %v382
    %1874 = vmatprep.subr.mxu0 %v387
    %1875 = vmatpush1.msra.mxu0 %v386
    %1876 = vmatprep.subr.mxu0 %v391
    %1877 = vmatpush1.msra.mxu0 %v390
    %1878 = vmatprep.subr.mxu0 %v395
    %1879 = vmatpush1.msra.mxu0 %v394
    %1880 = vmatprep.subr.mxu0 %v399
    %1881 = vmatpush1.msra.mxu0 %v398
    %1882 = vmatprep.subr.mxu0 %v403
    %1883 = vmatpush1.msra.mxu0 %v402
    %1884 = vmatprep.subr.mxu0 %v407
    %1885 = vmatpush1.msra.mxu0 %v406
    %1886 = vmatprep.subr.mxu0 %v411
    %1887 = vmatpush1.msra.mxu0 %v410
    %1888 = vmatprep.subr.mxu0 %v415
    %1889 = vmatpush1.msra.mxu0 %v414
    %1890 = vmatprep.subr.mxu0 %v419
    %1891 = vmatpush1.msra.mxu0 %v418
    %1892 = vmatprep.subr.mxu0 %v423
    %1893 = vmatpush1.msra.mxu0 %v422
    %1894 = vmatprep.subr.mxu0 %v427
    %1895 = vmatpush1.msra.mxu0 %v426
    %1896 = vmatprep.subr.mxu0 %v431
    %1897 = vmatpush1.msra.mxu0 %v430
    %1898 = vmatprep.subr.mxu0 %v435
    %1899 = vmatpush1.msra.mxu0 %v434
    %1900 = vmatprep.subr.mxu0 %v439
    %1901 = vmatpush1.msra.mxu0 %v438
    %1902 = vmatprep.subr.mxu0 %v443
    %1903 = vmatpush1.msra.mxu0 %v442
    %1904 = vmatprep.subr.mxu0 %v447
    %1905 = vmatpush1.msra.mxu0 %v446
    %1906 = vmatprep.subr.mxu0 %v451
    %1907 = vmatpush1.msra.mxu0 %v450
    %1908 = vmatprep.subr.mxu0 %v455
    %1909 = vmatpush1.msra.mxu0 %v454
    %1910 = vmatprep.subr.mxu0 %v459
    %1911 = vmatpush1.msra.mxu0 %v458
    %1912 = vmatprep.subr.mxu0 %v463
    %1913 = vmatpush1.msra.mxu0 %v462
    %1914 = vmatprep.subr.mxu0 %v467
    %1915 = vmatpush1.msra.mxu0 %v466
    %1916 = vmatprep.mubr.f32.mxu0 %v1850
    %1917 = vmatmul.mubr.f32.gmra.mrb[0].mxu0 %v1670
    %v1918 = vpop.f32.mrb[0].mxu0
    %v1919 = vadd.f32 %v812, %v1918
    %v1920 = vpop.f32.mrb[0].mxu0
    %v1921 = vadd.f32 %v816, %v1920
    %1922 = vdwg.mxu0
    %1923 = vmatprep.subr.mxu0 %v345
    %1924 = vmatpush1.msra.mxu0 %v344
    %1925 = vmatprep.subr.mxu0 %v349
    %1926 = vmatpush1.msra.mxu0 %v348
    %1927 = vmatprep.subr.mxu0 %v353
    %1928 = vmatpush1.msra.mxu0 %v352
    %1929 = vmatprep.subr.mxu0 %v357
    %1930 = vmatpush1.msra.mxu0 %v356
    %1931 = vmatprep.subr.mxu0 %v361
    %1932 = vmatpush1.msra.mxu0 %v360
    %1933 = vmatprep.subr.mxu0 %v365
    %1934 = vmatpush1.msra.mxu0 %v364
    %1935 = vmatprep.subr.mxu0 %v369
    %1936 = vmatpush1.msra.mxu0 %v368
    %1937 = vmatprep.subr.mxu0 %v373
    %1938 = vmatpush1.msra.mxu0 %v372
    %1939 = vmatprep.subr.mxu0 %v377
    %1940 = vmatpush1.msra.mxu0 %v376
    %1941 = vmatprep.subr.mxu0 %v381
    %1942 = vmatpush1.msra.mxu0 %v380
    %1943 = vmatprep.subr.mxu0 %v385
    %1944 = vmatpush1.msra.mxu0 %v384
    %1945 = vmatprep.subr.mxu0 %v389
    %1946 = vmatpush1.msra.mxu0 %v388
    %1947 = vmatprep.subr.mxu0 %v393
    %1948 = vmatpush1.msra.mxu0 %v392
    %1949 = vmatprep.subr.mxu0 %v397
    %1950 = vmatpush1.msra.mxu0 %v396
    %1951 = vmatprep.subr.mxu0 %v401
    %1952 = vmatpush1.msra.mxu0 %v400
    %1953 = vmatprep.subr.mxu0 %v405
    %1954 = vmatpush1.msra.mxu0 %v404
    %1955 = vmatprep.subr.mxu0 %v409
    %1956 = vmatpush1.msra.mxu0 %v408
    %1957 = vmatprep.subr.mxu0 %v413
    %1958 = vmatpush1.msra.mxu0 %v412
    %1959 = vmatprep.subr.mxu0 %v417
    %1960 = vmatpush1.msra.mxu0 %v416
    %1961 = vmatprep.subr.mxu0 %v421
    %1962 = vmatpush1.msra.mxu0 %v420
    %1963 = vmatprep.subr.mxu0 %v425
    %1964 = vmatpush1.msra.mxu0 %v424
    %1965 = vmatprep.subr.mxu0 %v429
    %1966 = vmatpush1.msra.mxu0 %v428
    %1967 = vmatprep.subr.mxu0 %v433
    %1968 = vmatpush1.msra.mxu0 %v432
    %1969 = vmatprep.subr.mxu0 %v437
    %1970 = vmatpush1.msra.mxu0 %v436
    %1971 = vmatprep.subr.mxu0 %v441
    %1972 = vmatpush1.msra.mxu0 %v440
    %1973 = vmatprep.subr.mxu0 %v445
    %1974 = vmatpush1.msra.mxu0 %v444
    %1975 = vmatprep.subr.mxu0 %v449
    %1976 = vmatpush1.msra.mxu0 %v448
    %1977 = vmatprep.subr.mxu0 %v453
    %1978 = vmatpush1.msra.mxu0 %v452
    %1979 = vmatprep.subr.mxu0 %v457
    %1980 = vmatpush1.msra.mxu0 %v456
    %1981 = vmatprep.subr.mxu0 %v461
    %1982 = vmatpush1.msra.mxu0 %v460
    %1983 = vmatprep.subr.mxu0 %v465
    %1984 = vmatpush1.msra.mxu0 %v464
    %1985 = vmatprep.subr.mxu0 %v469
    %1986 = vmatpush1.msra.mxu0 %v468
    %1987 = vmatprep.mubr.f32.mxu0 %v1850
    %1988 = vmatmul.mubr.f32.gmra.mrb[0].mxu0 %v1670
    %v1989 = vpop.f32.mrb[0].mxu0
    %v1990 = vadd.f32 %v820, %v1989
    %v1991 = vpop.f32.mrb[0].mxu0
    %v1992 = vadd.f32 %v824, %v1991
    %1993 = vdwg.mxu0
    %v1994 = vtanh.pop %v1919
    %v1995 = vtanh.pop %v1921
    %v1996 = vtanh.pop %v1990
    %v1997 = vtanh.pop %v1992
    %v1998 = vmul.f32 %v1994, 0.5
    %v1999 = vmul.f32 %v1995, 0.5
    %v2000 = vmul.f32 %v1997, 0.5
    %v2001 = vadd.f32 %v1998, 0.5
    %v2002 = vadd.f32 %v1999, 0.5
    %v2003 = vadd.f32 %v2000, 0.5
    %v2004 = vmul.f32 %v2002, %v1665
    %v2005 = vmul.f32 %v2001, %v1996
    %v2006 = vadd.f32 %v2004, %v2005
    %v2007 = vtanh.pop %v2006
    %v2008 = vmul.f32 %v2003, %v2007
    %2009 = vst [vmem:[#allocation10 + $0x3] sm:$0x1] %v2008
    %v2011 = vrot.slane %v1847, 4
    %2013 = vmatprep.subr.mxu0 %v279
    %2014 = vmatpush1.msra.mxu0 %v278
    %2015 = vmatprep.subr.mxu0 %v283
    %2016 = vmatpush1.msra.mxu0 %v282
    %2017 = vmatprep.subr.mxu0 %v287
    %2018 = vmatpush1.msra.mxu0 %v286
    %2019 = vmatprep.subr.mxu0 %v291
    %2020 = vmatpush1.msra.mxu0 %v290
    %2021 = vmatprep.subr.mxu0 %v295
    %2022 = vmatpush1.msra.mxu0 %v294
    %2023 = vmatprep.subr.mxu0 %v299
    %2024 = vmatpush1.msra.mxu0 %v298
    %2025 = vmatprep.subr.mxu0 %v303
    %2026 = vmatpush1.msra.mxu0 %v302
    %2027 = vmatprep.subr.mxu0 %v307
    %2028 = vmatpush1.msra.mxu0 %v306
    %2029 = vmatprep.subr.mxu0 %v311
    %2030 = vmatpush1.msra.mxu0 %v310
    %2031 = vmatprep.subr.mxu0 %v315
    %2032 = vmatpush1.msra.mxu0 %v314
    %2033 = vmatprep.subr.mxu0 %v319
    %2034 = vmatpush1.msra.mxu0 %v318
    %2035 = vmatprep.subr.mxu0 %v323
    %2036 = vmatpush1.msra.mxu0 %v322
    %2037 = vmatprep.subr.mxu0 %v327
    %2038 = vmatpush1.msra.mxu0 %v326
    %2039 = vmatprep.subr.mxu0 %v331
    %2040 = vmatpush1.msra.mxu0 %v330
    %2041 = vmatprep.subr.mxu0 %v335
    %2042 = vmatpush1.msra.mxu0 %v334
    %2043 = vmatprep.subr.mxu0 %v339
    %2044 = vmatpush1.msra.mxu0 %v338
    %2045 = vmatprep.subr.mxu0 0.0
    %2046 = vmatpush1.msra.mxu0 0.0
    %2047 = vmatprep.subr.mxu0 0.0
    %2048 = vmatpush1.msra.mxu0 0.0
    %2049 = vmatprep.subr.mxu0 0.0
    %2050 = vmatpush1.msra.mxu0 0.0
    %2051 = vmatprep.subr.mxu0 0.0
    %2052 = vmatpush1.msra.mxu0 0.0
    %2053 = vmatprep.subr.mxu0 0.0
    %2054 = vmatpush1.msra.mxu0 0.0
    %2055 = vmatprep.subr.mxu0 0.0
    %2056 = vmatpush1.msra.mxu0 0.0
    %2057 = vmatprep.subr.mxu0 0.0
    %2058 = vmatpush1.msra.mxu0 0.0
    %2059 = vmatprep.subr.mxu0 0.0
    %2060 = vmatpush1.msra.mxu0 0.0
    %2061 = vmatprep.subr.mxu0 0.0
    %2062 = vmatpush1.msra.mxu0 0.0
    %2063 = vmatprep.subr.mxu0 0.0
    %2064 = vmatpush1.msra.mxu0 0.0
    %2065 = vmatprep.subr.mxu0 0.0
    %2066 = vmatpush1.msra.mxu0 0.0
    %2067 = vmatprep.subr.mxu0 0.0
    %2068 = vmatpush1.msra.mxu0 0.0
    %2069 = vmatprep.subr.mxu0 0.0
    %2070 = vmatpush1.msra.mxu0 0.0
    %2071 = vmatprep.subr.mxu0 0.0
    %2072 = vmatpush1.msra.mxu0 0.0
    %2073 = vmatprep.subr.mxu0 0.0
    %2074 = vmatpush1.msra.mxu0 0.0
    %2075 = vmatprep.subr.mxu0 0.0
    %2076 = vmatpush1.msra.mxu0 0.0
    %2077 = vmatprep.mubr.f32.mxu0 0.0
    %2078 = vmatmul.mubr.f32.gmra.mrb[0].mxu0 %v2011
    %v2079 = vpop.f32.mrb[0].mxu0
    %v2080 = vadd.f32 0.0, %v2079
    %v2081 = vpop.f32.mrb[0].mxu0
    %v2082 = vadd.f32 0.0, %v2081
    %2083 = vdwg.mxu0
    %2084 = vmatprep.subr.mxu0 %v281
    %2085 = vmatpush1.msra.mxu0 %v280
    %2086 = vmatprep.subr.mxu0 %v285
    %2087 = vmatpush1.msra.mxu0 %v284
    %2088 = vmatprep.subr.mxu0 %v289
    %2089 = vmatpush1.msra.mxu0 %v288
    %2090 = vmatprep.subr.mxu0 %v293
    %2091 = vmatpush1.msra.mxu0 %v292
    %2092 = vmatprep.subr.mxu0 %v297
    %2093 = vmatpush1.msra.mxu0 %v296
    %2094 = vmatprep.subr.mxu0 %v301
    %2095 = vmatpush1.msra.mxu0 %v300
    %2096 = vmatprep.subr.mxu0 %v305
    %2097 = vmatpush1.msra.mxu0 %v304
    %2098 = vmatprep.subr.mxu0 %v309
    %2099 = vmatpush1.msra.mxu0 %v308
    %2100 = vmatprep.subr.mxu0 %v313
    %2101 = vmatpush1.msra.mxu0 %v312
    %2102 = vmatprep.subr.mxu0 %v317
    %2103 = vmatpush1.msra.mxu0 %v316
    %2104 = vmatprep.subr.mxu0 %v321
    %2105 = vmatpush1.msra.mxu0 %v320
    %2106 = vmatprep.subr.mxu0 %v325
    %2107 = vmatpush1.msra.mxu0 %v324
    %2108 = vmatprep.subr.mxu0 %v329
    %2109 = vmatpush1.msra.mxu0 %v328
    %2110 = vmatprep.subr.mxu0 %v333
    %2111 = vmatpush1.msra.mxu0 %v332
    %2112 = vmatprep.subr.mxu0 %v337
    %2113 = vmatpush1.msra.mxu0 %v336
    %2114 = vmatprep.subr.mxu0 %v341
    %2115 = vmatpush1.msra.mxu0 %v340
    %2116 = vmatprep.subr.mxu0 0.0
    %2117 = vmatpush1.msra.mxu0 0.0
    %2118 = vmatprep.subr.mxu0 0.0
    %2119 = vmatpush1.msra.mxu0 0.0
    %2120 = vmatprep.subr.mxu0 0.0
    %2121 = vmatpush1.msra.mxu0 0.0
    %2122 = vmatprep.subr.mxu0 0.0
    %2123 = vmatpush1.msra.mxu0 0.0
    %2124 = vmatprep.subr.mxu0 0.0
    %2125 = vmatpush1.msra.mxu0 0.0
    %2126 = vmatprep.subr.mxu0 0.0
    %2127 = vmatpush1.msra.mxu0 0.0
    %2128 = vmatprep.subr.mxu0 0.0
    %2129 = vmatpush1.msra.mxu0 0.0
    %2130 = vmatprep.subr.mxu0 0.0
    %2131 = vmatpush1.msra.mxu0 0.0
    %2132 = vmatprep.subr.mxu0 0.0
    %2133 = vmatpush1.msra.mxu0 0.0
    %2134 = vmatprep.subr.mxu0 0.0
    %2135 = vmatpush1.msra.mxu0 0.0
    %2136 = vmatprep.subr.mxu0 0.0
    %2137 = vmatpush1.msra.mxu0 0.0
    %2138 = vmatprep.subr.mxu0 0.0
    %2139 = vmatpush1.msra.mxu0 0.0
    %2140 = vmatprep.subr.mxu0 0.0
    %2141 = vmatpush1.msra.mxu0 0.0
    %2142 = vmatprep.subr.mxu0 0.0
    %2143 = vmatpush1.msra.mxu0 0.0
    %2144 = vmatprep.subr.mxu0 0.0
    %2145 = vmatpush1.msra.mxu0 0.0
    %2146 = vmatprep.subr.mxu0 0.0
    %2147 = vmatpush1.msra.mxu0 0.0
    %2148 = vmatprep.mubr.f32.mxu0 0.0
    %2149 = vmatmul.mubr.f32.gmra.mrb[0].mxu0 %v2011
    %v2150 = vpop.f32.mrb[0].mxu0
    %v2151 = vadd.f32 0.0, %v2150
    %v2152 = vpop.f32.mrb[0].mxu0
    %v2153 = vadd.f32 0.0, %v2152
    %2154 = vdwg.mxu0
    %v2159 = vrot.slane %v2080, 3
    %v2160 = vrot.slane %v2082, 3
    %v2161 = vrot.slane %v2151, 3
    %v2162 = vrot.slane %v2153, 3
    %v2167 = vadd.f32 %v203, %v2159
    %v2168 = vadd.f32 %v205, %v2160
    %v2169 = vadd.f32 %v274, %v2161
    %v2170 = vadd.f32 %v276, %v2162
    %v2171 = vtanh.pop %v2167
    %v2172 = vtanh.pop %v2168
    %v2173 = vtanh.pop %v2169
    %v2174 = vtanh.pop %v2170
    %v2175 = vmul.f32 %v2171, 0.5
    %v2176 = vmul.f32 %v2172, 0.5
    %v2177 = vmul.f32 %v2174, 0.5
    %v2178 = vadd.f32 %v2175, 0.5
    %v2179 = vadd.f32 %v2176, 0.5
    %v2180 = vadd.f32 %v2177, 0.5
    %v2182 = vrot.slane %v1845, 7
    %v2184 = vmul.f32 %v2179, %v2182
    %v2185 = vmul.f32 %v2178, %v2173
    %v2186 = vadd.f32 %v2184, %v2185
    %v2187 = vtanh.pop %v2186
    %v2188 = vmul.f32 %v2180, %v2187
    %v2190 = vrot.slane %v2008, 4
    %v2191 = vrot.slane %v2190, 4
    %2193 = vmatprep.subr.mxu0 %v343
    %2194 = vmatpush1.msra.mxu0 %v342
    %2195 = vmatprep.subr.mxu0 %v347
    %2196 = vmatpush1.msra.mxu0 %v346
    %2197 = vmatprep.subr.mxu0 %v351
    %2198 = vmatpush1.msra.mxu0 %v350
    %2199 = vmatprep.subr.mxu0 %v355
    %2200 = vmatpush1.msra.mxu0 %v354
    %2201 = vmatprep.subr.mxu0 %v359
    %2202 = vmatpush1.msra.mxu0 %v358
    %2203 = vmatprep.subr.mxu0 %v363
    %2204 = vmatpush1.msra.mxu0 %v362
    %2205 = vmatprep.subr.mxu0 %v367
    %2206 = vmatpush1.msra.mxu0 %v366
    %2207 = vmatprep.subr.mxu0 %v371
    %2208 = vmatpush1.msra.mxu0 %v370
    %2209 = vmatprep.subr.mxu0 %v375
    %2210 = vmatpush1.msra.mxu0 %v374
    %2211 = vmatprep.subr.mxu0 %v379
    %2212 = vmatpush1.msra.mxu0 %v378
    %2213 = vmatprep.subr.mxu0 %v383
    %2214 = vmatpush1.msra.mxu0 %v382
    %2215 = vmatprep.subr.mxu0 %v387
    %2216 = vmatpush1.msra.mxu0 %v386
    %2217 = vmatprep.subr.mxu0 %v391
    %2218 = vmatpush1.msra.mxu0 %v390
    %2219 = vmatprep.subr.mxu0 %v395
    %2220 = vmatpush1.msra.mxu0 %v394
    %2221 = vmatprep.subr.mxu0 %v399
    %2222 = vmatpush1.msra.mxu0 %v398
    %2223 = vmatprep.subr.mxu0 %v403
    %2224 = vmatpush1.msra.mxu0 %v402
    %2225 = vmatprep.subr.mxu0 %v407
    %2226 = vmatpush1.msra.mxu0 %v406
    %2227 = vmatprep.subr.mxu0 %v411
    %2228 = vmatpush1.msra.mxu0 %v410
    %2229 = vmatprep.subr.mxu0 %v415
    %2230 = vmatpush1.msra.mxu0 %v414
    %2231 = vmatprep.subr.mxu0 %v419
    %2232 = vmatpush1.msra.mxu0 %v418
    %2233 = vmatprep.subr.mxu0 %v423
    %2234 = vmatpush1.msra.mxu0 %v422
    %2235 = vmatprep.subr.mxu0 %v427
    %2236 = vmatpush1.msra.mxu0 %v426
    %2237 = vmatprep.subr.mxu0 %v431
    %2238 = vmatpush1.msra.mxu0 %v430
    %2239 = vmatprep.subr.mxu0 %v435
    %2240 = vmatpush1.msra.mxu0 %v434
    %2241 = vmatprep.subr.mxu0 %v439
    %2242 = vmatpush1.msra.mxu0 %v438
    %2243 = vmatprep.subr.mxu0 %v443
    %2244 = vmatpush1.msra.mxu0 %v442
    %2245 = vmatprep.subr.mxu0 %v447
    %2246 = vmatpush1.msra.mxu0 %v446
    %2247 = vmatprep.subr.mxu0 %v451
    %2248 = vmatpush1.msra.mxu0 %v450
    %2249 = vmatprep.subr.mxu0 %v455
    %2250 = vmatpush1.msra.mxu0 %v454
    %2251 = vmatprep.subr.mxu0 %v459
    %2252 = vmatpush1.msra.mxu0 %v458
    %2253 = vmatprep.subr.mxu0 %v463
    %2254 = vmatpush1.msra.mxu0 %v462
    %2255 = vmatprep.subr.mxu0 %v467
    %2256 = vmatpush1.msra.mxu0 %v466
    %2257 = vmatprep.mubr.f32.mxu0 %v2191
    %2258 = vmatmul.mubr.f32.gmra.mrb[0].mxu0 %v2011
    %v2259 = vpop.f32.mrb[0].mxu0
    %v2260 = vadd.f32 %v812, %v2259
    %v2261 = vpop.f32.mrb[0].mxu0
    %v2262 = vadd.f32 %v816, %v2261
    %2263 = vdwg.mxu0
    %2264 = vmatprep.subr.mxu0 %v345
    %2265 = vmatpush1.msra.mxu0 %v344
    %2266 = vmatprep.subr.mxu0 %v349
    %2267 = vmatpush1.msra.mxu0 %v348
    %2268 = vmatprep.subr.mxu0 %v353
    %2269 = vmatpush1.msra.mxu0 %v352
    %2270 = vmatprep.subr.mxu0 %v357
    %2271 = vmatpush1.msra.mxu0 %v356
    %2272 = vmatprep.subr.mxu0 %v361
    %2273 = vmatpush1.msra.mxu0 %v360
    %2274 = vmatprep.subr.mxu0 %v365
    %2275 = vmatpush1.msra.mxu0 %v364
    %2276 = vmatprep.subr.mxu0 %v369
    %2277 = vmatpush1.msra.mxu0 %v368
    %2278 = vmatprep.subr.mxu0 %v373
    %2279 = vmatpush1.msra.mxu0 %v372
    %2280 = vmatprep.subr.mxu0 %v377
    %2281 = vmatpush1.msra.mxu0 %v376
    %2282 = vmatprep.subr.mxu0 %v381
    %2283 = vmatpush1.msra.mxu0 %v380
    %2284 = vmatprep.subr.mxu0 %v385
    %2285 = vmatpush1.msra.mxu0 %v384
    %2286 = vmatprep.subr.mxu0 %v389
    %2287 = vmatpush1.msra.mxu0 %v388
    %2288 = vmatprep.subr.mxu0 %v393
    %2289 = vmatpush1.msra.mxu0 %v392
    %2290 = vmatprep.subr.mxu0 %v397
    %2291 = vmatpush1.msra.mxu0 %v396
    %2292 = vmatprep.subr.mxu0 %v401
    %2293 = vmatpush1.msra.mxu0 %v400
    %2294 = vmatprep.subr.mxu0 %v405
    %2295 = vmatpush1.msra.mxu0 %v404
    %2296 = vmatprep.subr.mxu0 %v409
    %2297 = vmatpush1.msra.mxu0 %v408
    %2298 = vmatprep.subr.mxu0 %v413
    %2299 = vmatpush1.msra.mxu0 %v412
    %2300 = vmatprep.subr.mxu0 %v417
    %2301 = vmatpush1.msra.mxu0 %v416
    %2302 = vmatprep.subr.mxu0 %v421
    %2303 = vmatpush1.msra.mxu0 %v420
    %2304 = vmatprep.subr.mxu0 %v425
    %2305 = vmatpush1.msra.mxu0 %v424
    %2306 = vmatprep.subr.mxu0 %v429
    %2307 = vmatpush1.msra.mxu0 %v428
    %2308 = vmatprep.subr.mxu0 %v433
    %2309 = vmatpush1.msra.mxu0 %v432
    %2310 = vmatprep.subr.mxu0 %v437
    %2311 = vmatpush1.msra.mxu0 %v436
    %2312 = vmatprep.subr.mxu0 %v441
    %2313 = vmatpush1.msra.mxu0 %v440
    %2314 = vmatprep.subr.mxu0 %v445
    %2315 = vmatpush1.msra.mxu0 %v444
    %2316 = vmatprep.subr.mxu0 %v449
    %2317 = vmatpush1.msra.mxu0 %v448
    %2318 = vmatprep.subr.mxu0 %v453
    %2319 = vmatpush1.msra.mxu0 %v452
    %2320 = vmatprep.subr.mxu0 %v457
    %2321 = vmatpush1.msra.mxu0 %v456
    %2322 = vmatprep.subr.mxu0 %v461
    %2323 = vmatpush1.msra.mxu0 %v460
    %2324 = vmatprep.subr.mxu0 %v465
    %2325 = vmatpush1.msra.mxu0 %v464
    %2326 = vmatprep.subr.mxu0 %v469
    %2327 = vmatpush1.msra.mxu0 %v468
    %2328 = vmatprep.mubr.f32.mxu0 %v2191
    %2329 = vmatmul.mubr.f32.gmra.mrb[0].mxu0 %v2011
    %v2330 = vpop.f32.mrb[0].mxu0
    %v2331 = vadd.f32 %v820, %v2330
    %v2332 = vpop.f32.mrb[0].mxu0
    %v2333 = vadd.f32 %v824, %v2332
    %2334 = vdwg.mxu0
    %v2335 = vtanh.pop %v2260
    %v2336 = vtanh.pop %v2262
    %v2337 = vtanh.pop %v2331
    %v2338 = vtanh.pop %v2333
    %v2339 = vmul.f32 %v2335, 0.5
    %v2340 = vmul.f32 %v2336, 0.5
    %v2341 = vmul.f32 %v2338, 0.5
    %v2342 = vadd.f32 %v2339, 0.5
    %v2343 = vadd.f32 %v2340, 0.5
    %v2344 = vadd.f32 %v2341, 0.5
    %v2345 = vmul.f32 %v2343, %v2006
    %v2346 = vmul.f32 %v2342, %v2337
    %v2347 = vadd.f32 %v2345, %v2346
    %v2348 = vtanh.pop %v2347
    %v2349 = vmul.f32 %v2344, %v2348
    %2350 = vst [vmem:[#allocation10 + $0x4] sm:$0x1] %v2349
    %v2352 = vrot.slane %v2188, 5
    %2354 = vmatprep.subr.mxu0 %v279
    %2355 = vmatpush1.msra.mxu0 %v278
    %2356 = vmatprep.subr.mxu0 %v283
    %2357 = vmatpush1.msra.mxu0 %v282
    %2358 = vmatprep.subr.mxu0 %v287
    %2359 = vmatpush1.msra.mxu0 %v286
    %2360 = vmatprep.subr.mxu0 %v291
    %2361 = vmatpush1.msra.mxu0 %v290
    %2362 = vmatprep.subr.mxu0 %v295
    %2363 = vmatpush1.msra.mxu0 %v294
    %2364 = vmatprep.subr.mxu0 %v299
    %2365 = vmatpush1.msra.mxu0 %v298
    %2366 = vmatprep.subr.mxu0 %v303
    %2367 = vmatpush1.msra.mxu0 %v302
    %2368 = vmatprep.subr.mxu0 %v307
    %2369 = vmatpush1.msra.mxu0 %v306
    %2370 = vmatprep.subr.mxu0 %v311
    %2371 = vmatpush1.msra.mxu0 %v310
    %2372 = vmatprep.subr.mxu0 %v315
    %2373 = vmatpush1.msra.mxu0 %v314
    %2374 = vmatprep.subr.mxu0 %v319
    %2375 = vmatpush1.msra.mxu0 %v318
    %2376 = vmatprep.subr.mxu0 %v323
    %2377 = vmatpush1.msra.mxu0 %v322
    %2378 = vmatprep.subr.mxu0 %v327
    %2379 = vmatpush1.msra.mxu0 %v326
    %2380 = vmatprep.subr.mxu0 %v331
    %2381 = vmatpush1.msra.mxu0 %v330
    %2382 = vmatprep.subr.mxu0 %v335
    %2383 = vmatpush1.msra.mxu0 %v334
    %2384 = vmatprep.subr.mxu0 %v339
    %2385 = vmatpush1.msra.mxu0 %v338
    %2386 = vmatprep.subr.mxu0 0.0
    %2387 = vmatpush1.msra.mxu0 0.0
    %2388 = vmatprep.subr.mxu0 0.0
    %2389 = vmatpush1.msra.mxu0 0.0
    %2390 = vmatprep.subr.mxu0 0.0
    %2391 = vmatpush1.msra.mxu0 0.0
    %2392 = vmatprep.subr.mxu0 0.0
    %2393 = vmatpush1.msra.mxu0 0.0
    %2394 = vmatprep.subr.mxu0 0.0
    %2395 = vmatpush1.msra.mxu0 0.0
    %2396 = vmatprep.subr.mxu0 0.0
    %2397 = vmatpush1.msra.mxu0 0.0
    %2398 = vmatprep.subr.mxu0 0.0
    %2399 = vmatpush1.msra.mxu0 0.0
    %2400 = vmatprep.subr.mxu0 0.0
    %2401 = vmatpush1.msra.mxu0 0.0
    %2402 = vmatprep.subr.mxu0 0.0
    %2403 = vmatpush1.msra.mxu0 0.0
    %2404 = vmatprep.subr.mxu0 0.0
    %2405 = vmatpush1.msra.mxu0 0.0
    %2406 = vmatprep.subr.mxu0 0.0
    %2407 = vmatpush1.msra.mxu0 0.0
    %2408 = vmatprep.subr.mxu0 0.0
    %2409 = vmatpush1.msra.mxu0 0.0
    %2410 = vmatprep.subr.mxu0 0.0
    %2411 = vmatpush1.msra.mxu0 0.0
    %2412 = vmatprep.subr.mxu0 0.0
    %2413 = vmatpush1.msra.mxu0 0.0
    %2414 = vmatprep.subr.mxu0 0.0
    %2415 = vmatpush1.msra.mxu0 0.0
    %2416 = vmatprep.subr.mxu0 0.0
    %2417 = vmatpush1.msra.mxu0 0.0
    %2418 = vmatprep.mubr.f32.mxu0 0.0
    %2419 = vmatmul.mubr.f32.gmra.mrb[0].mxu0 %v2352
    %v2420 = vpop.f32.mrb[0].mxu0
    %v2421 = vadd.f32 0.0, %v2420
    %v2422 = vpop.f32.mrb[0].mxu0
    %v2423 = vadd.f32 0.0, %v2422
    %2424 = vdwg.mxu0
    %2425 = vmatprep.subr.mxu0 %v281
    %2426 = vmatpush1.msra.mxu0 %v280
    %2427 = vmatprep.subr.mxu0 %v285
    %2428 = vmatpush1.msra.mxu0 %v284
    %2429 = vmatprep.subr.mxu0 %v289
    %2430 = vmatpush1.msra.mxu0 %v288
    %2431 = vmatprep.subr.mxu0 %v293
    %2432 = vmatpush1.msra.mxu0 %v292
    %2433 = vmatprep.subr.mxu0 %v297
    %2434 = vmatpush1.msra.mxu0 %v296
    %2435 = vmatprep.subr.mxu0 %v301
    %2436 = vmatpush1.msra.mxu0 %v300
    %2437 = vmatprep.subr.mxu0 %v305
    %2438 = vmatpush1.msra.mxu0 %v304
    %2439 = vmatprep.subr.mxu0 %v309
    %2440 = vmatpush1.msra.mxu0 %v308
    %2441 = vmatprep.subr.mxu0 %v313
    %2442 = vmatpush1.msra.mxu0 %v312
    %2443 = vmatprep.subr.mxu0 %v317
    %2444 = vmatpush1.msra.mxu0 %v316
    %2445 = vmatprep.subr.mxu0 %v321
    %2446 = vmatpush1.msra.mxu0 %v320
    %2447 = vmatprep.subr.mxu0 %v325
    %2448 = vmatpush1.msra.mxu0 %v324
    %2449 = vmatprep.subr.mxu0 %v329
    %2450 = vmatpush1.msra.mxu0 %v328
    %2451 = vmatprep.subr.mxu0 %v333
    %2452 = vmatpush1.msra.mxu0 %v332
    %2453 = vmatprep.subr.mxu0 %v337
    %2454 = vmatpush1.msra.mxu0 %v336
    %2455 = vmatprep.subr.mxu0 %v341
    %2456 = vmatpush1.msra.mxu0 %v340
    %2457 = vmatprep.subr.mxu0 0.0
    %2458 = vmatpush1.msra.mxu0 0.0
    %2459 = vmatprep.subr.mxu0 0.0
    %2460 = vmatpush1.msra.mxu0 0.0
    %2461 = vmatprep.subr.mxu0 0.0
    %2462 = vmatpush1.msra.mxu0 0.0
    %2463 = vmatprep.subr.mxu0 0.0
    %2464 = vmatpush1.msra.mxu0 0.0
    %2465 = vmatprep.subr.mxu0 0.0
    %2466 = vmatpush1.msra.mxu0 0.0
    %2467 = vmatprep.subr.mxu0 0.0
    %2468 = vmatpush1.msra.mxu0 0.0
    %2469 = vmatprep.subr.mxu0 0.0
    %2470 = vmatpush1.msra.mxu0 0.0
    %2471 = vmatprep.subr.mxu0 0.0
    %2472 = vmatpush1.msra.mxu0 0.0
    %2473 = vmatprep.subr.mxu0 0.0
    %2474 = vmatpush1.msra.mxu0 0.0
    %2475 = vmatprep.subr.mxu0 0.0
    %2476 = vmatpush1.msra.mxu0 0.0
    %2477 = vmatprep.subr.mxu0 0.0
    %2478 = vmatpush1.msra.mxu0 0.0
    %2479 = vmatprep.subr.mxu0 0.0
    %2480 = vmatpush1.msra.mxu0 0.0
    %2481 = vmatprep.subr.mxu0 0.0
    %2482 = vmatpush1.msra.mxu0 0.0
    %2483 = vmatprep.subr.mxu0 0.0
    %2484 = vmatpush1.msra.mxu0 0.0
    %2485 = vmatprep.subr.mxu0 0.0
    %2486 = vmatpush1.msra.mxu0 0.0
    %2487 = vmatprep.subr.mxu0 0.0
    %2488 = vmatpush1.msra.mxu0 0.0
    %2489 = vmatprep.mubr.f32.mxu0 0.0
    %2490 = vmatmul.mubr.f32.gmra.mrb[0].mxu0 %v2352
    %v2491 = vpop.f32.mrb[0].mxu0
    %v2492 = vadd.f32 0.0, %v2491
    %v2493 = vpop.f32.mrb[0].mxu0
    %v2494 = vadd.f32 0.0, %v2493
    %2495 = vdwg.mxu0
    %v2500 = vrot.slane %v2421, 2
    %v2501 = vrot.slane %v2423, 2
    %v2502 = vrot.slane %v2492, 2
    %v2503 = vrot.slane %v2494, 2
    %v2508 = vadd.f32 %v203, %v2500
    %v2509 = vadd.f32 %v205, %v2501
    %v2510 = vadd.f32 %v274, %v2502
    %v2511 = vadd.f32 %v276, %v2503
    %v2512 = vtanh.pop %v2508
    %v2513 = vtanh.pop %v2509
    %v2514 = vtanh.pop %v2510
    %v2515 = vtanh.pop %v2511
    %v2516 = vmul.f32 %v2512, 0.5
    %v2517 = vmul.f32 %v2513, 0.5
    %v2518 = vmul.f32 %v2515, 0.5
    %v2519 = vadd.f32 %v2516, 0.5
    %v2520 = vadd.f32 %v2517, 0.5
    %v2521 = vadd.f32 %v2518, 0.5
    %v2523 = vrot.slane %v2186, 7
    %v2525 = vmul.f32 %v2520, %v2523
    %v2526 = vmul.f32 %v2519, %v2514
    %v2527 = vadd.f32 %v2525, %v2526
    %v2528 = vtanh.pop %v2527
    %v2529 = vmul.f32 %v2521, %v2528
    %v2531 = vrot.slane %v2349, 3
    %v2532 = vrot.slane %v2531, 5
    %2534 = vmatprep.subr.mxu0 %v343
    %2535 = vmatpush1.msra.mxu0 %v342
    %2536 = vmatprep.subr.mxu0 %v347
    %2537 = vmatpush1.msra.mxu0 %v346
    %2538 = vmatprep.subr.mxu0 %v351
    %2539 = vmatpush1.msra.mxu0 %v350
    %2540 = vmatprep.subr.mxu0 %v355
    %2541 = vmatpush1.msra.mxu0 %v354
    %2542 = vmatprep.subr.mxu0 %v359
    %2543 = vmatpush1.msra.mxu0 %v358
    %2544 = vmatprep.subr.mxu0 %v363
    %2545 = vmatpush1.msra.mxu0 %v362
    %2546 = vmatprep.subr.mxu0 %v367
    %2547 = vmatpush1.msra.mxu0 %v366
    %2548 = vmatprep.subr.mxu0 %v371
    %2549 = vmatpush1.msra.mxu0 %v370
    %2550 = vmatprep.subr.mxu0 %v375
    %2551 = vmatpush1.msra.mxu0 %v374
    %2552 = vmatprep.subr.mxu0 %v379
    %2553 = vmatpush1.msra.mxu0 %v378
    %2554 = vmatprep.subr.mxu0 %v383
    %2555 = vmatpush1.msra.mxu0 %v382
    %2556 = vmatprep.subr.mxu0 %v387
    %2557 = vmatpush1.msra.mxu0 %v386
    %2558 = vmatprep.subr.mxu0 %v391
    %2559 = vmatpush1.msra.mxu0 %v390
    %2560 = vmatprep.subr.mxu0 %v395
    %2561 = vmatpush1.msra.mxu0 %v394
    %2562 = vmatprep.subr.mxu0 %v399
    %2563 = vmatpush1.msra.mxu0 %v398
    %2564 = vmatprep.subr.mxu0 %v403
    %2565 = vmatpush1.msra.mxu0 %v402
    %2566 = vmatprep.subr.mxu0 %v407
    %2567 = vmatpush1.msra.mxu0 %v406
    %2568 = vmatprep.subr.mxu0 %v411
    %2569 = vmatpush1.msra.mxu0 %v410
    %2570 = vmatprep.subr.mxu0 %v415
    %2571 = vmatpush1.msra.mxu0 %v414
    %2572 = vmatprep.subr.mxu0 %v419
    %2573 = vmatpush1.msra.mxu0 %v418
    %2574 = vmatprep.subr.mxu0 %v423
    %2575 = vmatpush1.msra.mxu0 %v422
    %2576 = vmatprep.subr.mxu0 %v427
    %2577 = vmatpush1.msra.mxu0 %v426
    %2578 = vmatprep.subr.mxu0 %v431
    %2579 = vmatpush1.msra.mxu0 %v430
    %2580 = vmatprep.subr.mxu0 %v435
    %2581 = vmatpush1.msra.mxu0 %v434
    %2582 = vmatprep.subr.mxu0 %v439
    %2583 = vmatpush1.msra.mxu0 %v438
    %2584 = vmatprep.subr.mxu0 %v443
    %2585 = vmatpush1.msra.mxu0 %v442
    %2586 = vmatprep.subr.mxu0 %v447
    %2587 = vmatpush1.msra.mxu0 %v446
    %2588 = vmatprep.subr.mxu0 %v451
    %2589 = vmatpush1.msra.mxu0 %v450
    %2590 = vmatprep.subr.mxu0 %v455
    %2591 = vmatpush1.msra.mxu0 %v454
    %2592 = vmatprep.subr.mxu0 %v459
    %2593 = vmatpush1.msra.mxu0 %v458
    %2594 = vmatprep.subr.mxu0 %v463
    %2595 = vmatpush1.msra.mxu0 %v462
    %2596 = vmatprep.subr.mxu0 %v467
    %2597 = vmatpush1.msra.mxu0 %v466
    %2598 = vmatprep.mubr.f32.mxu0 %v2532
    %2599 = vmatmul.mubr.f32.gmra.mrb[0].mxu0 %v2352
    %v2600 = vpop.f32.mrb[0].mxu0
    %v2601 = vadd.f32 %v812, %v2600
    %v2602 = vpop.f32.mrb[0].mxu0
    %v2603 = vadd.f32 %v816, %v2602
    %2604 = vdwg.mxu0
    %2605 = vmatprep.subr.mxu0 %v345
    %2606 = vmatpush1.msra.mxu0 %v344
    %2607 = vmatprep.subr.mxu0 %v349
    %2608 = vmatpush1.msra.mxu0 %v348
    %2609 = vmatprep.subr.mxu0 %v353
    %2610 = vmatpush1.msra.mxu0 %v352
    %2611 = vmatprep.subr.mxu0 %v357
    %2612 = vmatpush1.msra.mxu0 %v356
    %2613 = vmatprep.subr.mxu0 %v361
    %2614 = vmatpush1.msra.mxu0 %v360
    %2615 = vmatprep.subr.mxu0 %v365
    %2616 = vmatpush1.msra.mxu0 %v364
    %2617 = vmatprep.subr.mxu0 %v369
    %2618 = vmatpush1.msra.mxu0 %v368
    %2619 = vmatprep.subr.mxu0 %v373
    %2620 = vmatpush1.msra.mxu0 %v372
    %2621 = vmatprep.subr.mxu0 %v377
    %2622 = vmatpush1.msra.mxu0 %v376
    %2623 = vmatprep.subr.mxu0 %v381
    %2624 = vmatpush1.msra.mxu0 %v380
    %2625 = vmatprep.subr.mxu0 %v385
    %2626 = vmatpush1.msra.mxu0 %v384
    %2627 = vmatprep.subr.mxu0 %v389
    %2628 = vmatpush1.msra.mxu0 %v388
    %2629 = vmatprep.subr.mxu0 %v393
    %2630 = vmatpush1.msra.mxu0 %v392
    %2631 = vmatprep.subr.mxu0 %v397
    %2632 = vmatpush1.msra.mxu0 %v396
    %2633 = vmatprep.subr.mxu0 %v401
    %2634 = vmatpush1.msra.mxu0 %v400
    %2635 = vmatprep.subr.mxu0 %v405
    %2636 = vmatpush1.msra.mxu0 %v404
    %2637 = vmatprep.subr.mxu0 %v409
    %2638 = vmatpush1.msra.mxu0 %v408
    %2639 = vmatprep.subr.mxu0 %v413
    %2640 = vmatpush1.msra.mxu0 %v412
    %2641 = vmatprep.subr.mxu0 %v417
    %2642 = vmatpush1.msra.mxu0 %v416
    %2643 = vmatprep.subr.mxu0 %v421
    %2644 = vmatpush1.msra.mxu0 %v420
    %2645 = vmatprep.subr.mxu0 %v425
    %2646 = vmatpush1.msra.mxu0 %v424
    %2647 = vmatprep.subr.mxu0 %v429
    %2648 = vmatpush1.msra.mxu0 %v428
    %2649 = vmatprep.subr.mxu0 %v433
    %2650 = vmatpush1.msra.mxu0 %v432
    %2651 = vmatprep.subr.mxu0 %v437
    %2652 = vmatpush1.msra.mxu0 %v436
    %2653 = vmatprep.subr.mxu0 %v441
    %2654 = vmatpush1.msra.mxu0 %v440
    %2655 = vmatprep.subr.mxu0 %v445
    %2656 = vmatpush1.msra.mxu0 %v444
    %2657 = vmatprep.subr.mxu0 %v449
    %2658 = vmatpush1.msra.mxu0 %v448
    %2659 = vmatprep.subr.mxu0 %v453
    %2660 = vmatpush1.msra.mxu0 %v452
    %2661 = vmatprep.subr.mxu0 %v457
    %2662 = vmatpush1.msra.mxu0 %v456
    %2663 = vmatprep.subr.mxu0 %v461
    %2664 = vmatpush1.msra.mxu0 %v460
    %2665 = vmatprep.subr.mxu0 %v465
    %2666 = vmatpush1.msra.mxu0 %v464
    %2667 = vmatprep.subr.mxu0 %v469
    %2668 = vmatpush1.msra.mxu0 %v468
    %2669 = vmatprep.mubr.f32.mxu0 %v2532
    %2670 = vmatmul.mubr.f32.gmra.mrb[0].mxu0 %v2352
    %v2671 = vpop.f32.mrb[0].mxu0
    %v2672 = vadd.f32 %v820, %v2671
    %v2673 = vpop.f32.mrb[0].mxu0
    %v2674 = vadd.f32 %v824, %v2673
    %2675 = vdwg.mxu0
    %v2676 = vtanh.pop %v2601
    %v2677 = vtanh.pop %v2603
    %v2678 = vtanh.pop %v2672
    %v2679 = vtanh.pop %v2674
    %v2680 = vmul.f32 %v2676, 0.5
    %v2681 = vmul.f32 %v2677, 0.5
    %v2682 = vmul.f32 %v2679, 0.5
    %v2683 = vadd.f32 %v2680, 0.5
    %v2684 = vadd.f32 %v2681, 0.5
    %v2685 = vadd.f32 %v2682, 0.5
    %v2686 = vmul.f32 %v2684, %v2347
    %v2687 = vmul.f32 %v2683, %v2678
    %v2688 = vadd.f32 %v2686, %v2687
    %v2689 = vtanh.pop %v2688
    %v2690 = vmul.f32 %v2685, %v2689
    %2691 = vst [vmem:[#allocation10 + $0x5] sm:$0x1] %v2690
    %v2693 = vrot.slane %v2529, 6
    %2695 = vmatprep.subr.mxu0 %v279
    %2696 = vmatpush1.msra.mxu0 %v278
    %2697 = vmatprep.subr.mxu0 %v283
    %2698 = vmatpush1.msra.mxu0 %v282
    %2699 = vmatprep.subr.mxu0 %v287
    %2700 = vmatpush1.msra.mxu0 %v286
    %2701 = vmatprep.subr.mxu0 %v291
    %2702 = vmatpush1.msra.mxu0 %v290
    %2703 = vmatprep.subr.mxu0 %v295
    %2704 = vmatpush1.msra.mxu0 %v294
    %2705 = vmatprep.subr.mxu0 %v299
    %2706 = vmatpush1.msra.mxu0 %v298
    %2707 = vmatprep.subr.mxu0 %v303
    %2708 = vmatpush1.msra.mxu0 %v302
    %2709 = vmatprep.subr.mxu0 %v307
    %2710 = vmatpush1.msra.mxu0 %v306
    %2711 = vmatprep.subr.mxu0 %v311
    %2712 = vmatpush1.msra.mxu0 %v310
    %2713 = vmatprep.subr.mxu0 %v315
    %2714 = vmatpush1.msra.mxu0 %v314
    %2715 = vmatprep.subr.mxu0 %v319
    %2716 = vmatpush1.msra.mxu0 %v318
    %2717 = vmatprep.subr.mxu0 %v323
    %2718 = vmatpush1.msra.mxu0 %v322
    %2719 = vmatprep.subr.mxu0 %v327
    %2720 = vmatpush1.msra.mxu0 %v326
    %2721 = vmatprep.subr.mxu0 %v331
    %2722 = vmatpush1.msra.mxu0 %v330
    %2723 = vmatprep.subr.mxu0 %v335
    %2724 = vmatpush1.msra.mxu0 %v334
    %2725 = vmatprep.subr.mxu0 %v339
    %2726 = vmatpush1.msra.mxu0 %v338
    %2727 = vmatprep.subr.mxu0 0.0
    %2728 = vmatpush1.msra.mxu0 0.0
    %2729 = vmatprep.subr.mxu0 0.0
    %2730 = vmatpush1.msra.mxu0 0.0
    %2731 = vmatprep.subr.mxu0 0.0
    %2732 = vmatpush1.msra.mxu0 0.0
    %2733 = vmatprep.subr.mxu0 0.0
    %2734 = vmatpush1.msra.mxu0 0.0
    %2735 = vmatprep.subr.mxu0 0.0
    %2736 = vmatpush1.msra.mxu0 0.0
    %2737 = vmatprep.subr.mxu0 0.0
    %2738 = vmatpush1.msra.mxu0 0.0
    %2739 = vmatprep.subr.mxu0 0.0
    %2740 = vmatpush1.msra.mxu0 0.0
    %2741 = vmatprep.subr.mxu0 0.0
    %2742 = vmatpush1.msra.mxu0 0.0
    %2743 = vmatprep.subr.mxu0 0.0
    %2744 = vmatpush1.msra.mxu0 0.0
    %2745 = vmatprep.subr.mxu0 0.0
    %2746 = vmatpush1.msra.mxu0 0.0
    %2747 = vmatprep.subr.mxu0 0.0
    %2748 = vmatpush1.msra.mxu0 0.0
    %2749 = vmatprep.subr.mxu0 0.0
    %2750 = vmatpush1.msra.mxu0 0.0
    %2751 = vmatprep.subr.mxu0 0.0
    %2752 = vmatpush1.msra.mxu0 0.0
    %2753 = vmatprep.subr.mxu0 0.0
    %2754 = vmatpush1.msra.mxu0 0.0
    %2755 = vmatprep.subr.mxu0 0.0
    %2756 = vmatpush1.msra.mxu0 0.0
    %2757 = vmatprep.subr.mxu0 0.0
    %2758 = vmatpush1.msra.mxu0 0.0
    %2759 = vmatprep.mubr.f32.mxu0 0.0
    %2760 = vmatmul.mubr.f32.gmra.mrb[0].mxu0 %v2693
    %v2761 = vpop.f32.mrb[0].mxu0
    %v2762 = vadd.f32 0.0, %v2761
    %v2763 = vpop.f32.mrb[0].mxu0
    %v2764 = vadd.f32 0.0, %v2763
    %2765 = vdwg.mxu0
    %2766 = vmatprep.subr.mxu0 %v281
    %2767 = vmatpush1.msra.mxu0 %v280
    %2768 = vmatprep.subr.mxu0 %v285
    %2769 = vmatpush1.msra.mxu0 %v284
    %2770 = vmatprep.subr.mxu0 %v289
    %2771 = vmatpush1.msra.mxu0 %v288
    %2772 = vmatprep.subr.mxu0 %v293
    %2773 = vmatpush1.msra.mxu0 %v292
    %2774 = vmatprep.subr.mxu0 %v297
    %2775 = vmatpush1.msra.mxu0 %v296
    %2776 = vmatprep.subr.mxu0 %v301
    %2777 = vmatpush1.msra.mxu0 %v300
    %2778 = vmatprep.subr.mxu0 %v305
    %2779 = vmatpush1.msra.mxu0 %v304
    %2780 = vmatprep.subr.mxu0 %v309
    %2781 = vmatpush1.msra.mxu0 %v308
    %2782 = vmatprep.subr.mxu0 %v313
    %2783 = vmatpush1.msra.mxu0 %v312
    %2784 = vmatprep.subr.mxu0 %v317
    %2785 = vmatpush1.msra.mxu0 %v316
    %2786 = vmatprep.subr.mxu0 %v321
    %2787 = vmatpush1.msra.mxu0 %v320
    %2788 = vmatprep.subr.mxu0 %v325
    %2789 = vmatpush1.msra.mxu0 %v324
    %2790 = vmatprep.subr.mxu0 %v329
    %2791 = vmatpush1.msra.mxu0 %v328
    %2792 = vmatprep.subr.mxu0 %v333
    %2793 = vmatpush1.msra.mxu0 %v332
    %2794 = vmatprep.subr.mxu0 %v337
    %2795 = vmatpush1.msra.mxu0 %v336
    %2796 = vmatprep.subr.mxu0 %v341
    %2797 = vmatpush1.msra.mxu0 %v340
    %2798 = vmatprep.subr.mxu0 0.0
    %2799 = vmatpush1.msra.mxu0 0.0
    %2800 = vmatprep.subr.mxu0 0.0
    %2801 = vmatpush1.msra.mxu0 0.0
    %2802 = vmatprep.subr.mxu0 0.0
    %2803 = vmatpush1.msra.mxu0 0.0
    %2804 = vmatprep.subr.mxu0 0.0
    %2805 = vmatpush1.msra.mxu0 0.0
    %2806 = vmatprep.subr.mxu0 0.0
    %2807 = vmatpush1.msra.mxu0 0.0
    %2808 = vmatprep.subr.mxu0 0.0
    %2809 = vmatpush1.msra.mxu0 0.0
    %2810 = vmatprep.subr.mxu0 0.0
    %2811 = vmatpush1.msra.mxu0 0.0
    %2812 = vmatprep.subr.mxu0 0.0
    %2813 = vmatpush1.msra.mxu0 0.0
    %2814 = vmatprep.subr.mxu0 0.0
    %2815 = vmatpush1.msra.mxu0 0.0
    %2816 = vmatprep.subr.mxu0 0.0
    %2817 = vmatpush1.msra.mxu0 0.0
    %2818 = vmatprep.subr.mxu0 0.0
    %2819 = vmatpush1.msra.mxu0 0.0
    %2820 = vmatprep.subr.mxu0 0.0
    %2821 = vmatpush1.msra.mxu0 0.0
    %2822 = vmatprep.subr.mxu0 0.0
    %2823 = vmatpush1.msra.mxu0 0.0
    %2824 = vmatprep.subr.mxu0 0.0
    %2825 = vmatpush1.msra.mxu0 0.0
    %2826 = vmatprep.subr.mxu0 0.0
    %2827 = vmatpush1.msra.mxu0 0.0
    %2828 = vmatprep.subr.mxu0 0.0
    %2829 = vmatpush1.msra.mxu0 0.0
    %2830 = vmatprep.mubr.f32.mxu0 0.0
    %2831 = vmatmul.mubr.f32.gmra.mrb[0].mxu0 %v2693
    %v2832 = vpop.f32.mrb[0].mxu0
    %v2833 = vadd.f32 0.0, %v2832
    %v2834 = vpop.f32.mrb[0].mxu0
    %v2835 = vadd.f32 0.0, %v2834
    %2836 = vdwg.mxu0
    %v2841 = vrot.slane %v2762, 1
    %v2842 = vrot.slane %v2764, 1
    %v2843 = vrot.slane %v2833, 1
    %v2844 = vrot.slane %v2835, 1
    %v2849 = vadd.f32 %v203, %v2841
    %v2850 = vadd.f32 %v205, %v2842
    %v2851 = vadd.f32 %v274, %v2843
    %v2852 = vadd.f32 %v276, %v2844
    %v2853 = vtanh.pop %v2849
    %v2854 = vtanh.pop %v2850
    %v2855 = vtanh.pop %v2851
    %v2856 = vtanh.pop %v2852
    %v2857 = vmul.f32 %v2853, 0.5
    %v2858 = vmul.f32 %v2854, 0.5
    %v2859 = vmul.f32 %v2856, 0.5
    %v2860 = vadd.f32 %v2857, 0.5
    %v2861 = vadd.f32 %v2858, 0.5
    %v2862 = vadd.f32 %v2859, 0.5
    %v2864 = vrot.slane %v2527, 7
    %v2866 = vmul.f32 %v2861, %v2864
    %v2867 = vmul.f32 %v2860, %v2855
    %v2868 = vadd.f32 %v2866, %v2867
    %v2869 = vtanh.pop %v2868
    %v2870 = vmul.f32 %v2862, %v2869
    %v2872 = vrot.slane %v2690, 2
    %v2873 = vrot.slane %v2872, 6
    %2875 = vmatprep.subr.mxu0 %v343
    %2876 = vmatpush1.msra.mxu0 %v342
    %2877 = vmatprep.subr.mxu0 %v347
    %2878 = vmatpush1.msra.mxu0 %v346
    %2879 = vmatprep.subr.mxu0 %v351
    %2880 = vmatpush1.msra.mxu0 %v350
    %2881 = vmatprep.subr.mxu0 %v355
    %2882 = vmatpush1.msra.mxu0 %v354
    %2883 = vmatprep.subr.mxu0 %v359
    %2884 = vmatpush1.msra.mxu0 %v358
    %2885 = vmatprep.subr.mxu0 %v363
    %2886 = vmatpush1.msra.mxu0 %v362
    %2887 = vmatprep.subr.mxu0 %v367
    %2888 = vmatpush1.msra.mxu0 %v366
    %2889 = vmatprep.subr.mxu0 %v371
    %2890 = vmatpush1.msra.mxu0 %v370
    %2891 = vmatprep.subr.mxu0 %v375
    %2892 = vmatpush1.msra.mxu0 %v374
    %2893 = vmatprep.subr.mxu0 %v379
    %2894 = vmatpush1.msra.mxu0 %v378
    %2895 = vmatprep.subr.mxu0 %v383
    %2896 = vmatpush1.msra.mxu0 %v382
    %2897 = vmatprep.subr.mxu0 %v387
    %2898 = vmatpush1.msra.mxu0 %v386
    %2899 = vmatprep.subr.mxu0 %v391
    %2900 = vmatpush1.msra.mxu0 %v390
    %2901 = vmatprep.subr.mxu0 %v395
    %2902 = vmatpush1.msra.mxu0 %v394
    %2903 = vmatprep.subr.mxu0 %v399
    %2904 = vmatpush1.msra.mxu0 %v398
    %2905 = vmatprep.subr.mxu0 %v403
    %2906 = vmatpush1.msra.mxu0 %v402
    %2907 = vmatprep.subr.mxu0 %v407
    %2908 = vmatpush1.msra.mxu0 %v406
    %2909 = vmatprep.subr.mxu0 %v411
    %2910 = vmatpush1.msra.mxu0 %v410
    %2911 = vmatprep.subr.mxu0 %v415
    %2912 = vmatpush1.msra.mxu0 %v414
    %2913 = vmatprep.subr.mxu0 %v419
    %2914 = vmatpush1.msra.mxu0 %v418
    %2915 = vmatprep.subr.mxu0 %v423
    %2916 = vmatpush1.msra.mxu0 %v422
    %2917 = vmatprep.subr.mxu0 %v427
    %2918 = vmatpush1.msra.mxu0 %v426
    %2919 = vmatprep.subr.mxu0 %v431
    %2920 = vmatpush1.msra.mxu0 %v430
    %2921 = vmatprep.subr.mxu0 %v435
    %2922 = vmatpush1.msra.mxu0 %v434
    %2923 = vmatprep.subr.mxu0 %v439
    %2924 = vmatpush1.msra.mxu0 %v438
    %2925 = vmatprep.subr.mxu0 %v443
    %2926 = vmatpush1.msra.mxu0 %v442
    %2927 = vmatprep.subr.mxu0 %v447
    %2928 = vmatpush1.msra.mxu0 %v446
    %2929 = vmatprep.subr.mxu0 %v451
    %2930 = vmatpush1.msra.mxu0 %v450
    %2931 = vmatprep.subr.mxu0 %v455
    %2932 = vmatpush1.msra.mxu0 %v454
    %2933 = vmatprep.subr.mxu0 %v459
    %2934 = vmatpush1.msra.mxu0 %v458
    %2935 = vmatprep.subr.mxu0 %v463
    %2936 = vmatpush1.msra.mxu0 %v462
    %2937 = vmatprep.subr.mxu0 %v467
    %2938 = vmatpush1.msra.mxu0 %v466
    %2939 = vmatprep.mubr.f32.mxu0 %v2873
    %2940 = vmatmul.mubr.f32.gmra.mrb[0].mxu0 %v2693
    %v2941 = vpop.f32.mrb[0].mxu0
    %v2942 = vadd.f32 %v812, %v2941
    %v2943 = vpop.f32.mrb[0].mxu0
    %v2944 = vadd.f32 %v816, %v2943
    %2945 = vdwg.mxu0
    %2946 = vmatprep.subr.mxu0 %v345
    %2947 = vmatpush1.msra.mxu0 %v344
    %2948 = vmatprep.subr.mxu0 %v349
    %2949 = vmatpush1.msra.mxu0 %v348
    %2950 = vmatprep.subr.mxu0 %v353
    %2951 = vmatpush1.msra.mxu0 %v352
    %2952 = vmatprep.subr.mxu0 %v357
    %2953 = vmatpush1.msra.mxu0 %v356
    %2954 = vmatprep.subr.mxu0 %v361
    %2955 = vmatpush1.msra.mxu0 %v360
    %2956 = vmatprep.subr.mxu0 %v365
    %2957 = vmatpush1.msra.mxu0 %v364
    %2958 = vmatprep.subr.mxu0 %v369
    %2959 = vmatpush1.msra.mxu0 %v368
    %2960 = vmatprep.subr.mxu0 %v373
    %2961 = vmatpush1.msra.mxu0 %v372
    %2962 = vmatprep.subr.mxu0 %v377
    %2963 = vmatpush1.msra.mxu0 %v376
    %2964 = vmatprep.subr.mxu0 %v381
    %2965 = vmatpush1.msra.mxu0 %v380
    %2966 = vmatprep.subr.mxu0 %v385
    %2967 = vmatpush1.msra.mxu0 %v384
    %2968 = vmatprep.subr.mxu0 %v389
    %2969 = vmatpush1.msra.mxu0 %v388
    %2970 = vmatprep.subr.mxu0 %v393
    %2971 = vmatpush1.msra.mxu0 %v392
    %2972 = vmatprep.subr.mxu0 %v397
    %2973 = vmatpush1.msra.mxu0 %v396
    %2974 = vmatprep.subr.mxu0 %v401
    %2975 = vmatpush1.msra.mxu0 %v400
    %2976 = vmatprep.subr.mxu0 %v405
    %2977 = vmatpush1.msra.mxu0 %v404
    %2978 = vmatprep.subr.mxu0 %v409
    %2979 = vmatpush1.msra.mxu0 %v408
    %2980 = vmatprep.subr.mxu0 %v413
    %2981 = vmatpush1.msra.mxu0 %v412
    %2982 = vmatprep.subr.mxu0 %v417
    %2983 = vmatpush1.msra.mxu0 %v416
    %2984 = vmatprep.subr.mxu0 %v421
    %2985 = vmatpush1.msra.mxu0 %v420
    %2986 = vmatprep.subr.mxu0 %v425
    %2987 = vmatpush1.msra.mxu0 %v424
    %2988 = vmatprep.subr.mxu0 %v429
    %2989 = vmatpush1.msra.mxu0 %v428
    %2990 = vmatprep.subr.mxu0 %v433
    %2991 = vmatpush1.msra.mxu0 %v432
    %2992 = vmatprep.subr.mxu0 %v437
    %2993 = vmatpush1.msra.mxu0 %v436
    %2994 = vmatprep.subr.mxu0 %v441
    %2995 = vmatpush1.msra.mxu0 %v440
    %2996 = vmatprep.subr.mxu0 %v445
    %2997 = vmatpush1.msra.mxu0 %v444
    %2998 = vmatprep.subr.mxu0 %v449
    %2999 = vmatpush1.msra.mxu0 %v448
    %3000 = vmatprep.subr.mxu0 %v453
    %3001 = vmatpush1.msra.mxu0 %v452
    %3002 = vmatprep.subr.mxu0 %v457
    %3003 = vmatpush1.msra.mxu0 %v456
    %3004 = vmatprep.subr.mxu0 %v461
    %3005 = vmatpush1.msra.mxu0 %v460
    %3006 = vmatprep.subr.mxu0 %v465
    %3007 = vmatpush1.msra.mxu0 %v464
    %3008 = vmatprep.subr.mxu0 %v469
    %3009 = vmatpush1.msra.mxu0 %v468
    %3010 = vmatprep.mubr.f32.mxu0 %v2873
    %3011 = vmatmul.mubr.f32.gmra.mrb[0].mxu0 %v2693
    %v3012 = vpop.f32.mrb[0].mxu0
    %v3013 = vadd.f32 %v820, %v3012
    %v3014 = vpop.f32.mrb[0].mxu0
    %v3015 = vadd.f32 %v824, %v3014
    %3016 = vdwg.mxu0
    %v3017 = vtanh.pop %v2942
    %v3018 = vtanh.pop %v2944
    %v3019 = vtanh.pop %v3013
    %v3020 = vtanh.pop %v3015
    %v3021 = vmul.f32 %v3017, 0.5
    %v3022 = vmul.f32 %v3018, 0.5
    %v3023 = vmul.f32 %v3020, 0.5
    %v3024 = vadd.f32 %v3021, 0.5
    %v3025 = vadd.f32 %v3022, 0.5
    %v3026 = vadd.f32 %v3023, 0.5
    %v3027 = vmul.f32 %v3025, %v2688
    %v3028 = vmul.f32 %v3024, %v3019
    %v3029 = vadd.f32 %v3027, %v3028
    %v3030 = vtanh.pop %v3029
    %v3031 = vmul.f32 %v3026, %v3030
    %3032 = vst [vmem:[#allocation10 + $0x6] sm:$0x1] %v3031
    %v3034 = vrot.slane %v3031, 1
    %v3036 = vrot.slane %v2870, 7
    %v3037 = vrot.slane %v3034, 7
    %3040 = vmatprep.subr.mxu0 %v343
    %3041 = vmatpush1.msra.mxu0 %v342
    %3042 = vmatprep.subr.mxu0 %v347
    %3043 = vmatpush1.msra.mxu0 %v346
    %3044 = vmatprep.subr.mxu0 %v351
    %3045 = vmatpush1.msra.mxu0 %v350
    %3046 = vmatprep.subr.mxu0 %v355
    %3047 = vmatpush1.msra.mxu0 %v354
    %3048 = vmatprep.subr.mxu0 %v359
    %3049 = vmatpush1.msra.mxu0 %v358
    %3050 = vmatprep.subr.mxu0 %v363
    %3051 = vmatpush1.msra.mxu0 %v362
    %3052 = vmatprep.subr.mxu0 %v367
    %3053 = vmatpush1.msra.mxu0 %v366
    %3054 = vmatprep.subr.mxu0 %v371
    %3055 = vmatpush1.msra.mxu0 %v370
    %3056 = vmatprep.subr.mxu0 %v375
    %3057 = vmatpush1.msra.mxu0 %v374
    %3058 = vmatprep.subr.mxu0 %v379
    %3059 = vmatpush1.msra.mxu0 %v378
    %3060 = vmatprep.subr.mxu0 %v383
    %3061 = vmatpush1.msra.mxu0 %v382
    %3062 = vmatprep.subr.mxu0 %v387
    %3063 = vmatpush1.msra.mxu0 %v386
    %3064 = vmatprep.subr.mxu0 %v391
    %3065 = vmatpush1.msra.mxu0 %v390
    %3066 = vmatprep.subr.mxu0 %v395
    %3067 = vmatpush1.msra.mxu0 %v394
    %3068 = vmatprep.subr.mxu0 %v399
    %3069 = vmatpush1.msra.mxu0 %v398
    %3070 = vmatprep.subr.mxu0 %v403
    %3071 = vmatpush1.msra.mxu0 %v402
    %3072 = vmatprep.subr.mxu0 %v407
    %3073 = vmatpush1.msra.mxu0 %v406
    %3074 = vmatprep.subr.mxu0 %v411
    %3075 = vmatpush1.msra.mxu0 %v410
    %3076 = vmatprep.subr.mxu0 %v415
    %3077 = vmatpush1.msra.mxu0 %v414
    %3078 = vmatprep.subr.mxu0 %v419
    %3079 = vmatpush1.msra.mxu0 %v418
    %3080 = vmatprep.subr.mxu0 %v423
    %3081 = vmatpush1.msra.mxu0 %v422
    %3082 = vmatprep.subr.mxu0 %v427
    %3083 = vmatpush1.msra.mxu0 %v426
    %3084 = vmatprep.subr.mxu0 %v431
    %3085 = vmatpush1.msra.mxu0 %v430
    %3086 = vmatprep.subr.mxu0 %v435
    %3087 = vmatpush1.msra.mxu0 %v434
    %3088 = vmatprep.subr.mxu0 %v439
    %3089 = vmatpush1.msra.mxu0 %v438
    %3090 = vmatprep.subr.mxu0 %v443
    %3091 = vmatpush1.msra.mxu0 %v442
    %3092 = vmatprep.subr.mxu0 %v447
    %3093 = vmatpush1.msra.mxu0 %v446
    %3094 = vmatprep.subr.mxu0 %v451
    %3095 = vmatpush1.msra.mxu0 %v450
    %3096 = vmatprep.subr.mxu0 %v455
    %3097 = vmatpush1.msra.mxu0 %v454
    %3098 = vmatprep.subr.mxu0 %v459
    %3099 = vmatpush1.msra.mxu0 %v458
    %3100 = vmatprep.subr.mxu0 %v463
    %3101 = vmatpush1.msra.mxu0 %v462
    %3102 = vmatprep.subr.mxu0 %v467
    %3103 = vmatpush1.msra.mxu0 %v466
    %3104 = vmatprep.mubr.f32.mxu0 %v3037
    %3105 = vmatmul.mubr.f32.gmra.mrb[0].mxu0 %v3036
    %v3106 = vpop.f32.mrb[0].mxu0
    %v3107 = vadd.f32 %v812, %v3106
    %v3108 = vpop.f32.mrb[0].mxu0
    %v3109 = vadd.f32 %v816, %v3108
    %3110 = vdwg.mxu0
    %3111 = vmatprep.subr.mxu0 %v345
    %3112 = vmatpush1.msra.mxu0 %v344
    %3113 = vmatprep.subr.mxu0 %v349
    %3114 = vmatpush1.msra.mxu0 %v348
    %3115 = vmatprep.subr.mxu0 %v353
    %3116 = vmatpush1.msra.mxu0 %v352
    %3117 = vmatprep.subr.mxu0 %v357
    %3118 = vmatpush1.msra.mxu0 %v356
    %3119 = vmatprep.subr.mxu0 %v361
    %3120 = vmatpush1.msra.mxu0 %v360
    %3121 = vmatprep.subr.mxu0 %v365
    %3122 = vmatpush1.msra.mxu0 %v364
    %3123 = vmatprep.subr.mxu0 %v369
    %3124 = vmatpush1.msra.mxu0 %v368
    %3125 = vmatprep.subr.mxu0 %v373
    %3126 = vmatpush1.msra.mxu0 %v372
    %3127 = vmatprep.subr.mxu0 %v377
    %3128 = vmatpush1.msra.mxu0 %v376
    %3129 = vmatprep.subr.mxu0 %v381
    %3130 = vmatpush1.msra.mxu0 %v380
    %3131 = vmatprep.subr.mxu0 %v385
    %3132 = vmatpush1.msra.mxu0 %v384
    %3133 = vmatprep.subr.mxu0 %v389
    %3134 = vmatpush1.msra.mxu0 %v388
    %3135 = vmatprep.subr.mxu0 %v393
    %3136 = vmatpush1.msra.mxu0 %v392
    %3137 = vmatprep.subr.mxu0 %v397
    %3138 = vmatpush1.msra.mxu0 %v396
    %3139 = vmatprep.subr.mxu0 %v401
    %3140 = vmatpush1.msra.mxu0 %v400
    %3141 = vmatprep.subr.mxu0 %v405
    %3142 = vmatpush1.msra.mxu0 %v404
    %3143 = vmatprep.subr.mxu0 %v409
    %3144 = vmatpush1.msra.mxu0 %v408
    %3145 = vmatprep.subr.mxu0 %v413
    %3146 = vmatpush1.msra.mxu0 %v412
    %3147 = vmatprep.subr.mxu0 %v417
    %3148 = vmatpush1.msra.mxu0 %v416
    %3149 = vmatprep.subr.mxu0 %v421
    %3150 = vmatpush1.msra.mxu0 %v420
    %3151 = vmatprep.subr.mxu0 %v425
    %3152 = vmatpush1.msra.mxu0 %v424
    %3153 = vmatprep.subr.mxu0 %v429
    %3154 = vmatpush1.msra.mxu0 %v428
    %3155 = vmatprep.subr.mxu0 %v433
    %3156 = vmatpush1.msra.mxu0 %v432
    %3157 = vmatprep.subr.mxu0 %v437
    %3158 = vmatpush1.msra.mxu0 %v436
    %3159 = vmatprep.subr.mxu0 %v441
    %3160 = vmatpush1.msra.mxu0 %v440
    %3161 = vmatprep.subr.mxu0 %v445
    %3162 = vmatpush1.msra.mxu0 %v444
    %3163 = vmatprep.subr.mxu0 %v449
    %3164 = vmatpush1.msra.mxu0 %v448
    %3165 = vmatprep.subr.mxu0 %v453
    %3166 = vmatpush1.msra.mxu0 %v452
    %3167 = vmatprep.subr.mxu0 %v457
    %3168 = vmatpush1.msra.mxu0 %v456
    %3169 = vmatprep.subr.mxu0 %v461
    %3170 = vmatpush1.msra.mxu0 %v460
    %3171 = vmatprep.subr.mxu0 %v465
    %3172 = vmatpush1.msra.mxu0 %v464
    %3173 = vmatprep.subr.mxu0 %v469
    %3174 = vmatpush1.msra.mxu0 %v468
    %3175 = vmatprep.mubr.f32.mxu0 %v3037
    %3176 = vmatmul.mubr.f32.gmra.mrb[0].mxu0 %v3036
    %v3177 = vpop.f32.mrb[0].mxu0
    %v3178 = vadd.f32 %v820, %v3177
    %v3179 = vpop.f32.mrb[0].mxu0
    %v3180 = vadd.f32 %v824, %v3179
    %3181 = vdwg.mxu0
    %v3182 = vtanh.pop %v3107
    %v3183 = vtanh.pop %v3109
    %v3184 = vtanh.pop %v3178
    %v3185 = vtanh.pop %v3180
    %v3186 = vmul.f32 %v3182, 0.5
    %v3187 = vmul.f32 %v3183, 0.5
    %v3188 = vmul.f32 %v3185, 0.5
    %v3189 = vadd.f32 %v3186, 0.5
    %v3190 = vadd.f32 %v3187, 0.5
    %v3191 = vadd.f32 %v3188, 0.5
    %v3192 = vmul.f32 %v3190, %v3029
    %v3193 = vmul.f32 %v3189, %v3184
    %v3194 = vadd.f32 %v3192, %v3193
    %v3195 = vtanh.pop %v3194
    %v3196 = vmul.f32 %v3191, %v3195
    %3197 = vst [vmem:[#allocation10 + $0x7] sm:$0x1] %v3196
    // Predicated region
    $region42: #{tpu_custom_call.1} parent=1 // pred_check
      _
    $region43: #{tpu_custom_call.1} parent=1 // pred_check_branch
      %3199 = sbr.rel (0) target = $region45
    $region44: #{tpu_custom_call.1} parent=1 // pred_region
      %s3201 = ssub.s32 128, 128
      %3202 = vsyncadd [#allocation4], %s3201
      %s3204 = sshll.u32 [#allocation10], 4
      %s3205 = int_to_ptr.vmem [resolvable:$true] %s3204
      %3207 = dma.vmem_to_hbm [thread:$0]  %s3205, 128, %s6, [#allocation4]
    $region45: #{tpu_custom_call.1} parent=1 // pred_fallthru
      _
    // Predicated region
    $region46: #{tpu_custom_call.1} parent=1 // pred_check
      _
    $region47: #{tpu_custom_call.1} parent=1 // pred_check_branch
      %3209 = sbr.rel (0) target = $region49
    $region48: #{tpu_custom_call.1} parent=1 // pred_region
      %3210 = dma.done [#allocation4], 128
    $region49: #{tpu_custom_call.1} parent=1 // pred_fallthru
      _
    %3211 = vsyncpa [#allocation3], 1
    %3212 = vsyncpa [#allocation6], 1
    %3213 = vsyncpa [#allocation9], 1
    %3214 = vsyncpa [#allocation4], 1

</llo_original>
